<compile_context>
chip_gen: v7x
topology: tpu7x:2x2x1
jax: 0.10.0
libtpu: 0.0.40
codegen_flags: <defaults>
</compile_context>

<pallas_src>
import functools

import jax
import jax.numpy as jnp
from jax.experimental import pallas as pl
from jax.experimental.pallas import tpu as pltpu

PROJ_DIM = 64
NUM_HEADS = 4
HEAD_DIM = PROJ_DIM // NUM_HEADS          # 16
NUM_ATTN = 3
NUM_GROUPS = NUM_ATTN * NUM_HEADS         # 12
OUTPUT_DIM = 128


# ----------------------------------------------------------------------------
# Pallas kernel: one batch tile (BT elements, rows flattened to BT*S) per step.
# ----------------------------------------------------------------------------
def fusion_kernel(x_ref, wq_ref, bq_ref, wk_ref, bk_ref, wv_ref, bv_ref,
                  wout_ref, bout_ref, out_ref, *, bt, s):
    p3 = wq_ref.shape[1]                         # 3 * PROJ_DIM
    rows = bt * s

    x = x_ref[...]                               # (BT*S, Dpad) lane-dense

    # Packed Q/K/V projections for all 3 cross-attentions; the per-feature input
    # projections and the 1/sqrt(head_dim) scale are pre-folded into these.
    q = jnp.dot(x, wq_ref[...], preferred_element_type=jnp.float32) + bq_ref[...]
    k = jnp.dot(x, wk_ref[...], preferred_element_type=jnp.float32) + bk_ref[...]
    v = jnp.dot(x, wv_ref[...], preferred_element_type=jnp.float32) + bv_ref[...]

    q3 = q.reshape(bt, s, p3)
    k3 = k.reshape(bt, s, p3)
    v3 = v.reshape(bt, s, p3)

    # Accumulate ReLU(fc(concat(attn_out))) without ever materializing the concat:
    # out = sum_g ctx_g @ (Wo_g^T @ fcw_g^T) + (sum_a bo_a @ fcw_a^T + fcb)
    acc = jnp.zeros((rows, OUTPUT_DIM), jnp.float32)
    for g in range(NUM_GROUPS):                  # static unroll: 3 attn x 4 heads
        lo = g * HEAD_DIM
        hi = lo + HEAD_DIM
        qg = q3[:, :, lo:hi]                     # (BT, S, Hd)
        kg = k3[:, :, lo:hi]
        vg = v3[:, :, lo:hi]

        sc = jnp.einsum('bqd,bkd->bqk', qg, kg,
                        preferred_element_type=jnp.float32)     # (BT, S, S)
        sc = sc - jnp.max(sc, axis=-1, keepdims=True)
        e = jnp.exp(sc)
        pr = e * pl.reciprocal(jnp.sum(e, axis=-1, keepdims=True), approx=True)

        cg = jnp.einsum('bqk,bkd->bqd', pr, vg,
                        preferred_element_type=jnp.float32)     # (BT, S, Hd)
        acc = acc + jnp.dot(cg.reshape(rows, HEAD_DIM), wout_ref[g],
                            preferred_element_type=jnp.float32)

    # ReLU; Dropout layers are identity in eval mode.
    # TODO(synk): training-mode dropout would need pltpu.prng_seed/prng_random_bits.
    out_ref[...] = jnp.maximum(acc + bout_ref[...], 0.0)


# ----------------------------------------------------------------------------
# Host-side, one-time parameter packing (transposes, block packing, folding of
# input-proj / scale / out_proj / fc, zero-padding to lane-dense K, 2-D biases).
# ----------------------------------------------------------------------------
def prepare_kernel_params(params, d1, d2, d3):
    (w1, b1, w2, b2, w3, b3, wqkv, bqkv, wo, bo, fcw, fcb) = params
    P, H, Hd, O = PROJ_DIM, NUM_HEADS, HEAD_DIM, OUTPUT_DIM
    P3 = 3 * P
    dtot = d1 + d2 + d3
    dpad = ((dtot + 127) // 128) * 128
    scale = 1.0 / (Hd ** 0.5)

    # Block-diagonal input projection: x @ wproj -> [p1 | p2 | p3]
    wproj = jnp.zeros((dtot, P3), jnp.float32)
    wproj = wproj.at[0:d1, 0:P].set(w1.T)
    wproj = wproj.at[d1:d1 + d2, P:2 * P].set(w2.T)
    wproj = wproj.at[d1 + d2:dtot, 2 * P:3 * P].set(w3.T)
    bproj = jnp.concatenate([b1, b2, b3]).reshape(1, P3)

    # Attention a: query source / key-value source (block index into [p1|p2|p3]).
    q_src = (0, 0, 1)      # attn12: q=p1, attn13: q=p1, attn23: q=p2
    kv_src = (1, 2, 2)     # attn12: kv=p2, attn13: kv=p3, attn23: kv=p3

    wq_blk = jnp.zeros((P3, P3), jnp.float32)
    wk_blk = jnp.zeros((P3, P3), jnp.float32)
    wv_blk = jnp.zeros((P3, P3), jnp.float32)
    bq_all = jnp.zeros((P3,), jnp.float32)
    bk_all = jnp.zeros((P3,), jnp.float32)
    bv_all = jnp.zeros((P3,), jnp.float32)
    for a in range(NUM_ATTN):
        wq_a, wk_a, wv_a = wqkv[a, 0:P, :], wqkv[a, P:2 * P, :], wqkv[a, 2 * P:3 * P, :]
        bq_a, bk_a, bv_a = bqkv[a, 0:P], bqkv[a, P:2 * P], bqkv[a, 2 * P:3 * P]
        qs, ks = q_src[a], kv_src[a]
        wq_blk = wq_blk.at[qs * P:(qs + 1) * P, a * P:(a + 1) * P].set(wq_a.T * scale)
        wk_blk = wk_blk.at[ks * P:(ks + 1) * P, a * P:(a + 1) * P].set(wk_a.T)
        wv_blk = wv_blk.at[ks * P:(ks + 1) * P, a * P:(a + 1) * P].set(wv_a.T)
        bq_all = bq_all.at[a * P:(a + 1) * P].set(bq_a * scale)
        bk_all = bk_all.at[a * P:(a + 1) * P].set(bk_a)
        bv_all = bv_all.at[a * P:(a + 1) * P].set(bv_a)

    # Fold the input projection into Q/K/V (exact):
    #   q = (x @ Wproj + bproj) @ Wq + bq  ==  x @ (Wproj @ Wq) + (bproj @ Wq + bq)
    wq_f = wproj @ wq_blk
    wk_f = wproj @ wk_blk
    wv_f = wproj @ wv_blk
    bq_f = bproj @ wq_blk + bq_all.reshape(1, P3)
    bk_f = bproj @ wk_blk + bk_all.reshape(1, P3)
    bv_f = bproj @ wv_blk + bv_all.reshape(1, P3)

    # Zero-pad the contraction dim to a lane-dense multiple of 128.
    def pad_rows(w):
        return jnp.zeros((dpad, P3), jnp.float32).at[0:dtot, :].set(w)
    wq_f, wk_f, wv_f = pad_rows(wq_f), pad_rows(wk_f), pad_rows(wv_f)

    # Fold out_proj + fc:  out = sum_{a,h} ctx_{a,h} @ wout[a*H+h] + bout
    wout = jnp.zeros((NUM_GROUPS, Hd, O), jnp.float32)
    bout = fcb.astype(jnp.float32)
    for a in range(NUM_ATTN):
        fcw_a_t = fcw[:, a * P:(a + 1) * P].T          # (P, O)
        wo_a_t = wo[a].T                               # (P, P)
        for h in range(H):
            g = a * H + h
            wout = wout.at[g].set(wo_a_t[h * Hd:(h + 1) * Hd, :] @ fcw_a_t)
        bout = bout + bo[a] @ fcw_a_t
    bout = bout.reshape(1, O)

    kparams = (wq_f, bq_f, wk_f, bk_f, wv_f, bv_f, wout, bout)
    return kparams, dpad


def _rep_spec(arr):
    nd = arr.ndim
    return pl.BlockSpec(arr.shape, lambda b, _nd=nd: (0,) * _nd)


def cross_attention_feature_fusion(f1, f2, f3, params):
    """f1/f2/f3: (seq_len, batch, feature_dim_i) float32 (PyTorch MHA layout)."""
    S, B, _ = f1.shape
    d1, d2, d3 = f1.shape[-1], f2.shape[-1], f3.shape[-1]
    dtot = d1 + d2 + d3

    kparams, dpad = prepare_kernel_params(params, d1, d2, d3)

    # Single fused, batch-major, row-flattened, lane-dense input: (B*S, Dpad).
    x = jnp.concatenate([f1, f2, f3], axis=-1)                 # (S, B, Dtot)
    x = jnp.transpose(x, (1, 0, 2)).astype(jnp.float32).reshape(B * S, dtot)
    if dpad != dtot:
        x = jnp.pad(x, ((0, 0), (0, dpad - dtot)))

    # Batch tile: as many elements per grid step as divide B (<= 16); for large B
    # this keeps the grid length > 1 so v7x can shard it across both TensorCores.
    BT = 1
    for cand in (16, 8, 4, 2):
        if B % cand == 0:
            BT = cand
            break
    grid = (B // BT,)

    out2 = pl.pallas_call(
        functools.partial(fusion_kernel, bt=BT, s=S),
        out_shape=jax.ShapeDtypeStruct((B * S, OUTPUT_DIM), jnp.float32),
        grid=grid,
        in_specs=[pl.BlockSpec((BT * S, dpad), lambda b: (b, 0))]
                 + [_rep_spec(p) for p in kparams],
        out_specs=pl.BlockSpec((BT * S, OUTPUT_DIM), lambda b: (b, 0)),
        compiler_params=pltpu.CompilerParams(dimension_semantics=("parallel",)),
    )(x, *kparams)

    return jnp.transpose(out2.reshape(B, S, OUTPUT_DIM), (1, 0, 2))   # (S, B, O)


# ----------------------------------------------------------------------------
# Independent pure-JAX reference (original, unfolded torch-style math).
# ----------------------------------------------------------------------------
def _mha_ref(q, kv, wqkv_a, bqkv_a, wo_a, bo_a):
    P, H, Hd = PROJ_DIM, NUM_HEADS, HEAD_DIM
    wq, wk, wv = wqkv_a[0:P], wqkv_a[P:2 * P], wqkv_a[2 * P:3 * P]
    bq, bk, bv = bqkv_a[0:P], bqkv_a[P:2 * P], bqkv_a[2 * P:3 * P]
    qp = q @ wq.T + bq
    kp = kv @ wk.T + bk
    vp = kv @ wv.T + bv
    scale = 1.0 / (Hd ** 0.5)
    heads = []
    for h in range(H):
        sl = slice(h * Hd, (h + 1) * Hd)
        s = (qp[:, sl] * scale) @ kp[:, sl].T
        s = s - jnp.max(s, axis=-1, keepdims=True)
        e = jnp.exp(s)
        pr = e / jnp.sum(e, axis=-1, keepdims=True)
        heads.append(pr @ vp[:, sl])
    o = jnp.concatenate(heads, axis=-1)
    return o @ wo_a.T + bo_a


def reference(f1, f2, f3, params):
    (w1, b1, w2, b2, w3, b3, wqkv, bqkv, wo, bo, fcw, fcb) = params

    def per_batch(x1, x2, x3):
        p1 = x1 @ w1.T + b1
        p2 = x2 @ w2.T + b2
        p3 = x3 @ w3.T + b3
        a12 = _mha_ref(p1, p2, wqkv[0], bqkv[0], wo[0], bo[0])
        a13 = _mha_ref(p1, p3, wqkv[1], bqkv[1], wo[1], bo[1])
        a23 = _mha_ref(p2, p3, wqkv[2], bqkv[2], wo[2], bo[2])
        fused = jnp.concatenate([a12, a13, a23], axis=-1)
        return jnp.maximum(fused @ fcw.T + fcb, 0.0)

    out = jax.vmap(per_batch)(jnp.transpose(f1, (1, 0, 2)),
                              jnp.transpose(f2, (1, 0, 2)),
                              jnp.transpose(f3, (1, 0, 2)))
    return jnp.transpose(out, (1, 0, 2))


def init_params(key, d1, d2, d3):
    P, O = PROJ_DIM, OUTPUT_DIM
    ks = jax.random.split(key, 12)

    def rnd(k, shape, scale=0.05):
        return jax.random.normal(k, shape, jnp.float32) * scale

    w1, b1 = rnd(ks[0], (P, d1)), rnd(ks[1], (P,))
    w2, b2 = rnd(ks[2], (P, d2)), rnd(ks[3], (P,))
    w3, b3 = rnd(ks[4], (P, d3)), rnd(ks[5], (P,))
    wqkv = rnd(ks[6], (3, 3 * P, P))       # packed in_proj for the 3 MHA modules
    bqkv = rnd(ks[7], (3, 3 * P))
    wo = rnd(ks[8], (3, P, P))             # out_proj
    bo = rnd(ks[9], (3, P))
    fcw = rnd(ks[10], (O, 3 * P))
    fcb = rnd(ks[11], (O,))
    return (w1, b1, w2, b2, w3, b3, wqkv, bqkv, wo, bo, fcw, fcb)


if __name__ == "__main__":
    SEQ, BATCH = 8, 2
    D1, D2, D3 = 32, 48, 16

    key = jax.random.PRNGKey(0)
    k1, k2, k3, kp = jax.random.split(key, 4)
    f1 = jax.random.normal(k1, (SEQ, BATCH, D1), jnp.float32)
    f2 = jax.random.normal(k2, (SEQ, BATCH, D2), jnp.float32)
    f3 = jax.random.normal(k3, (SEQ, BATCH, D3), jnp.float32)
    params = init_params(kp, D1, D2, D3)

    out = jax.block_until_ready(cross_attention_feature_fusion(f1, f2, f3, params))
    ref = jax.block_until_ready(reference(f1, f2, f3, params))

    assert out.shape == (SEQ, BATCH, OUTPUT_DIM)
    # tolerance slightly loosened vs f32-exact because of pl.reciprocal(approx=True)
    # and the (mathematically exact) weight folding / re-association.
    assert jnp.allclose(out, ref, rtol=2e-3, atol=2e-3), "mismatch vs JAX reference"

    print("KERNEL_OK")
</pallas_src>

<mosaic_0001>
module attributes {stable_mosaic.version = 11 : i64} {
  func.func @fusion_kernel(%arg0: i32, %arg1: memref<16x128xf32, #tpu.memory_space<vmem>>, %arg2: memref<128x192xf32, #tpu.memory_space<vmem>>, %arg3: memref<1x192xf32, #tpu.memory_space<vmem>>, %arg4: memref<128x192xf32, #tpu.memory_space<vmem>>, %arg5: memref<1x192xf32, #tpu.memory_space<vmem>>, %arg6: memref<128x192xf32, #tpu.memory_space<vmem>>, %arg7: memref<1x192xf32, #tpu.memory_space<vmem>>, %arg8: memref<12x16x128xf32, #tpu.memory_space<vmem>>, %arg9: memref<1x128xf32, #tpu.memory_space<vmem>>, %arg10: memref<16x128xf32, #tpu.memory_space<vmem>>) attributes {dimension_semantics = [#tpu.dimension_semantics<parallel>], iteration_bounds = array<i64: 1>, scalar_prefetch = 0 : i64, scratch_operands = 0 : i64, tpu.core_type = #tpu.core_type<tc>, window_params = [{transform_indices = @transform_0, window_bounds = array<i64: 16, 128>}, {pipeline_mode = #tpu.pipeline_mode<synchronous>, transform_indices = @transform_1, window_bounds = array<i64: 128, 192>}, {pipeline_mode = #tpu.pipeline_mode<synchronous>, transform_indices = @transform_2, window_bounds = array<i64: 1, 192>}, {pipeline_mode = #tpu.pipeline_mode<synchronous>, transform_indices = @transform_3, window_bounds = array<i64: 128, 192>}, {pipeline_mode = #tpu.pipeline_mode<synchronous>, transform_indices = @transform_4, window_bounds = array<i64: 1, 192>}, {pipeline_mode = #tpu.pipeline_mode<synchronous>, transform_indices = @transform_5, window_bounds = array<i64: 128, 192>}, {pipeline_mode = #tpu.pipeline_mode<synchronous>, transform_indices = @transform_6, window_bounds = array<i64: 1, 192>}, {pipeline_mode = #tpu.pipeline_mode<synchronous>, transform_indices = @transform_7, window_bounds = array<i64: 12, 16, 128>}, {pipeline_mode = #tpu.pipeline_mode<synchronous>, transform_indices = @transform_8, window_bounds = array<i64: 1, 128>}, {transform_indices = @transform_9, window_bounds = array<i64: 16, 128>}]} {
    %c0 = arith.constant 0 : index
    %c0_0 = arith.constant 0 : index
    %0 = vector.load %arg1[%c0, %c0_0] : memref<16x128xf32, #tpu.memory_space<vmem>>, vector<16x128xf32>
    %c0_1 = arith.constant 0 : index
    %c0_2 = arith.constant 0 : index
    %1 = vector.load %arg2[%c0_1, %c0_2] : memref<128x192xf32, #tpu.memory_space<vmem>>, vector<128x192xf32>
    %cst = arith.constant dense<0.000000e+00> : vector<16x192xf32>
    %2 = tpu.matmul %0, %1, %cst {dimension_numbers = #tpu.dot_dimension_numbers<[1], [0], [0], [1], [0, 0, 1, 1], [], []>} : vector<16x128xf32>, vector<128x192xf32>, vector<16x192xf32> -> vector<16x192xf32>
    %c0_3 = arith.constant 0 : index
    %c0_4 = arith.constant 0 : index
    %3 = vector.load %arg3[%c0_3, %c0_4] : memref<1x192xf32, #tpu.memory_space<vmem>>, vector<1x192xf32>
    %4 = vector.broadcast %3 : vector<1x192xf32> to vector<16x192xf32>
    %5 = arith.addf %2, %4 : vector<16x192xf32>
    %c0_5 = arith.constant 0 : index
    %c0_6 = arith.constant 0 : index
    %6 = vector.load %arg4[%c0_5, %c0_6] : memref<128x192xf32, #tpu.memory_space<vmem>>, vector<128x192xf32>
    %cst_7 = arith.constant dense<0.000000e+00> : vector<16x192xf32>
    %7 = tpu.matmul %0, %6, %cst_7 {dimension_numbers = #tpu.dot_dimension_numbers<[1], [0], [0], [1], [0, 0, 1, 1], [], []>} : vector<16x128xf32>, vector<128x192xf32>, vector<16x192xf32> -> vector<16x192xf32>
    %c0_8 = arith.constant 0 : index
    %c0_9 = arith.constant 0 : index
    %8 = vector.load %arg5[%c0_8, %c0_9] : memref<1x192xf32, #tpu.memory_space<vmem>>, vector<1x192xf32>
    %9 = vector.broadcast %8 : vector<1x192xf32> to vector<16x192xf32>
    %10 = arith.addf %7, %9 : vector<16x192xf32>
    %c0_10 = arith.constant 0 : index
    %c0_11 = arith.constant 0 : index
    %11 = vector.load %arg6[%c0_10, %c0_11] : memref<128x192xf32, #tpu.memory_space<vmem>>, vector<128x192xf32>
    %cst_12 = arith.constant dense<0.000000e+00> : vector<16x192xf32>
    %12 = tpu.matmul %0, %11, %cst_12 {dimension_numbers = #tpu.dot_dimension_numbers<[1], [0], [0], [1], [0, 0, 1, 1], [], []>} : vector<16x128xf32>, vector<128x192xf32>, vector<16x192xf32> -> vector<16x192xf32>
    %c0_13 = arith.constant 0 : index
    %c0_14 = arith.constant 0 : index
    %13 = vector.load %arg7[%c0_13, %c0_14] : memref<1x192xf32, #tpu.memory_space<vmem>>, vector<1x192xf32>
    %14 = vector.broadcast %13 : vector<1x192xf32> to vector<16x192xf32>
    %15 = arith.addf %12, %14 : vector<16x192xf32>
    %16 = vector.shape_cast %5 : vector<16x192xf32> to vector<2x8x192xf32>
    %17 = vector.shape_cast %10 : vector<16x192xf32> to vector<2x8x192xf32>
    %18 = vector.shape_cast %15 : vector<16x192xf32> to vector<2x8x192xf32>
    %cst_15 = arith.constant 0.000000e+00 : f32
    %19 = vector.broadcast %cst_15 : f32 to vector<16x128xf32>
    %20 = vector.extract_strided_slice %16 {offsets = [0, 0, 0], sizes = [2, 8, 16], strides = [1, 1, 1]} : vector<2x8x192xf32> to vector<2x8x16xf32>
    %21 = vector.extract_strided_slice %17 {offsets = [0, 0, 0], sizes = [2, 8, 16], strides = [1, 1, 1]} : vector<2x8x192xf32> to vector<2x8x16xf32>
    %22 = vector.extract_strided_slice %18 {offsets = [0, 0, 0], sizes = [2, 8, 16], strides = [1, 1, 1]} : vector<2x8x192xf32> to vector<2x8x16xf32>
    "tpu.trace_start"() <{level = 10 : i32, message = "bqd,bkd->bqk"}> : () -> ()
    %cst_16 = arith.constant dense<0.000000e+00> : vector<2x8x8xf32>
    %23 = tpu.matmul %20, %21, %cst_16 {dimension_numbers = #tpu.dot_dimension_numbers<[2], [2], [1], [1], [0, 0, 0, 1, 1, 1], [0], [0]>} : vector<2x8x16xf32>, vector<2x8x16xf32>, vector<2x8x8xf32> -> vector<2x8x8xf32>
    "tpu.trace_stop"() : () -> ()
    %cst_17 = arith.constant dense<0xFF800000> : vector<2x8xf32>
    %24 = vector.multi_reduction <maximumf>, %23, %cst_17 [2] : vector<2x8x8xf32> to vector<2x8xf32>
    %25 = vector.shape_cast %24 : vector<2x8xf32> to vector<2x8x1xf32>
    %26 = vector.broadcast %25 : vector<2x8x1xf32> to vector<2x8x8xf32>
    %27 = arith.subf %23, %26 : vector<2x8x8xf32>
    %28 = math.exp %27 : vector<2x8x8xf32>
    %cst_18 = arith.constant dense<0.000000e+00> : vector<2x8xf32>
    %29 = vector.multi_reduction <add>, %28, %cst_18 [2] : vector<2x8x8xf32> to vector<2x8xf32>
    %30 = vector.shape_cast %29 : vector<2x8xf32> to vector<2x8x1xf32>
    %31 = tpu.reciprocal %30 {approx = true} : vector<2x8x1xf32> -> vector<2x8x1xf32>
    %32 = vector.broadcast %31 : vector<2x8x1xf32> to vector<2x8x8xf32>
    %33 = arith.mulf %28, %32 : vector<2x8x8xf32>
    "tpu.trace_start"() <{level = 10 : i32, message = "bqk,bkd->bqd"}> : () -> ()
    %cst_19 = arith.constant dense<0.000000e+00> : vector<2x8x16xf32>
    %34 = tpu.matmul %33, %22, %cst_19 {dimension_numbers = #tpu.dot_dimension_numbers<[2], [1], [1], [2], [0, 0, 0, 1, 1, 2], [0], [0]>} : vector<2x8x8xf32>, vector<2x8x16xf32>, vector<2x8x16xf32> -> vector<2x8x16xf32>
    "tpu.trace_stop"() : () -> ()
    %35 = vector.shape_cast %34 : vector<2x8x16xf32> to vector<16x16xf32>
    %c0_20 = arith.constant 0 : index
    %c0_21 = arith.constant 0 : index
    %c0_22 = arith.constant 0 : index
    %36 = vector.load %arg8[%c0_20, %c0_21, %c0_22] : memref<12x16x128xf32, #tpu.memory_space<vmem>>, vector<1x16x128xf32>
    %37 = vector.shape_cast %36 : vector<1x16x128xf32> to vector<16x128xf32>
    %cst_23 = arith.constant dense<0.000000e+00> : vector<16x128xf32>
    %38 = tpu.matmul %35, %37, %cst_23 {dimension_numbers = #tpu.dot_dimension_numbers<[1], [0], [0], [1], [0, 0, 1, 1], [], []>} : vector<16x16xf32>, vector<16x128xf32>, vector<16x128xf32> -> vector<16x128xf32>
    %39 = arith.addf %19, %38 : vector<16x128xf32>
    %40 = vector.extract_strided_slice %16 {offsets = [0, 0, 16], sizes = [2, 8, 16], strides = [1, 1, 1]} : vector<2x8x192xf32> to vector<2x8x16xf32>
    %41 = vector.extract_strided_slice %17 {offsets = [0, 0, 16], sizes = [2, 8, 16], strides = [1, 1, 1]} : vector<2x8x192xf32> to vector<2x8x16xf32>
    %42 = vector.extract_strided_slice %18 {offsets = [0, 0, 16], sizes = [2, 8, 16], strides = [1, 1, 1]} : vector<2x8x192xf32> to vector<2x8x16xf32>
    "tpu.trace_start"() <{level = 10 : i32, message = "bqd,bkd->bqk"}> : () -> ()
    %cst_24 = arith.constant dense<0.000000e+00> : vector<2x8x8xf32>
    %43 = tpu.matmul %40, %41, %cst_24 {dimension_numbers = #tpu.dot_dimension_numbers<[2], [2], [1], [1], [0, 0, 0, 1, 1, 1], [0], [0]>} : vector<2x8x16xf32>, vector<2x8x16xf32>, vector<2x8x8xf32> -> vector<2x8x8xf32>
    "tpu.trace_stop"() : () -> ()
    %cst_25 = arith.constant dense<0xFF800000> : vector<2x8xf32>
    %44 = vector.multi_reduction <maximumf>, %43, %cst_25 [2] : vector<2x8x8xf32> to vector<2x8xf32>
    %45 = vector.shape_cast %44 : vector<2x8xf32> to vector<2x8x1xf32>
    %46 = vector.broadcast %45 : vector<2x8x1xf32> to vector<2x8x8xf32>
    %47 = arith.subf %43, %46 : vector<2x8x8xf32>
    %48 = math.exp %47 : vector<2x8x8xf32>
    %cst_26 = arith.constant dense<0.000000e+00> : vector<2x8xf32>
    %49 = vector.multi_reduction <add>, %48, %cst_26 [2] : vector<2x8x8xf32> to vector<2x8xf32>
    %50 = vector.shape_cast %49 : vector<2x8xf32> to vector<2x8x1xf32>
    %51 = tpu.reciprocal %50 {approx = true} : vector<2x8x1xf32> -> vector<2x8x1xf32>
    %52 = vector.broadcast %51 : vector<2x8x1xf32> to vector<2x8x8xf32>
    %53 = arith.mulf %48, %52 : vector<2x8x8xf32>
    "tpu.trace_start"() <{level = 10 : i32, message = "bqk,bkd->bqd"}> : () -> ()
    %cst_27 = arith.constant dense<0.000000e+00> : vector<2x8x16xf32>
    %54 = tpu.matmul %53, %42, %cst_27 {dimension_numbers = #tpu.dot_dimension_numbers<[2], [1], [1], [2], [0, 0, 0, 1, 1, 2], [0], [0]>} : vector<2x8x8xf32>, vector<2x8x16xf32>, vector<2x8x16xf32> -> vector<2x8x16xf32>
    "tpu.trace_stop"() : () -> ()
    %55 = vector.shape_cast %54 : vector<2x8x16xf32> to vector<16x16xf32>
    %c1 = arith.constant 1 : index
    %c0_28 = arith.constant 0 : index
    %c0_29 = arith.constant 0 : index
    %56 = vector.load %arg8[%c1, %c0_28, %c0_29] : memref<12x16x128xf32, #tpu.memory_space<vmem>>, vector<1x16x128xf32>
    %57 = vector.shape_cast %56 : vector<1x16x128xf32> to vector<16x128xf32>
    %cst_30 = arith.constant dense<0.000000e+00> : vector<16x128xf32>
    %58 = tpu.matmul %55, %57, %cst_30 {dimension_numbers = #tpu.dot_dimension_numbers<[1], [0], [0], [1], [0, 0, 1, 1], [], []>} : vector<16x16xf32>, vector<16x128xf32>, vector<16x128xf32> -> vector<16x128xf32>
    %59 = arith.addf %39, %58 : vector<16x128xf32>
    %60 = vector.extract_strided_slice %16 {offsets = [0, 0, 32], sizes = [2, 8, 16], strides = [1, 1, 1]} : vector<2x8x192xf32> to vector<2x8x16xf32>
    %61 = vector.extract_strided_slice %17 {offsets = [0, 0, 32], sizes = [2, 8, 16], strides = [1, 1, 1]} : vector<2x8x192xf32> to vector<2x8x16xf32>
    %62 = vector.extract_strided_slice %18 {offsets = [0, 0, 32], sizes = [2, 8, 16], strides = [1, 1, 1]} : vector<2x8x192xf32> to vector<2x8x16xf32>
    "tpu.trace_start"() <{level = 10 : i32, message = "bqd,bkd->bqk"}> : () -> ()
    %cst_31 = arith.constant dense<0.000000e+00> : vector<2x8x8xf32>
    %63 = tpu.matmul %60, %61, %cst_31 {dimension_numbers = #tpu.dot_dimension_numbers<[2], [2], [1], [1], [0, 0, 0, 1, 1, 1], [0], [0]>} : vector<2x8x16xf32>, vector<2x8x16xf32>, vector<2x8x8xf32> -> vector<2x8x8xf32>
    "tpu.trace_stop"() : () -> ()
    %cst_32 = arith.constant dense<0xFF800000> : vector<2x8xf32>
    %64 = vector.multi_reduction <maximumf>, %63, %cst_32 [2] : vector<2x8x8xf32> to vector<2x8xf32>
    %65 = vector.shape_cast %64 : vector<2x8xf32> to vector<2x8x1xf32>
    %66 = vector.broadcast %65 : vector<2x8x1xf32> to vector<2x8x8xf32>
    %67 = arith.subf %63, %66 : vector<2x8x8xf32>
    %68 = math.exp %67 : vector<2x8x8xf32>
    %cst_33 = arith.constant dense<0.000000e+00> : vector<2x8xf32>
    %69 = vector.multi_reduction <add>, %68, %cst_33 [2] : vector<2x8x8xf32> to vector<2x8xf32>
    %70 = vector.shape_cast %69 : vector<2x8xf32> to vector<2x8x1xf32>
    %71 = tpu.reciprocal %70 {approx = true} : vector<2x8x1xf32> -> vector<2x8x1xf32>
    %72 = vector.broadcast %71 : vector<2x8x1xf32> to vector<2x8x8xf32>
    %73 = arith.mulf %68, %72 : vector<2x8x8xf32>
    "tpu.trace_start"() <{level = 10 : i32, message = "bqk,bkd->bqd"}> : () -> ()
    %cst_34 = arith.constant dense<0.000000e+00> : vector<2x8x16xf32>
    %74 = tpu.matmul %73, %62, %cst_34 {dimension_numbers = #tpu.dot_dimension_numbers<[2], [1], [1], [2], [0, 0, 0, 1, 1, 2], [0], [0]>} : vector<2x8x8xf32>, vector<2x8x16xf32>, vector<2x8x16xf32> -> vector<2x8x16xf32>
    "tpu.trace_stop"() : () -> ()
    %75 = vector.shape_cast %74 : vector<2x8x16xf32> to vector<16x16xf32>
    %c2 = arith.constant 2 : index
    %c0_35 = arith.constant 0 : index
    %c0_36 = arith.constant 0 : index
    %76 = vector.load %arg8[%c2, %c0_35, %c0_36] : memref<12x16x128xf32, #tpu.memory_space<vmem>>, vector<1x16x128xf32>
    %77 = vector.shape_cast %76 : vector<1x16x128xf32> to vector<16x128xf32>
    %cst_37 = arith.constant dense<0.000000e+00> : vector<16x128xf32>
    %78 = tpu.matmul %75, %77, %cst_37 {dimension_numbers = #tpu.dot_dimension_numbers<[1], [0], [0], [1], [0, 0, 1, 1], [], []>} : vector<16x16xf32>, vector<16x128xf32>, vector<16x128xf32> -> vector<16x128xf32>
    %79 = arith.addf %59, %78 : vector<16x128xf32>
    %80 = vector.extract_strided_slice %16 {offsets = [0, 0, 48], sizes = [2, 8, 16], strides = [1, 1, 1]} : vector<2x8x192xf32> to vector<2x8x16xf32>
    %81 = vector.extract_strided_slice %17 {offsets = [0, 0, 48], sizes = [2, 8, 16], strides = [1, 1, 1]} : vector<2x8x192xf32> to vector<2x8x16xf32>
    %82 = vector.extract_strided_slice %18 {offsets = [0, 0, 48], sizes = [2, 8, 16], strides = [1, 1, 1]} : vector<2x8x192xf32> to vector<2x8x16xf32>
    "tpu.trace_start"() <{level = 10 : i32, message = "bqd,bkd->bqk"}> : () -> ()
    %cst_38 = arith.constant dense<0.000000e+00> : vector<2x8x8xf32>
    %83 = tpu.matmul %80, %81, %cst_38 {dimension_numbers = #tpu.dot_dimension_numbers<[2], [2], [1], [1], [0, 0, 0, 1, 1, 1], [0], [0]>} : vector<2x8x16xf32>, vector<2x8x16xf32>, vector<2x8x8xf32> -> vector<2x8x8xf32>
    "tpu.trace_stop"() : () -> ()
    %cst_39 = arith.constant dense<0xFF800000> : vector<2x8xf32>
    %84 = vector.multi_reduction <maximumf>, %83, %cst_39 [2] : vector<2x8x8xf32> to vector<2x8xf32>
    %85 = vector.shape_cast %84 : vector<2x8xf32> to vector<2x8x1xf32>
    %86 = vector.broadcast %85 : vector<2x8x1xf32> to vector<2x8x8xf32>
    %87 = arith.subf %83, %86 : vector<2x8x8xf32>
    %88 = math.exp %87 : vector<2x8x8xf32>
    %cst_40 = arith.constant dense<0.000000e+00> : vector<2x8xf32>
    %89 = vector.multi_reduction <add>, %88, %cst_40 [2] : vector<2x8x8xf32> to vector<2x8xf32>
    %90 = vector.shape_cast %89 : vector<2x8xf32> to vector<2x8x1xf32>
    %91 = tpu.reciprocal %90 {approx = true} : vector<2x8x1xf32> -> vector<2x8x1xf32>
    %92 = vector.broadcast %91 : vector<2x8x1xf32> to vector<2x8x8xf32>
    %93 = arith.mulf %88, %92 : vector<2x8x8xf32>
    "tpu.trace_start"() <{level = 10 : i32, message = "bqk,bkd->bqd"}> : () -> ()
    %cst_41 = arith.constant dense<0.000000e+00> : vector<2x8x16xf32>
    %94 = tpu.matmul %93, %82, %cst_41 {dimension_numbers = #tpu.dot_dimension_numbers<[2], [1], [1], [2], [0, 0, 0, 1, 1, 2], [0], [0]>} : vector<2x8x8xf32>, vector<2x8x16xf32>, vector<2x8x16xf32> -> vector<2x8x16xf32>
    "tpu.trace_stop"() : () -> ()
    %95 = vector.shape_cast %94 : vector<2x8x16xf32> to vector<16x16xf32>
    %c3 = arith.constant 3 : index
    %c0_42 = arith.constant 0 : index
    %c0_43 = arith.constant 0 : index
    %96 = vector.load %arg8[%c3, %c0_42, %c0_43] : memref<12x16x128xf32, #tpu.memory_space<vmem>>, vector<1x16x128xf32>
    %97 = vector.shape_cast %96 : vector<1x16x128xf32> to vector<16x128xf32>
    %cst_44 = arith.constant dense<0.000000e+00> : vector<16x128xf32>
    %98 = tpu.matmul %95, %97, %cst_44 {dimension_numbers = #tpu.dot_dimension_numbers<[1], [0], [0], [1], [0, 0, 1, 1], [], []>} : vector<16x16xf32>, vector<16x128xf32>, vector<16x128xf32> -> vector<16x128xf32>
    %99 = arith.addf %79, %98 : vector<16x128xf32>
    %100 = vector.extract_strided_slice %16 {offsets = [0, 0, 64], sizes = [2, 8, 16], strides = [1, 1, 1]} : vector<2x8x192xf32> to vector<2x8x16xf32>
    %101 = vector.extract_strided_slice %17 {offsets = [0, 0, 64], sizes = [2, 8, 16], strides = [1, 1, 1]} : vector<2x8x192xf32> to vector<2x8x16xf32>
    %102 = vector.extract_strided_slice %18 {offsets = [0, 0, 64], sizes = [2, 8, 16], strides = [1, 1, 1]} : vector<2x8x192xf32> to vector<2x8x16xf32>
    "tpu.trace_start"() <{level = 10 : i32, message = "bqd,bkd->bqk"}> : () -> ()
    %cst_45 = arith.constant dense<0.000000e+00> : vector<2x8x8xf32>
    %103 = tpu.matmul %100, %101, %cst_45 {dimension_numbers = #tpu.dot_dimension_numbers<[2], [2], [1], [1], [0, 0, 0, 1, 1, 1], [0], [0]>} : vector<2x8x16xf32>, vector<2x8x16xf32>, vector<2x8x8xf32> -> vector<2x8x8xf32>
    "tpu.trace_stop"() : () -> ()
    %cst_46 = arith.constant dense<0xFF800000> : vector<2x8xf32>
    %104 = vector.multi_reduction <maximumf>, %103, %cst_46 [2] : vector<2x8x8xf32> to vector<2x8xf32>
    %105 = vector.shape_cast %104 : vector<2x8xf32> to vector<2x8x1xf32>
    %106 = vector.broadcast %105 : vector<2x8x1xf32> to vector<2x8x8xf32>
    %107 = arith.subf %103, %106 : vector<2x8x8xf32>
    %108 = math.exp %107 : vector<2x8x8xf32>
    %cst_47 = arith.constant dense<0.000000e+00> : vector<2x8xf32>
    %109 = vector.multi_reduction <add>, %108, %cst_47 [2] : vector<2x8x8xf32> to vector<2x8xf32>
    %110 = vector.shape_cast %109 : vector<2x8xf32> to vector<2x8x1xf32>
    %111 = tpu.reciprocal %110 {approx = true} : vector<2x8x1xf32> -> vector<2x8x1xf32>
    %112 = vector.broadcast %111 : vector<2x8x1xf32> to vector<2x8x8xf32>
    %113 = arith.mulf %108, %112 : vector<2x8x8xf32>
    "tpu.trace_start"() <{level = 10 : i32, message = "bqk,bkd->bqd"}> : () -> ()
    %cst_48 = arith.constant dense<0.000000e+00> : vector<2x8x16xf32>
    %114 = tpu.matmul %113, %102, %cst_48 {dimension_numbers = #tpu.dot_dimension_numbers<[2], [1], [1], [2], [0, 0, 0, 1, 1, 2], [0], [0]>} : vector<2x8x8xf32>, vector<2x8x16xf32>, vector<2x8x16xf32> -> vector<2x8x16xf32>
    "tpu.trace_stop"() : () -> ()
    %115 = vector.shape_cast %114 : vector<2x8x16xf32> to vector<16x16xf32>
    %c4 = arith.constant 4 : index
    %c0_49 = arith.constant 0 : index
    %c0_50 = arith.constant 0 : index
    %116 = vector.load %arg8[%c4, %c0_49, %c0_50] : memref<12x16x128xf32, #tpu.memory_space<vmem>>, vector<1x16x128xf32>
    %117 = vector.shape_cast %116 : vector<1x16x128xf32> to vector<16x128xf32>
    %cst_51 = arith.constant dense<0.000000e+00> : vector<16x128xf32>
    %118 = tpu.matmul %115, %117, %cst_51 {dimension_numbers = #tpu.dot_dimension_numbers<[1], [0], [0], [1], [0, 0, 1, 1], [], []>} : vector<16x16xf32>, vector<16x128xf32>, vector<16x128xf32> -> vector<16x128xf32>
    %119 = arith.addf %99, %118 : vector<16x128xf32>
    %120 = vector.extract_strided_slice %16 {offsets = [0, 0, 80], sizes = [2, 8, 16], strides = [1, 1, 1]} : vector<2x8x192xf32> to vector<2x8x16xf32>
    %121 = vector.extract_strided_slice %17 {offsets = [0, 0, 80], sizes = [2, 8, 16], strides = [1, 1, 1]} : vector<2x8x192xf32> to vector<2x8x16xf32>
    %122 = vector.extract_strided_slice %18 {offsets = [0, 0, 80], sizes = [2, 8, 16], strides = [1, 1, 1]} : vector<2x8x192xf32> to vector<2x8x16xf32>
    "tpu.trace_start"() <{level = 10 : i32, message = "bqd,bkd->bqk"}> : () -> ()
    %cst_52 = arith.constant dense<0.000000e+00> : vector<2x8x8xf32>
    %123 = tpu.matmul %120, %121, %cst_52 {dimension_numbers = #tpu.dot_dimension_numbers<[2], [2], [1], [1], [0, 0, 0, 1, 1, 1], [0], [0]>} : vector<2x8x16xf32>, vector<2x8x16xf32>, vector<2x8x8xf32> -> vector<2x8x8xf32>
    "tpu.trace_stop"() : () -> ()
    %cst_53 = arith.constant dense<0xFF800000> : vector<2x8xf32>
    %124 = vector.multi_reduction <maximumf>, %123, %cst_53 [2] : vector<2x8x8xf32> to vector<2x8xf32>
    %125 = vector.shape_cast %124 : vector<2x8xf32> to vector<2x8x1xf32>
    %126 = vector.broadcast %125 : vector<2x8x1xf32> to vector<2x8x8xf32>
    %127 = arith.subf %123, %126 : vector<2x8x8xf32>
    %128 = math.exp %127 : vector<2x8x8xf32>
    %cst_54 = arith.constant dense<0.000000e+00> : vector<2x8xf32>
    %129 = vector.multi_reduction <add>, %128, %cst_54 [2] : vector<2x8x8xf32> to vector<2x8xf32>
    %130 = vector.shape_cast %129 : vector<2x8xf32> to vector<2x8x1xf32>
    %131 = tpu.reciprocal %130 {approx = true} : vector<2x8x1xf32> -> vector<2x8x1xf32>
    %132 = vector.broadcast %131 : vector<2x8x1xf32> to vector<2x8x8xf32>
    %133 = arith.mulf %128, %132 : vector<2x8x8xf32>
    "tpu.trace_start"() <{level = 10 : i32, message = "bqk,bkd->bqd"}> : () -> ()
    %cst_55 = arith.constant dense<0.000000e+00> : vector<2x8x16xf32>
    %134 = tpu.matmul %133, %122, %cst_55 {dimension_numbers = #tpu.dot_dimension_numbers<[2], [1], [1], [2], [0, 0, 0, 1, 1, 2], [0], [0]>} : vector<2x8x8xf32>, vector<2x8x16xf32>, vector<2x8x16xf32> -> vector<2x8x16xf32>
    "tpu.trace_stop"() : () -> ()
    %135 = vector.shape_cast %134 : vector<2x8x16xf32> to vector<16x16xf32>
    %c5 = arith.constant 5 : index
    %c0_56 = arith.constant 0 : index
    %c0_57 = arith.constant 0 : index
    %136 = vector.load %arg8[%c5, %c0_56, %c0_57] : memref<12x16x128xf32, #tpu.memory_space<vmem>>, vector<1x16x128xf32>
    %137 = vector.shape_cast %136 : vector<1x16x128xf32> to vector<16x128xf32>
    %cst_58 = arith.constant dense<0.000000e+00> : vector<16x128xf32>
    %138 = tpu.matmul %135, %137, %cst_58 {dimension_numbers = #tpu.dot_dimension_numbers<[1], [0], [0], [1], [0, 0, 1, 1], [], []>} : vector<16x16xf32>, vector<16x128xf32>, vector<16x128xf32> -> vector<16x128xf32>
    %139 = arith.addf %119, %138 : vector<16x128xf32>
    %140 = vector.extract_strided_slice %16 {offsets = [0, 0, 96], sizes = [2, 8, 16], strides = [1, 1, 1]} : vector<2x8x192xf32> to vector<2x8x16xf32>
    %141 = vector.extract_strided_slice %17 {offsets = [0, 0, 96], sizes = [2, 8, 16], strides = [1, 1, 1]} : vector<2x8x192xf32> to vector<2x8x16xf32>
    %142 = vector.extract_strided_slice %18 {offsets = [0, 0, 96], sizes = [2, 8, 16], strides = [1, 1, 1]} : vector<2x8x192xf32> to vector<2x8x16xf32>
    "tpu.trace_start"() <{level = 10 : i32, message = "bqd,bkd->bqk"}> : () -> ()
    %cst_59 = arith.constant dense<0.000000e+00> : vector<2x8x8xf32>
    %143 = tpu.matmul %140, %141, %cst_59 {dimension_numbers = #tpu.dot_dimension_numbers<[2], [2], [1], [1], [0, 0, 0, 1, 1, 1], [0], [0]>} : vector<2x8x16xf32>, vector<2x8x16xf32>, vector<2x8x8xf32> -> vector<2x8x8xf32>
    "tpu.trace_stop"() : () -> ()
    %cst_60 = arith.constant dense<0xFF800000> : vector<2x8xf32>
    %144 = vector.multi_reduction <maximumf>, %143, %cst_60 [2] : vector<2x8x8xf32> to vector<2x8xf32>
    %145 = vector.shape_cast %144 : vector<2x8xf32> to vector<2x8x1xf32>
    %146 = vector.broadcast %145 : vector<2x8x1xf32> to vector<2x8x8xf32>
    %147 = arith.subf %143, %146 : vector<2x8x8xf32>
    %148 = math.exp %147 : vector<2x8x8xf32>
    %cst_61 = arith.constant dense<0.000000e+00> : vector<2x8xf32>
    %149 = vector.multi_reduction <add>, %148, %cst_61 [2] : vector<2x8x8xf32> to vector<2x8xf32>
    %150 = vector.shape_cast %149 : vector<2x8xf32> to vector<2x8x1xf32>
    %151 = tpu.reciprocal %150 {approx = true} : vector<2x8x1xf32> -> vector<2x8x1xf32>
    %152 = vector.broadcast %151 : vector<2x8x1xf32> to vector<2x8x8xf32>
    %153 = arith.mulf %148, %152 : vector<2x8x8xf32>
    "tpu.trace_start"() <{level = 10 : i32, message = "bqk,bkd->bqd"}> : () -> ()
    %cst_62 = arith.constant dense<0.000000e+00> : vector<2x8x16xf32>
    %154 = tpu.matmul %153, %142, %cst_62 {dimension_numbers = #tpu.dot_dimension_numbers<[2], [1], [1], [2], [0, 0, 0, 1, 1, 2], [0], [0]>} : vector<2x8x8xf32>, vector<2x8x16xf32>, vector<2x8x16xf32> -> vector<2x8x16xf32>
    "tpu.trace_stop"() : () -> ()
    %155 = vector.shape_cast %154 : vector<2x8x16xf32> to vector<16x16xf32>
    %c6 = arith.constant 6 : index
    %c0_63 = arith.constant 0 : index
    %c0_64 = arith.constant 0 : index
    %156 = vector.load %arg8[%c6, %c0_63, %c0_64] : memref<12x16x128xf32, #tpu.memory_space<vmem>>, vector<1x16x128xf32>
    %157 = vector.shape_cast %156 : vector<1x16x128xf32> to vector<16x128xf32>
    %cst_65 = arith.constant dense<0.000000e+00> : vector<16x128xf32>
    %158 = tpu.matmul %155, %157, %cst_65 {dimension_numbers = #tpu.dot_dimension_numbers<[1], [0], [0], [1], [0, 0, 1, 1], [], []>} : vector<16x16xf32>, vector<16x128xf32>, vector<16x128xf32> -> vector<16x128xf32>
    %159 = arith.addf %139, %158 : vector<16x128xf32>
    %160 = vector.extract_strided_slice %16 {offsets = [0, 0, 112], sizes = [2, 8, 16], strides = [1, 1, 1]} : vector<2x8x192xf32> to vector<2x8x16xf32>
    %161 = vector.extract_strided_slice %17 {offsets = [0, 0, 112], sizes = [2, 8, 16], strides = [1, 1, 1]} : vector<2x8x192xf32> to vector<2x8x16xf32>
    %162 = vector.extract_strided_slice %18 {offsets = [0, 0, 112], sizes = [2, 8, 16], strides = [1, 1, 1]} : vector<2x8x192xf32> to vector<2x8x16xf32>
    "tpu.trace_start"() <{level = 10 : i32, message = "bqd,bkd->bqk"}> : () -> ()
    %cst_66 = arith.constant dense<0.000000e+00> : vector<2x8x8xf32>
    %163 = tpu.matmul %160, %161, %cst_66 {dimension_numbers = #tpu.dot_dimension_numbers<[2], [2], [1], [1], [0, 0, 0, 1, 1, 1], [0], [0]>} : vector<2x8x16xf32>, vector<2x8x16xf32>, vector<2x8x8xf32> -> vector<2x8x8xf32>
    "tpu.trace_stop"() : () -> ()
    %cst_67 = arith.constant dense<0xFF800000> : vector<2x8xf32>
    %164 = vector.multi_reduction <maximumf>, %163, %cst_67 [2] : vector<2x8x8xf32> to vector<2x8xf32>
    %165 = vector.shape_cast %164 : vector<2x8xf32> to vector<2x8x1xf32>
    %166 = vector.broadcast %165 : vector<2x8x1xf32> to vector<2x8x8xf32>
    %167 = arith.subf %163, %166 : vector<2x8x8xf32>
    %168 = math.exp %167 : vector<2x8x8xf32>
    %cst_68 = arith.constant dense<0.000000e+00> : vector<2x8xf32>
    %169 = vector.multi_reduction <add>, %168, %cst_68 [2] : vector<2x8x8xf32> to vector<2x8xf32>
    %170 = vector.shape_cast %169 : vector<2x8xf32> to vector<2x8x1xf32>
    %171 = tpu.reciprocal %170 {approx = true} : vector<2x8x1xf32> -> vector<2x8x1xf32>
    %172 = vector.broadcast %171 : vector<2x8x1xf32> to vector<2x8x8xf32>
    %173 = arith.mulf %168, %172 : vector<2x8x8xf32>
    "tpu.trace_start"() <{level = 10 : i32, message = "bqk,bkd->bqd"}> : () -> ()
    %cst_69 = arith.constant dense<0.000000e+00> : vector<2x8x16xf32>
    %174 = tpu.matmul %173, %162, %cst_69 {dimension_numbers = #tpu.dot_dimension_numbers<[2], [1], [1], [2], [0, 0, 0, 1, 1, 2], [0], [0]>} : vector<2x8x8xf32>, vector<2x8x16xf32>, vector<2x8x16xf32> -> vector<2x8x16xf32>
    "tpu.trace_stop"() : () -> ()
    %175 = vector.shape_cast %174 : vector<2x8x16xf32> to vector<16x16xf32>
    %c7 = arith.constant 7 : index
    %c0_70 = arith.constant 0 : index
    %c0_71 = arith.constant 0 : index
    %176 = vector.load %arg8[%c7, %c0_70, %c0_71] : memref<12x16x128xf32, #tpu.memory_space<vmem>>, vector<1x16x128xf32>
    %177 = vector.shape_cast %176 : vector<1x16x128xf32> to vector<16x128xf32>
    %cst_72 = arith.constant dense<0.000000e+00> : vector<16x128xf32>
    %178 = tpu.matmul %175, %177, %cst_72 {dimension_numbers = #tpu.dot_dimension_numbers<[1], [0], [0], [1], [0, 0, 1, 1], [], []>} : vector<16x16xf32>, vector<16x128xf32>, vector<16x128xf32> -> vector<16x128xf32>
    %179 = arith.addf %159, %178 : vector<16x128xf32>
    %180 = vector.extract_strided_slice %16 {offsets = [0, 0, 128], sizes = [2, 8, 16], strides = [1, 1, 1]} : vector<2x8x192xf32> to vector<2x8x16xf32>
    %181 = vector.extract_strided_slice %17 {offsets = [0, 0, 128], sizes = [2, 8, 16], strides = [1, 1, 1]} : vector<2x8x192xf32> to vector<2x8x16xf32>
    %182 = vector.extract_strided_slice %18 {offsets = [0, 0, 128], sizes = [2, 8, 16], strides = [1, 1, 1]} : vector<2x8x192xf32> to vector<2x8x16xf32>
    "tpu.trace_start"() <{level = 10 : i32, message = "bqd,bkd->bqk"}> : () -> ()
    %cst_73 = arith.constant dense<0.000000e+00> : vector<2x8x8xf32>
    %183 = tpu.matmul %180, %181, %cst_73 {dimension_numbers = #tpu.dot_dimension_numbers<[2], [2], [1], [1], [0, 0, 0, 1, 1, 1], [0], [0]>} : vector<2x8x16xf32>, vector<2x8x16xf32>, vector<2x8x8xf32> -> vector<2x8x8xf32>
    "tpu.trace_stop"() : () -> ()
    %cst_74 = arith.constant dense<0xFF800000> : vector<2x8xf32>
    %184 = vector.multi_reduction <maximumf>, %183, %cst_74 [2] : vector<2x8x8xf32> to vector<2x8xf32>
    %185 = vector.shape_cast %184 : vector<2x8xf32> to vector<2x8x1xf32>
    %186 = vector.broadcast %185 : vector<2x8x1xf32> to vector<2x8x8xf32>
    %187 = arith.subf %183, %186 : vector<2x8x8xf32>
    %188 = math.exp %187 : vector<2x8x8xf32>
    %cst_75 = arith.constant dense<0.000000e+00> : vector<2x8xf32>
    %189 = vector.multi_reduction <add>, %188, %cst_75 [2] : vector<2x8x8xf32> to vector<2x8xf32>
    %190 = vector.shape_cast %189 : vector<2x8xf32> to vector<2x8x1xf32>
    %191 = tpu.reciprocal %190 {approx = true} : vector<2x8x1xf32> -> vector<2x8x1xf32>
    %192 = vector.broadcast %191 : vector<2x8x1xf32> to vector<2x8x8xf32>
    %193 = arith.mulf %188, %192 : vector<2x8x8xf32>
    "tpu.trace_start"() <{level = 10 : i32, message = "bqk,bkd->bqd"}> : () -> ()
    %cst_76 = arith.constant dense<0.000000e+00> : vector<2x8x16xf32>
    %194 = tpu.matmul %193, %182, %cst_76 {dimension_numbers = #tpu.dot_dimension_numbers<[2], [1], [1], [2], [0, 0, 0, 1, 1, 2], [0], [0]>} : vector<2x8x8xf32>, vector<2x8x16xf32>, vector<2x8x16xf32> -> vector<2x8x16xf32>
    "tpu.trace_stop"() : () -> ()
    %195 = vector.shape_cast %194 : vector<2x8x16xf32> to vector<16x16xf32>
    %c8 = arith.constant 8 : index
    %c0_77 = arith.constant 0 : index
    %c0_78 = arith.constant 0 : index
    %196 = vector.load %arg8[%c8, %c0_77, %c0_78] : memref<12x16x128xf32, #tpu.memory_space<vmem>>, vector<1x16x128xf32>
    %197 = vector.shape_cast %196 : vector<1x16x128xf32> to vector<16x128xf32>
    %cst_79 = arith.constant dense<0.000000e+00> : vector<16x128xf32>
    %198 = tpu.matmul %195, %197, %cst_79 {dimension_numbers = #tpu.dot_dimension_numbers<[1], [0], [0], [1], [0, 0, 1, 1], [], []>} : vector<16x16xf32>, vector<16x128xf32>, vector<16x128xf32> -> vector<16x128xf32>
    %199 = arith.addf %179, %198 : vector<16x128xf32>
    %200 = vector.extract_strided_slice %16 {offsets = [0, 0, 144], sizes = [2, 8, 16], strides = [1, 1, 1]} : vector<2x8x192xf32> to vector<2x8x16xf32>
    %201 = vector.extract_strided_slice %17 {offsets = [0, 0, 144], sizes = [2, 8, 16], strides = [1, 1, 1]} : vector<2x8x192xf32> to vector<2x8x16xf32>
    %202 = vector.extract_strided_slice %18 {offsets = [0, 0, 144], sizes = [2, 8, 16], strides = [1, 1, 1]} : vector<2x8x192xf32> to vector<2x8x16xf32>
    "tpu.trace_start"() <{level = 10 : i32, message = "bqd,bkd->bqk"}> : () -> ()
    %cst_80 = arith.constant dense<0.000000e+00> : vector<2x8x8xf32>
    %203 = tpu.matmul %200, %201, %cst_80 {dimension_numbers = #tpu.dot_dimension_numbers<[2], [2], [1], [1], [0, 0, 0, 1, 1, 1], [0], [0]>} : vector<2x8x16xf32>, vector<2x8x16xf32>, vector<2x8x8xf32> -> vector<2x8x8xf32>
    "tpu.trace_stop"() : () -> ()
    %cst_81 = arith.constant dense<0xFF800000> : vector<2x8xf32>
    %204 = vector.multi_reduction <maximumf>, %203, %cst_81 [2] : vector<2x8x8xf32> to vector<2x8xf32>
    %205 = vector.shape_cast %204 : vector<2x8xf32> to vector<2x8x1xf32>
    %206 = vector.broadcast %205 : vector<2x8x1xf32> to vector<2x8x8xf32>
    %207 = arith.subf %203, %206 : vector<2x8x8xf32>
    %208 = math.exp %207 : vector<2x8x8xf32>
    %cst_82 = arith.constant dense<0.000000e+00> : vector<2x8xf32>
    %209 = vector.multi_reduction <add>, %208, %cst_82 [2] : vector<2x8x8xf32> to vector<2x8xf32>
    %210 = vector.shape_cast %209 : vector<2x8xf32> to vector<2x8x1xf32>
    %211 = tpu.reciprocal %210 {approx = true} : vector<2x8x1xf32> -> vector<2x8x1xf32>
    %212 = vector.broadcast %211 : vector<2x8x1xf32> to vector<2x8x8xf32>
    %213 = arith.mulf %208, %212 : vector<2x8x8xf32>
    "tpu.trace_start"() <{level = 10 : i32, message = "bqk,bkd->bqd"}> : () -> ()
    %cst_83 = arith.constant dense<0.000000e+00> : vector<2x8x16xf32>
    %214 = tpu.matmul %213, %202, %cst_83 {dimension_numbers = #tpu.dot_dimension_numbers<[2], [1], [1], [2], [0, 0, 0, 1, 1, 2], [0], [0]>} : vector<2x8x8xf32>, vector<2x8x16xf32>, vector<2x8x16xf32> -> vector<2x8x16xf32>
    "tpu.trace_stop"() : () -> ()
    %215 = vector.shape_cast %214 : vector<2x8x16xf32> to vector<16x16xf32>
    %c9 = arith.constant 9 : index
    %c0_84 = arith.constant 0 : index
    %c0_85 = arith.constant 0 : index
    %216 = vector.load %arg8[%c9, %c0_84, %c0_85] : memref<12x16x128xf32, #tpu.memory_space<vmem>>, vector<1x16x128xf32>
    %217 = vector.shape_cast %216 : vector<1x16x128xf32> to vector<16x128xf32>
    %cst_86 = arith.constant dense<0.000000e+00> : vector<16x128xf32>
    %218 = tpu.matmul %215, %217, %cst_86 {dimension_numbers = #tpu.dot_dimension_numbers<[1], [0], [0], [1], [0, 0, 1, 1], [], []>} : vector<16x16xf32>, vector<16x128xf32>, vector<16x128xf32> -> vector<16x128xf32>
    %219 = arith.addf %199, %218 : vector<16x128xf32>
    %220 = vector.extract_strided_slice %16 {offsets = [0, 0, 160], sizes = [2, 8, 16], strides = [1, 1, 1]} : vector<2x8x192xf32> to vector<2x8x16xf32>
    %221 = vector.extract_strided_slice %17 {offsets = [0, 0, 160], sizes = [2, 8, 16], strides = [1, 1, 1]} : vector<2x8x192xf32> to vector<2x8x16xf32>
    %222 = vector.extract_strided_slice %18 {offsets = [0, 0, 160], sizes = [2, 8, 16], strides = [1, 1, 1]} : vector<2x8x192xf32> to vector<2x8x16xf32>
    "tpu.trace_start"() <{level = 10 : i32, message = "bqd,bkd->bqk"}> : () -> ()
    %cst_87 = arith.constant dense<0.000000e+00> : vector<2x8x8xf32>
    %223 = tpu.matmul %220, %221, %cst_87 {dimension_numbers = #tpu.dot_dimension_numbers<[2], [2], [1], [1], [0, 0, 0, 1, 1, 1], [0], [0]>} : vector<2x8x16xf32>, vector<2x8x16xf32>, vector<2x8x8xf32> -> vector<2x8x8xf32>
    "tpu.trace_stop"() : () -> ()
    %cst_88 = arith.constant dense<0xFF800000> : vector<2x8xf32>
    %224 = vector.multi_reduction <maximumf>, %223, %cst_88 [2] : vector<2x8x8xf32> to vector<2x8xf32>
    %225 = vector.shape_cast %224 : vector<2x8xf32> to vector<2x8x1xf32>
    %226 = vector.broadcast %225 : vector<2x8x1xf32> to vector<2x8x8xf32>
    %227 = arith.subf %223, %226 : vector<2x8x8xf32>
    %228 = math.exp %227 : vector<2x8x8xf32>
    %cst_89 = arith.constant dense<0.000000e+00> : vector<2x8xf32>
    %229 = vector.multi_reduction <add>, %228, %cst_89 [2] : vector<2x8x8xf32> to vector<2x8xf32>
    %230 = vector.shape_cast %229 : vector<2x8xf32> to vector<2x8x1xf32>
    %231 = tpu.reciprocal %230 {approx = true} : vector<2x8x1xf32> -> vector<2x8x1xf32>
    %232 = vector.broadcast %231 : vector<2x8x1xf32> to vector<2x8x8xf32>
    %233 = arith.mulf %228, %232 : vector<2x8x8xf32>
    "tpu.trace_start"() <{level = 10 : i32, message = "bqk,bkd->bqd"}> : () -> ()
    %cst_90 = arith.constant dense<0.000000e+00> : vector<2x8x16xf32>
    %234 = tpu.matmul %233, %222, %cst_90 {dimension_numbers = #tpu.dot_dimension_numbers<[2], [1], [1], [2], [0, 0, 0, 1, 1, 2], [0], [0]>} : vector<2x8x8xf32>, vector<2x8x16xf32>, vector<2x8x16xf32> -> vector<2x8x16xf32>
    "tpu.trace_stop"() : () -> ()
    %235 = vector.shape_cast %234 : vector<2x8x16xf32> to vector<16x16xf32>
    %c10 = arith.constant 10 : index
    %c0_91 = arith.constant 0 : index
    %c0_92 = arith.constant 0 : index
    %236 = vector.load %arg8[%c10, %c0_91, %c0_92] : memref<12x16x128xf32, #tpu.memory_space<vmem>>, vector<1x16x128xf32>
    %237 = vector.shape_cast %236 : vector<1x16x128xf32> to vector<16x128xf32>
    %cst_93 = arith.constant dense<0.000000e+00> : vector<16x128xf32>
    %238 = tpu.matmul %235, %237, %cst_93 {dimension_numbers = #tpu.dot_dimension_numbers<[1], [0], [0], [1], [0, 0, 1, 1], [], []>} : vector<16x16xf32>, vector<16x128xf32>, vector<16x128xf32> -> vector<16x128xf32>
    %239 = arith.addf %219, %238 : vector<16x128xf32>
    %240 = vector.extract_strided_slice %16 {offsets = [0, 0, 176], sizes = [2, 8, 16], strides = [1, 1, 1]} : vector<2x8x192xf32> to vector<2x8x16xf32>
    %241 = vector.extract_strided_slice %17 {offsets = [0, 0, 176], sizes = [2, 8, 16], strides = [1, 1, 1]} : vector<2x8x192xf32> to vector<2x8x16xf32>
    %242 = vector.extract_strided_slice %18 {offsets = [0, 0, 176], sizes = [2, 8, 16], strides = [1, 1, 1]} : vector<2x8x192xf32> to vector<2x8x16xf32>
    "tpu.trace_start"() <{level = 10 : i32, message = "bqd,bkd->bqk"}> : () -> ()
    %cst_94 = arith.constant dense<0.000000e+00> : vector<2x8x8xf32>
    %243 = tpu.matmul %240, %241, %cst_94 {dimension_numbers = #tpu.dot_dimension_numbers<[2], [2], [1], [1], [0, 0, 0, 1, 1, 1], [0], [0]>} : vector<2x8x16xf32>, vector<2x8x16xf32>, vector<2x8x8xf32> -> vector<2x8x8xf32>
    "tpu.trace_stop"() : () -> ()
    %cst_95 = arith.constant dense<0xFF800000> : vector<2x8xf32>
    %244 = vector.multi_reduction <maximumf>, %243, %cst_95 [2] : vector<2x8x8xf32> to vector<2x8xf32>
    %245 = vector.shape_cast %244 : vector<2x8xf32> to vector<2x8x1xf32>
    %246 = vector.broadcast %245 : vector<2x8x1xf32> to vector<2x8x8xf32>
    %247 = arith.subf %243, %246 : vector<2x8x8xf32>
    %248 = math.exp %247 : vector<2x8x8xf32>
    %cst_96 = arith.constant dense<0.000000e+00> : vector<2x8xf32>
    %249 = vector.multi_reduction <add>, %248, %cst_96 [2] : vector<2x8x8xf32> to vector<2x8xf32>
    %250 = vector.shape_cast %249 : vector<2x8xf32> to vector<2x8x1xf32>
    %251 = tpu.reciprocal %250 {approx = true} : vector<2x8x1xf32> -> vector<2x8x1xf32>
    %252 = vector.broadcast %251 : vector<2x8x1xf32> to vector<2x8x8xf32>
    %253 = arith.mulf %248, %252 : vector<2x8x8xf32>
    "tpu.trace_start"() <{level = 10 : i32, message = "bqk,bkd->bqd"}> : () -> ()
    %cst_97 = arith.constant dense<0.000000e+00> : vector<2x8x16xf32>
    %254 = tpu.matmul %253, %242, %cst_97 {dimension_numbers = #tpu.dot_dimension_numbers<[2], [1], [1], [2], [0, 0, 0, 1, 1, 2], [0], [0]>} : vector<2x8x8xf32>, vector<2x8x16xf32>, vector<2x8x16xf32> -> vector<2x8x16xf32>
    "tpu.trace_stop"() : () -> ()
    %255 = vector.shape_cast %254 : vector<2x8x16xf32> to vector<16x16xf32>
    %c11 = arith.constant 11 : index
    %c0_98 = arith.constant 0 : index
    %c0_99 = arith.constant 0 : index
    %256 = vector.load %arg8[%c11, %c0_98, %c0_99] : memref<12x16x128xf32, #tpu.memory_space<vmem>>, vector<1x16x128xf32>
    %257 = vector.shape_cast %256 : vector<1x16x128xf32> to vector<16x128xf32>
    %cst_100 = arith.constant dense<0.000000e+00> : vector<16x128xf32>
    %258 = tpu.matmul %255, %257, %cst_100 {dimension_numbers = #tpu.dot_dimension_numbers<[1], [0], [0], [1], [0, 0, 1, 1], [], []>} : vector<16x16xf32>, vector<16x128xf32>, vector<16x128xf32> -> vector<16x128xf32>
    %259 = arith.addf %239, %258 : vector<16x128xf32>
    %c0_101 = arith.constant 0 : index
    %c0_102 = arith.constant 0 : index
    %260 = vector.load %arg9[%c0_101, %c0_102] : memref<1x128xf32, #tpu.memory_space<vmem>>, vector<1x128xf32>
    %261 = vector.broadcast %260 : vector<1x128xf32> to vector<16x128xf32>
    %262 = arith.addf %259, %261 : vector<16x128xf32>
    %cst_103 = arith.constant 0.000000e+00 : f32
    %263 = vector.broadcast %cst_103 : f32 to vector<16x128xf32>
    %264 = arith.maximumf %262, %263 : vector<16x128xf32>
    %c0_104 = arith.constant 0 : index
    %c0_105 = arith.constant 0 : index
    %265 = vector.load %arg10[%c0_104, %c0_105] : memref<16x128xf32, #tpu.memory_space<vmem>>, vector<16x128xf32>
    tpu.vector_store %arg10[%c0_104, %c0_105], %264 {strides = array<i32>} : memref<16x128xf32, #tpu.memory_space<vmem>>, vector<16x128xf32>,
    return
  }
  func.func @transform_0(%arg0: i32) -> (i32, i32) {
    %c0_i32 = arith.constant 0 : i32
    %c0_i32_0 = arith.constant 0 : i32
    return %arg0, %c0_i32 : i32, i32
  }
  func.func @transform_1(%arg0: i32) -> (i32, i32) {
    %c0_i32 = arith.constant 0 : i32
    %c0_i32_0 = arith.constant 0 : i32
    %c0_i32_1 = arith.constant 0 : i32
    return %c0_i32, %c0_i32_0 : i32, i32
  }
  func.func @transform_2(%arg0: i32) -> (i32, i32) {
    %c0_i32 = arith.constant 0 : i32
    %c0_i32_0 = arith.constant 0 : i32
    %c0_i32_1 = arith.constant 0 : i32
    return %c0_i32, %c0_i32_0 : i32, i32
  }
  func.func @transform_3(%arg0: i32) -> (i32, i32) {
    %c0_i32 = arith.constant 0 : i32
    %c0_i32_0 = arith.constant 0 : i32
    %c0_i32_1 = arith.constant 0 : i32
    return %c0_i32, %c0_i32_0 : i32, i32
  }
  func.func @transform_4(%arg0: i32) -> (i32, i32) {
    %c0_i32 = arith.constant 0 : i32
    %c0_i32_0 = arith.constant 0 : i32
    %c0_i32_1 = arith.constant 0 : i32
    return %c0_i32, %c0_i32_0 : i32, i32
  }
  func.func @transform_5(%arg0: i32) -> (i32, i32) {
    %c0_i32 = arith.constant 0 : i32
    %c0_i32_0 = arith.constant 0 : i32
    %c0_i32_1 = arith.constant 0 : i32
    return %c0_i32, %c0_i32_0 : i32, i32
  }
  func.func @transform_6(%arg0: i32) -> (i32, i32) {
    %c0_i32 = arith.constant 0 : i32
    %c0_i32_0 = arith.constant 0 : i32
    %c0_i32_1 = arith.constant 0 : i32
    return %c0_i32, %c0_i32_0 : i32, i32
  }
  func.func @transform_7(%arg0: i32) -> (i32, i32, i32) {
    %c0_i32 = arith.constant 0 : i32
    %c0_i32_0 = arith.constant 0 : i32
    %c0_i32_1 = arith.constant 0 : i32
    %c0_i32_2 = arith.constant 0 : i32
    return %c0_i32, %c0_i32_0, %c0_i32_1 : i32, i32, i32
  }
  func.func @transform_8(%arg0: i32) -> (i32, i32) {
    %c0_i32 = arith.constant 0 : i32
    %c0_i32_0 = arith.constant 0 : i32
    %c0_i32_1 = arith.constant 0 : i32
    return %c0_i32, %c0_i32_0 : i32, i32
  }
  func.func @transform_9(%arg0: i32) -> (i32, i32) {
    %c0_i32 = arith.constant 0 : i32
    %c0_i32_0 = arith.constant 0 : i32
    return %arg0, %c0_i32 : i32, i32
  }
}

</mosaic_0001>

<llo_original>
// kernel: tpu_custom_call.1
$region0: #{tpu_custom_call.1}
  #allocation0 [shape = 'u32[]', space=smem, size = 0x4, offset = 0x4, fixed_abs, tag = 'smem constant byte address 0x4 - core index']
  #allocation1 [shape = 'u32[144,128]{1,0:T(1,128)}', space=vmem, size = 0x12000, scoped, tag = 'internal scratch']
  %s0 = inlined_call_operand.vmem [shape: f32[16,128], index: 0, kind: input, shape index: {}]
  %s1 = inlined_call_operand.vmem [shape: f32[128,192], index: 1, kind: input, shape index: {}]
  %s2 = inlined_call_operand.vmem [shape: f32[1,192], index: 2, kind: input, shape index: {}]
  %s3 = inlined_call_operand.vmem [shape: f32[128,192], index: 3, kind: input, shape index: {}]
  %s4 = inlined_call_operand.vmem [shape: f32[1,192], index: 4, kind: input, shape index: {}]
  %s5 = inlined_call_operand.vmem [shape: f32[128,192], index: 5, kind: input, shape index: {}]
  %s6 = inlined_call_operand.vmem [shape: f32[1,192], index: 6, kind: input, shape index: {}]
  %s7 = inlined_call_operand.vmem [shape: f32[12,16,128], index: 7, kind: input, shape index: {}]
  %s8 = inlined_call_operand.vmem [shape: f32[1,128], index: 8, kind: input, shape index: {}]
  %s9 = inlined_call_operand.hbm [shape: f32[16,128], index: 9, kind: output, shape index: {}]
  %s10 = sld [smem:[#allocation0]]
  $region46: #{tpu_custom_call.1} parent=0
    _
  %s12 = ssub.s32 1, %s10
  %s13 = scalar_select 0, %s12, %s10
  $region1: #{tpu_custom_call.1} parent=0
    #allocation2 [shape = 'u8[8192]{0}', space=vmem, size = 0x2000, scoped, tag = 'output window, operand 0, single buffered']
    #allocation3 [shape = 's32[1]{0}', space=sflag, size = 0x4, scoped, tag = 'scoped memory for tpu_custom_call.1']
    %14 = vsyncpa [#allocation3], 0
    // Predicated region
    $region2: #{tpu_custom_call.1} parent=1 // pred_check
      _
    $region3: #{tpu_custom_call.1} parent=1 // pred_check_branch
      %16 = sbr.rel (0) target = $region5
    $region4: #{tpu_custom_call.1} parent=1 // pred_region
      _
    $region5: #{tpu_custom_call.1} parent=1 // pred_fallthru
      _
    // Predicated region
    $region6: #{tpu_custom_call.1} parent=1 // pred_check
      _
    $region7: #{tpu_custom_call.1} parent=1 // pred_check_branch
      %18 = sbr.rel (0) target = $region9
    $region8: #{tpu_custom_call.1} parent=1 // pred_region
      _
    $region9: #{tpu_custom_call.1} parent=1 // pred_fallthru
      _
    // Predicated region
    $region10: #{tpu_custom_call.1} parent=1 // pred_check
      _
    $region11: #{tpu_custom_call.1} parent=1 // pred_check_branch
      %20 = sbr.rel (0) target = $region13
    $region12: #{tpu_custom_call.1} parent=1 // pred_region
      _
    $region13: #{tpu_custom_call.1} parent=1 // pred_fallthru
      _
    // Predicated region
    $region14: #{tpu_custom_call.1} parent=1 // pred_check
      _
    $region15: #{tpu_custom_call.1} parent=1 // pred_check_branch
      %22 = sbr.rel (0) target = $region17
    $region16: #{tpu_custom_call.1} parent=1 // pred_region
      _
    $region17: #{tpu_custom_call.1} parent=1 // pred_fallthru
      _
    // Predicated region
    $region18: #{tpu_custom_call.1} parent=1 // pred_check
      _
    $region19: #{tpu_custom_call.1} parent=1 // pred_check_branch
      %24 = sbr.rel (0) target = $region21
    $region20: #{tpu_custom_call.1} parent=1 // pred_region
      _
    $region21: #{tpu_custom_call.1} parent=1 // pred_fallthru
      _
    // Predicated region
    $region22: #{tpu_custom_call.1} parent=1 // pred_check
      _
    $region23: #{tpu_custom_call.1} parent=1 // pred_check_branch
      %26 = sbr.rel (0) target = $region25
    $region24: #{tpu_custom_call.1} parent=1 // pred_region
      _
    $region25: #{tpu_custom_call.1} parent=1 // pred_fallthru
      _
    // Predicated region
    $region26: #{tpu_custom_call.1} parent=1 // pred_check
      _
    $region27: #{tpu_custom_call.1} parent=1 // pred_check_branch
      %28 = sbr.rel (0) target = $region29
    $region28: #{tpu_custom_call.1} parent=1 // pred_region
      _
    $region29: #{tpu_custom_call.1} parent=1 // pred_fallthru
      _
    // Predicated region
    $region30: #{tpu_custom_call.1} parent=1 // pred_check
      _
    $region31: #{tpu_custom_call.1} parent=1 // pred_check_branch
      %30 = sbr.rel (0) target = $region33
    $region32: #{tpu_custom_call.1} parent=1 // pred_region
      _
    $region33: #{tpu_custom_call.1} parent=1 // pred_fallthru
      _
    // Predicated region
    $region34: #{tpu_custom_call.1} parent=1 // pred_check
      _
    $region35: #{tpu_custom_call.1} parent=1 // pred_check_branch
      %32 = sbr.rel (0) target = $region37
    $region36: #{tpu_custom_call.1} parent=1 // pred_region
      _
    $region37: #{tpu_custom_call.1} parent=1 // pred_fallthru
      _
    %v33 = vld [vmem:[%s0] sm:$0xff]
    %v34 = vld [vmem:[%s0 + $0x8] sm:$0xff]
    %v35 = vld [vmem:[%s1] sm:$0xff]
    %v36 = vld [vmem:[%s1 + $0x8] sm:$0xff]
    %v37 = vld [vmem:[%s1 + $0x10] sm:$0xff]
    %v38 = vld [vmem:[%s1 + $0x18] sm:$0xff]
    %v39 = vld [vmem:[%s1 + $0x20] sm:$0xff]
    %v40 = vld [vmem:[%s1 + $0x28] sm:$0xff]
    %v41 = vld [vmem:[%s1 + $0x30] sm:$0xff]
    %v42 = vld [vmem:[%s1 + $0x38] sm:$0xff]
    %v43 = vld [vmem:[%s1 + $0x40] sm:$0xff]
    %v44 = vld [vmem:[%s1 + $0x48] sm:$0xff]
    %v45 = vld [vmem:[%s1 + $0x50] sm:$0xff]
    %v46 = vld [vmem:[%s1 + $0x58] sm:$0xff]
    %v47 = vld [vmem:[%s1 + $0x60] sm:$0xff]
    %v48 = vld [vmem:[%s1 + $0x68] sm:$0xff]
    %v49 = vld [vmem:[%s1 + $0x70] sm:$0xff]
    %v50 = vld [vmem:[%s1 + $0x78] sm:$0xff]
    %v51 = vld [vmem:[%s1 + $0x80] sm:$0xff]
    %v52 = vld [vmem:[%s1 + $0x88] sm:$0xff]
    %v53 = vld [vmem:[%s1 + $0x90] sm:$0xff]
    %v54 = vld [vmem:[%s1 + $0x98] sm:$0xff]
    %v55 = vld [vmem:[%s1 + $0xa0] sm:$0xff]
    %v56 = vld [vmem:[%s1 + $0xa8] sm:$0xff]
    %v57 = vld [vmem:[%s1 + $0xb0] sm:$0xff]
    %v58 = vld [vmem:[%s1 + $0xb8] sm:$0xff]
    %v59 = vld [vmem:[%s1 + $0xc0] sm:$0xff]
    %v60 = vld [vmem:[%s1 + $0xc8] sm:$0xff]
    %v61 = vld [vmem:[%s1 + $0xd0] sm:$0xff]
    %v62 = vld [vmem:[%s1 + $0xd8] sm:$0xff]
    %v63 = vld [vmem:[%s1 + $0xe0] sm:$0xff]
    %v64 = vld [vmem:[%s1 + $0xe8] sm:$0xff]
    %v65 = vld [vmem:[%s1 + $0xf0] sm:$0xff]
    %v66 = vld [vmem:[%s1 + $0xf8] sm:$0xff]
    %v67 = vld [vmem:[%s2] sm:$0x3]
    %v69 = vlaneseq
    %v70 = vshrl.u32 %v69, 7
    %v71 = vsub.s32 0, %v70
    %v72 = vrot.slane %v67, %v71
    %v73 = vlaneseq
    %v74 = vshrl.u32 %v73, 7
    %v75 = vsub.s32 1, %v74
    %v76 = vrot.slane %v67, %v75
    %79 = vmatprep.subr.mxu0 %v36
    %80 = vmatpush1.msra.mxu0 %v35
    %81 = vmatprep.subr.mxu0 %v38
    %82 = vmatpush1.msra.mxu0 %v37
    %83 = vmatprep.subr.mxu0 %v40
    %84 = vmatpush1.msra.mxu0 %v39
    %85 = vmatprep.subr.mxu0 %v42
    %86 = vmatpush1.msra.mxu0 %v41
    %87 = vmatprep.subr.mxu0 %v44
    %88 = vmatpush1.msra.mxu0 %v43
    %89 = vmatprep.subr.mxu0 %v46
    %90 = vmatpush1.msra.mxu0 %v45
    %91 = vmatprep.subr.mxu0 %v48
    %92 = vmatpush1.msra.mxu0 %v47
    %93 = vmatprep.subr.mxu0 %v50
    %94 = vmatpush1.msra.mxu0 %v49
    %95 = vmatprep.subr.mxu0 %v52
    %96 = vmatpush1.msra.mxu0 %v51
    %97 = vmatprep.subr.mxu0 %v54
    %98 = vmatpush1.msra.mxu0 %v53
    %99 = vmatprep.subr.mxu0 %v56
    %100 = vmatpush1.msra.mxu0 %v55
    %101 = vmatprep.subr.mxu0 %v58
    %102 = vmatpush1.msra.mxu0 %v57
    %103 = vmatprep.subr.mxu0 %v60
    %104 = vmatpush1.msra.mxu0 %v59
    %105 = vmatprep.subr.mxu0 %v62
    %106 = vmatpush1.msra.mxu0 %v61
    %107 = vmatprep.subr.mxu0 %v64
    %108 = vmatpush1.msra.mxu0 %v63
    %109 = vmatprep.subr.mxu0 %v66
    %110 = vmatpush1.msra.mxu0 %v65
    %111 = vmatprep.subr.mxu0 0.0
    %112 = vmatpush1.msra.mxu0 0.0
    %113 = vmatprep.subr.mxu0 0.0
    %114 = vmatpush1.msra.mxu0 0.0
    %115 = vmatprep.subr.mxu0 0.0
    %116 = vmatpush1.msra.mxu0 0.0
    %117 = vmatprep.subr.mxu0 0.0
    %118 = vmatpush1.msra.mxu0 0.0
    %119 = vmatprep.subr.mxu0 0.0
    %120 = vmatpush1.msra.mxu0 0.0
    %121 = vmatprep.subr.mxu0 0.0
    %122 = vmatpush1.msra.mxu0 0.0
    %123 = vmatprep.subr.mxu0 0.0
    %124 = vmatpush1.msra.mxu0 0.0
    %125 = vmatprep.subr.mxu0 0.0
    %126 = vmatpush1.msra.mxu0 0.0
    %127 = vmatprep.subr.mxu0 0.0
    %128 = vmatpush1.msra.mxu0 0.0
    %129 = vmatprep.subr.mxu0 0.0
    %130 = vmatpush1.msra.mxu0 0.0
    %131 = vmatprep.subr.mxu0 0.0
    %132 = vmatpush1.msra.mxu0 0.0
    %133 = vmatprep.subr.mxu0 0.0
    %134 = vmatpush1.msra.mxu0 0.0
    %135 = vmatprep.subr.mxu0 0.0
    %136 = vmatpush1.msra.mxu0 0.0
    %137 = vmatprep.subr.mxu0 0.0
    %138 = vmatpush1.msra.mxu0 0.0
    %139 = vmatprep.subr.mxu0 0.0
    %140 = vmatpush1.msra.mxu0 0.0
    %141 = vmatprep.subr.mxu0 0.0
    %142 = vmatpush1.msra.mxu0 0.0
    %143 = vmatprep.mubr.f32.mxu0 0.0
    %144 = vmatmul.mubr.f32.gmra.mrb[0].mxu0 %v33
    %v145 = vpop.f32.mrb[0].mxu0
    %v146 = vadd.f32 %v72, %v145
    %v147 = vpop.f32.mrb[0].mxu0
    %v148 = vadd.f32 %v76, %v147
    %149 = vmatprep.mubr.f32.mxu0 0.0
    %150 = vmatmul.mubr.f32.gmra.mrb[0].mxu0 %v34
    %v151 = vpop.f32.mrb[0].mxu0
    %v152 = vadd.f32 %v72, %v151
    %v153 = vpop.f32.mrb[0].mxu0
    %v154 = vadd.f32 %v76, %v153
    %155 = vdwg.mxu0
    %v156 = vld [vmem:[%s3] sm:$0xff]
    %v157 = vld [vmem:[%s3 + $0x8] sm:$0xff]
    %v158 = vld [vmem:[%s3 + $0x10] sm:$0xff]
    %v159 = vld [vmem:[%s3 + $0x18] sm:$0xff]
    %v160 = vld [vmem:[%s3 + $0x20] sm:$0xff]
    %v161 = vld [vmem:[%s3 + $0x28] sm:$0xff]
    %v162 = vld [vmem:[%s3 + $0x30] sm:$0xff]
    %v163 = vld [vmem:[%s3 + $0x38] sm:$0xff]
    %v164 = vld [vmem:[%s3 + $0x40] sm:$0xff]
    %v165 = vld [vmem:[%s3 + $0x48] sm:$0xff]
    %v166 = vld [vmem:[%s3 + $0x50] sm:$0xff]
    %v167 = vld [vmem:[%s3 + $0x58] sm:$0xff]
    %v168 = vld [vmem:[%s3 + $0x60] sm:$0xff]
    %v169 = vld [vmem:[%s3 + $0x68] sm:$0xff]
    %v170 = vld [vmem:[%s3 + $0x70] sm:$0xff]
    %v171 = vld [vmem:[%s3 + $0x78] sm:$0xff]
    %v172 = vld [vmem:[%s3 + $0x80] sm:$0xff]
    %v173 = vld [vmem:[%s3 + $0x88] sm:$0xff]
    %v174 = vld [vmem:[%s3 + $0x90] sm:$0xff]
    %v175 = vld [vmem:[%s3 + $0x98] sm:$0xff]
    %v176 = vld [vmem:[%s3 + $0xa0] sm:$0xff]
    %v177 = vld [vmem:[%s3 + $0xa8] sm:$0xff]
    %v178 = vld [vmem:[%s3 + $0xb0] sm:$0xff]
    %v179 = vld [vmem:[%s3 + $0xb8] sm:$0xff]
    %v180 = vld [vmem:[%s3 + $0xc0] sm:$0xff]
    %v181 = vld [vmem:[%s3 + $0xc8] sm:$0xff]
    %v182 = vld [vmem:[%s3 + $0xd0] sm:$0xff]
    %v183 = vld [vmem:[%s3 + $0xd8] sm:$0xff]
    %v184 = vld [vmem:[%s3 + $0xe0] sm:$0xff]
    %v185 = vld [vmem:[%s3 + $0xe8] sm:$0xff]
    %v186 = vld [vmem:[%s3 + $0xf0] sm:$0xff]
    %v187 = vld [vmem:[%s3 + $0xf8] sm:$0xff]
    %v188 = vld [vmem:[%s4] sm:$0x3]
    %v190 = vlaneseq
    %v191 = vshrl.u32 %v190, 7
    %v192 = vsub.s32 0, %v191
    %v193 = vrot.slane %v188, %v192
    %v194 = vlaneseq
    %v195 = vshrl.u32 %v194, 7
    %v196 = vsub.s32 1, %v195
    %v197 = vrot.slane %v188, %v196
    %200 = vmatprep.subr.mxu0 %v157
    %201 = vmatpush1.msra.mxu0 %v156
    %202 = vmatprep.subr.mxu0 %v159
    %203 = vmatpush1.msra.mxu0 %v158
    %204 = vmatprep.subr.mxu0 %v161
    %205 = vmatpush1.msra.mxu0 %v160
    %206 = vmatprep.subr.mxu0 %v163
    %207 = vmatpush1.msra.mxu0 %v162
    %208 = vmatprep.subr.mxu0 %v165
    %209 = vmatpush1.msra.mxu0 %v164
    %210 = vmatprep.subr.mxu0 %v167
    %211 = vmatpush1.msra.mxu0 %v166
    %212 = vmatprep.subr.mxu0 %v169
    %213 = vmatpush1.msra.mxu0 %v168
    %214 = vmatprep.subr.mxu0 %v171
    %215 = vmatpush1.msra.mxu0 %v170
    %216 = vmatprep.subr.mxu0 %v173
    %217 = vmatpush1.msra.mxu0 %v172
    %218 = vmatprep.subr.mxu0 %v175
    %219 = vmatpush1.msra.mxu0 %v174
    %220 = vmatprep.subr.mxu0 %v177
    %221 = vmatpush1.msra.mxu0 %v176
    %222 = vmatprep.subr.mxu0 %v179
    %223 = vmatpush1.msra.mxu0 %v178
    %224 = vmatprep.subr.mxu0 %v181
    %225 = vmatpush1.msra.mxu0 %v180
    %226 = vmatprep.subr.mxu0 %v183
    %227 = vmatpush1.msra.mxu0 %v182
    %228 = vmatprep.subr.mxu0 %v185
    %229 = vmatpush1.msra.mxu0 %v184
    %230 = vmatprep.subr.mxu0 %v187
    %231 = vmatpush1.msra.mxu0 %v186
    %232 = vmatprep.subr.mxu0 0.0
    %233 = vmatpush1.msra.mxu0 0.0
    %234 = vmatprep.subr.mxu0 0.0
    %235 = vmatpush1.msra.mxu0 0.0
    %236 = vmatprep.subr.mxu0 0.0
    %237 = vmatpush1.msra.mxu0 0.0
    %238 = vmatprep.subr.mxu0 0.0
    %239 = vmatpush1.msra.mxu0 0.0
    %240 = vmatprep.subr.mxu0 0.0
    %241 = vmatpush1.msra.mxu0 0.0
    %242 = vmatprep.subr.mxu0 0.0
    %243 = vmatpush1.msra.mxu0 0.0
    %244 = vmatprep.subr.mxu0 0.0
    %245 = vmatpush1.msra.mxu0 0.0
    %246 = vmatprep.subr.mxu0 0.0
    %247 = vmatpush1.msra.mxu0 0.0
    %248 = vmatprep.subr.mxu0 0.0
    %249 = vmatpush1.msra.mxu0 0.0
    %250 = vmatprep.subr.mxu0 0.0
    %251 = vmatpush1.msra.mxu0 0.0
    %252 = vmatprep.subr.mxu0 0.0
    %253 = vmatpush1.msra.mxu0 0.0
    %254 = vmatprep.subr.mxu0 0.0
    %255 = vmatpush1.msra.mxu0 0.0
    %256 = vmatprep.subr.mxu0 0.0
    %257 = vmatpush1.msra.mxu0 0.0
    %258 = vmatprep.subr.mxu0 0.0
    %259 = vmatpush1.msra.mxu0 0.0
    %260 = vmatprep.subr.mxu0 0.0
    %261 = vmatpush1.msra.mxu0 0.0
    %262 = vmatprep.subr.mxu0 0.0
    %263 = vmatpush1.msra.mxu0 0.0
    %264 = vmatprep.mubr.f32.mxu0 0.0
    %265 = vmatmul.mubr.f32.gmra.mrb[0].mxu0 %v33
    %v266 = vpop.f32.mrb[0].mxu0
    %v267 = vadd.f32 %v193, %v266
    %v268 = vpop.f32.mrb[0].mxu0
    %v269 = vadd.f32 %v197, %v268
    %270 = vmatprep.mubr.f32.mxu0 0.0
    %271 = vmatmul.mubr.f32.gmra.mrb[0].mxu0 %v34
    %v272 = vpop.f32.mrb[0].mxu0
    %v273 = vadd.f32 %v193, %v272
    %v274 = vpop.f32.mrb[0].mxu0
    %v275 = vadd.f32 %v197, %v274
    %276 = vdwg.mxu0
    %v277 = vld [vmem:[%s5] sm:$0xff]
    %v278 = vld [vmem:[%s5 + $0x8] sm:$0xff]
    %v279 = vld [vmem:[%s5 + $0x10] sm:$0xff]
    %v280 = vld [vmem:[%s5 + $0x18] sm:$0xff]
    %v281 = vld [vmem:[%s5 + $0x20] sm:$0xff]
    %v282 = vld [vmem:[%s5 + $0x28] sm:$0xff]
    %v283 = vld [vmem:[%s5 + $0x30] sm:$0xff]
    %v284 = vld [vmem:[%s5 + $0x38] sm:$0xff]
    %v285 = vld [vmem:[%s5 + $0x40] sm:$0xff]
    %v286 = vld [vmem:[%s5 + $0x48] sm:$0xff]
    %v287 = vld [vmem:[%s5 + $0x50] sm:$0xff]
    %v288 = vld [vmem:[%s5 + $0x58] sm:$0xff]
    %v289 = vld [vmem:[%s5 + $0x60] sm:$0xff]
    %v290 = vld [vmem:[%s5 + $0x68] sm:$0xff]
    %v291 = vld [vmem:[%s5 + $0x70] sm:$0xff]
    %v292 = vld [vmem:[%s5 + $0x78] sm:$0xff]
    %v293 = vld [vmem:[%s5 + $0x80] sm:$0xff]
    %v294 = vld [vmem:[%s5 + $0x88] sm:$0xff]
    %v295 = vld [vmem:[%s5 + $0x90] sm:$0xff]
    %v296 = vld [vmem:[%s5 + $0x98] sm:$0xff]
    %v297 = vld [vmem:[%s5 + $0xa0] sm:$0xff]
    %v298 = vld [vmem:[%s5 + $0xa8] sm:$0xff]
    %v299 = vld [vmem:[%s5 + $0xb0] sm:$0xff]
    %v300 = vld [vmem:[%s5 + $0xb8] sm:$0xff]
    %v301 = vld [vmem:[%s5 + $0xc0] sm:$0xff]
    %v302 = vld [vmem:[%s5 + $0xc8] sm:$0xff]
    %v303 = vld [vmem:[%s5 + $0xd0] sm:$0xff]
    %v304 = vld [vmem:[%s5 + $0xd8] sm:$0xff]
    %v305 = vld [vmem:[%s5 + $0xe0] sm:$0xff]
    %v306 = vld [vmem:[%s5 + $0xe8] sm:$0xff]
    %v307 = vld [vmem:[%s5 + $0xf0] sm:$0xff]
    %v308 = vld [vmem:[%s5 + $0xf8] sm:$0xff]
    %v309 = vld [vmem:[%s6] sm:$0x3]
    %v311 = vlaneseq
    %v312 = vshrl.u32 %v311, 7
    %v313 = vsub.s32 0, %v312
    %v314 = vrot.slane %v309, %v313
    %v315 = vlaneseq
    %v316 = vshrl.u32 %v315, 7
    %v317 = vsub.s32 1, %v316
    %v318 = vrot.slane %v309, %v317
    %321 = vmatprep.subr.mxu0 %v278
    %322 = vmatpush1.msra.mxu0 %v277
    %323 = vmatprep.subr.mxu0 %v280
    %324 = vmatpush1.msra.mxu0 %v279
    %325 = vmatprep.subr.mxu0 %v282
    %326 = vmatpush1.msra.mxu0 %v281
    %327 = vmatprep.subr.mxu0 %v284
    %328 = vmatpush1.msra.mxu0 %v283
    %329 = vmatprep.subr.mxu0 %v286
    %330 = vmatpush1.msra.mxu0 %v285
    %331 = vmatprep.subr.mxu0 %v288
    %332 = vmatpush1.msra.mxu0 %v287
    %333 = vmatprep.subr.mxu0 %v290
    %334 = vmatpush1.msra.mxu0 %v289
    %335 = vmatprep.subr.mxu0 %v292
    %336 = vmatpush1.msra.mxu0 %v291
    %337 = vmatprep.subr.mxu0 %v294
    %338 = vmatpush1.msra.mxu0 %v293
    %339 = vmatprep.subr.mxu0 %v296
    %340 = vmatpush1.msra.mxu0 %v295
    %341 = vmatprep.subr.mxu0 %v298
    %342 = vmatpush1.msra.mxu0 %v297
    %343 = vmatprep.subr.mxu0 %v300
    %344 = vmatpush1.msra.mxu0 %v299
    %345 = vmatprep.subr.mxu0 %v302
    %346 = vmatpush1.msra.mxu0 %v301
    %347 = vmatprep.subr.mxu0 %v304
    %348 = vmatpush1.msra.mxu0 %v303
    %349 = vmatprep.subr.mxu0 %v306
    %350 = vmatpush1.msra.mxu0 %v305
    %351 = vmatprep.subr.mxu0 %v308
    %352 = vmatpush1.msra.mxu0 %v307
    %353 = vmatprep.subr.mxu0 0.0
    %354 = vmatpush1.msra.mxu0 0.0
    %355 = vmatprep.subr.mxu0 0.0
    %356 = vmatpush1.msra.mxu0 0.0
    %357 = vmatprep.subr.mxu0 0.0
    %358 = vmatpush1.msra.mxu0 0.0
    %359 = vmatprep.subr.mxu0 0.0
    %360 = vmatpush1.msra.mxu0 0.0
    %361 = vmatprep.subr.mxu0 0.0
    %362 = vmatpush1.msra.mxu0 0.0
    %363 = vmatprep.subr.mxu0 0.0
    %364 = vmatpush1.msra.mxu0 0.0
    %365 = vmatprep.subr.mxu0 0.0
    %366 = vmatpush1.msra.mxu0 0.0
    %367 = vmatprep.subr.mxu0 0.0
    %368 = vmatpush1.msra.mxu0 0.0
    %369 = vmatprep.subr.mxu0 0.0
    %370 = vmatpush1.msra.mxu0 0.0
    %371 = vmatprep.subr.mxu0 0.0
    %372 = vmatpush1.msra.mxu0 0.0
    %373 = vmatprep.subr.mxu0 0.0
    %374 = vmatpush1.msra.mxu0 0.0
    %375 = vmatprep.subr.mxu0 0.0
    %376 = vmatpush1.msra.mxu0 0.0
    %377 = vmatprep.subr.mxu0 0.0
    %378 = vmatpush1.msra.mxu0 0.0
    %379 = vmatprep.subr.mxu0 0.0
    %380 = vmatpush1.msra.mxu0 0.0
    %381 = vmatprep.subr.mxu0 0.0
    %382 = vmatpush1.msra.mxu0 0.0
    %383 = vmatprep.subr.mxu0 0.0
    %384 = vmatpush1.msra.mxu0 0.0
    %385 = vmatprep.mubr.f32.mxu0 0.0
    %386 = vmatmul.mubr.f32.gmra.mrb[0].mxu0 %v33
    %v387 = vpop.f32.mrb[0].mxu0
    %v388 = vadd.f32 %v314, %v387
    %v389 = vpop.f32.mrb[0].mxu0
    %v390 = vadd.f32 %v318, %v389
    %391 = vmatprep.mubr.f32.mxu0 0.0
    %392 = vmatmul.mubr.f32.gmra.mrb[0].mxu0 %v34
    %v393 = vpop.f32.mrb[0].mxu0
    %v394 = vadd.f32 %v314, %v393
    %v395 = vpop.f32.mrb[0].mxu0
    %v396 = vadd.f32 %v318, %v395
    %397 = vdwg.mxu0
    %vm398 = vcmask 130048
    %v400 = vsel %vm398, %v146, 0
    %v403 = vsel %vm398, %v267, 0
    %405 = vmatprep.subr.mxu0 0.0
    %406 = vmatpush1.xpose.msra.mxu0 %v403
    %407 = vmatprep.subr.mxu0 0.0
    %408 = vmatpush1.xpose.msra.mxu0 0.0
    %409 = vmatprep.subr.mxu0 0.0
    %410 = vmatpush1.xpose.msra.mxu0 0.0
    %411 = vmatprep.subr.mxu0 0.0
    %412 = vmatpush1.xpose.msra.mxu0 0.0
    %413 = vmatprep.subr.mxu0 0.0
    %414 = vmatpush1.xpose.msra.mxu0 0.0
    %415 = vmatprep.subr.mxu0 0.0
    %416 = vmatpush1.xpose.msra.mxu0 0.0
    %417 = vmatprep.subr.mxu0 0.0
    %418 = vmatpush1.xpose.msra.mxu0 0.0
    %419 = vmatprep.subr.mxu0 0.0
    %420 = vmatpush1.xpose.msra.mxu0 0.0
    %421 = vmatprep.subr.mxu0 0.0
    %422 = vmatpush1.xpose.msra.mxu0 0.0
    %423 = vmatprep.subr.mxu0 0.0
    %424 = vmatpush1.xpose.msra.mxu0 0.0
    %425 = vmatprep.subr.mxu0 0.0
    %426 = vmatpush1.xpose.msra.mxu0 0.0
    %427 = vmatprep.subr.mxu0 0.0
    %428 = vmatpush1.xpose.msra.mxu0 0.0
    %429 = vmatprep.subr.mxu0 0.0
    %430 = vmatpush1.xpose.msra.mxu0 0.0
    %431 = vmatprep.subr.mxu0 0.0
    %432 = vmatpush1.xpose.msra.mxu0 0.0
    %433 = vmatprep.subr.mxu0 0.0
    %434 = vmatpush1.xpose.msra.mxu0 0.0
    %435 = vmatprep.subr.mxu0 0.0
    %436 = vmatpush1.xpose.msra.mxu0 0.0
    %437 = vmatprep.subr.mxu0 0.0
    %438 = vmatpush1.xpose.msra.mxu0 0.0
    %439 = vmatprep.subr.mxu0 0.0
    %440 = vmatpush1.xpose.msra.mxu0 0.0
    %441 = vmatprep.subr.mxu0 0.0
    %442 = vmatpush1.xpose.msra.mxu0 0.0
    %443 = vmatprep.subr.mxu0 0.0
    %444 = vmatpush1.xpose.msra.mxu0 0.0
    %445 = vmatprep.subr.mxu0 0.0
    %446 = vmatpush1.xpose.msra.mxu0 0.0
    %447 = vmatprep.subr.mxu0 0.0
    %448 = vmatpush1.xpose.msra.mxu0 0.0
    %449 = vmatprep.subr.mxu0 0.0
    %450 = vmatpush1.xpose.msra.mxu0 0.0
    %451 = vmatprep.subr.mxu0 0.0
    %452 = vmatpush1.xpose.msra.mxu0 0.0
    %453 = vmatprep.subr.mxu0 0.0
    %454 = vmatpush1.xpose.msra.mxu0 0.0
    %455 = vmatprep.subr.mxu0 0.0
    %456 = vmatpush1.xpose.msra.mxu0 0.0
    %457 = vmatprep.subr.mxu0 0.0
    %458 = vmatpush1.xpose.msra.mxu0 0.0
    %459 = vmatprep.subr.mxu0 0.0
    %460 = vmatpush1.xpose.msra.mxu0 0.0
    %461 = vmatprep.subr.mxu0 0.0
    %462 = vmatpush1.xpose.msra.mxu0 0.0
    %463 = vmatprep.subr.mxu0 0.0
    %464 = vmatpush1.xpose.msra.mxu0 0.0
    %465 = vmatprep.subr.mxu0 0.0
    %466 = vmatpush1.xpose.msra.mxu0 0.0
    %467 = vmatprep.subr.mxu0 0.0
    %468 = vmatpush1.xpose.msra.mxu0 0.0
    %469 = vmatprep.mubr.f32.mxu0 0.0
    %470 = vmatmul.mubr.f32.gmra.mrb[0].mxu0 %v400
    %v471 = vpop.f32.mrb[0].mxu0
    %v472 = vadd.f32 0.0, %v471
    %v473 = vpop.f32.mrb[0].mxu0
    %474 = vdwg.mxu0
    %v476 = vsel %vm398, %v152, 0
    %v479 = vsel %vm398, %v273, 0
    %481 = vmatprep.subr.mxu0 0.0
    %482 = vmatpush1.xpose.msra.mxu0 %v479
    %483 = vmatprep.subr.mxu0 0.0
    %484 = vmatpush1.xpose.msra.mxu0 0.0
    %485 = vmatprep.subr.mxu0 0.0
    %486 = vmatpush1.xpose.msra.mxu0 0.0
    %487 = vmatprep.subr.mxu0 0.0
    %488 = vmatpush1.xpose.msra.mxu0 0.0
    %489 = vmatprep.subr.mxu0 0.0
    %490 = vmatpush1.xpose.msra.mxu0 0.0
    %491 = vmatprep.subr.mxu0 0.0
    %492 = vmatpush1.xpose.msra.mxu0 0.0
    %493 = vmatprep.subr.mxu0 0.0
    %494 = vmatpush1.xpose.msra.mxu0 0.0
    %495 = vmatprep.subr.mxu0 0.0
    %496 = vmatpush1.xpose.msra.mxu0 0.0
    %497 = vmatprep.subr.mxu0 0.0
    %498 = vmatpush1.xpose.msra.mxu0 0.0
    %499 = vmatprep.subr.mxu0 0.0
    %500 = vmatpush1.xpose.msra.mxu0 0.0
    %501 = vmatprep.subr.mxu0 0.0
    %502 = vmatpush1.xpose.msra.mxu0 0.0
    %503 = vmatprep.subr.mxu0 0.0
    %504 = vmatpush1.xpose.msra.mxu0 0.0
    %505 = vmatprep.subr.mxu0 0.0
    %506 = vmatpush1.xpose.msra.mxu0 0.0
    %507 = vmatprep.subr.mxu0 0.0
    %508 = vmatpush1.xpose.msra.mxu0 0.0
    %509 = vmatprep.subr.mxu0 0.0
    %510 = vmatpush1.xpose.msra.mxu0 0.0
    %511 = vmatprep.subr.mxu0 0.0
    %512 = vmatpush1.xpose.msra.mxu0 0.0
    %513 = vmatprep.subr.mxu0 0.0
    %514 = vmatpush1.xpose.msra.mxu0 0.0
    %515 = vmatprep.subr.mxu0 0.0
    %516 = vmatpush1.xpose.msra.mxu0 0.0
    %517 = vmatprep.subr.mxu0 0.0
    %518 = vmatpush1.xpose.msra.mxu0 0.0
    %519 = vmatprep.subr.mxu0 0.0
    %520 = vmatpush1.xpose.msra.mxu0 0.0
    %521 = vmatprep.subr.mxu0 0.0
    %522 = vmatpush1.xpose.msra.mxu0 0.0
    %523 = vmatprep.subr.mxu0 0.0
    %524 = vmatpush1.xpose.msra.mxu0 0.0
    %525 = vmatprep.subr.mxu0 0.0
    %526 = vmatpush1.xpose.msra.mxu0 0.0
    %527 = vmatprep.subr.mxu0 0.0
    %528 = vmatpush1.xpose.msra.mxu0 0.0
    %529 = vmatprep.subr.mxu0 0.0
    %530 = vmatpush1.xpose.msra.mxu0 0.0
    %531 = vmatprep.subr.mxu0 0.0
    %532 = vmatpush1.xpose.msra.mxu0 0.0
    %533 = vmatprep.subr.mxu0 0.0
    %534 = vmatpush1.xpose.msra.mxu0 0.0
    %535 = vmatprep.subr.mxu0 0.0
    %536 = vmatpush1.xpose.msra.mxu0 0.0
    %537 = vmatprep.subr.mxu0 0.0
    %538 = vmatpush1.xpose.msra.mxu0 0.0
    %539 = vmatprep.subr.mxu0 0.0
    %540 = vmatpush1.xpose.msra.mxu0 0.0
    %541 = vmatprep.subr.mxu0 0.0
    %542 = vmatpush1.xpose.msra.mxu0 0.0
    %543 = vmatprep.subr.mxu0 0.0
    %544 = vmatpush1.xpose.msra.mxu0 0.0
    %545 = vmatprep.mubr.f32.mxu0 0.0
    %546 = vmatmul.mubr.f32.gmra.mrb[0].mxu0 %v476
    %v547 = vpop.f32.mrb[0].mxu0
    %v548 = vadd.f32 0.0, %v547
    %v549 = vpop.f32.mrb[0].mxu0
    %550 = vdwg.mxu0
    %vm551 = vcmask 64512
    %v552 = vsel %vm551, %v472, -inf
    %553 = vmax.xlane.f32.xlu0 %v552
    %v554 = vpop.xlane.xlu0 %553
    %v555 = vsel %vm551, %v548, -inf
    %556 = vmax.xlane.f32.xlu0 %v555
    %v557 = vpop.xlane.xlu0 %556
    %v558 = vsub.f32 %v472, %v554
    %v559 = vsub.f32 %v548, %v557
    %v560 = vmul.f32 %v558, 1.442695
    %v561 = vpow.pop %v560
    %v562 = vmul.f32 %v559, 1.442695
    %v563 = vpow.pop %v562
    %v564 = vsel %vm551, %v561, 0.0
    %565 = vadd.xlane.f32.xlu0 %v564
    %v566 = vpop.xlane.xlu0 %565
    %v567 = vsel %vm551, %v563, 0.0
    %568 = vadd.xlane.f32.xlu0 %v567
    %v569 = vpop.xlane.xlu0 %568
    %v570 = vrcp.pop %v566
    %v571 = vrcp.pop %v569
    %v572 = vmul.f32 %v561, %v570
    %v573 = vmul.f32 %v563, %v571
    %v575 = vsel %vm551, %v572, 0
    %577 = vmatprep.subr.mxu0 0.0
    %578 = vmatpush1.msra.mxu0 %v388
    %579 = vmatprep.subr.mxu0 0.0
    %580 = vmatpush1.msra.mxu0 0.0
    %581 = vmatprep.subr.mxu0 0.0
    %582 = vmatpush1.msra.mxu0 0.0
    %583 = vmatprep.subr.mxu0 0.0
    %584 = vmatpush1.msra.mxu0 0.0
    %585 = vmatprep.subr.mxu0 0.0
    %586 = vmatpush1.msra.mxu0 0.0
    %587 = vmatprep.subr.mxu0 0.0
    %588 = vmatpush1.msra.mxu0 0.0
    %589 = vmatprep.subr.mxu0 0.0
    %590 = vmatpush1.msra.mxu0 0.0
    %591 = vmatprep.subr.mxu0 0.0
    %592 = vmatpush1.msra.mxu0 0.0
    %593 = vmatprep.subr.mxu0 0.0
    %594 = vmatpush1.msra.mxu0 0.0
    %595 = vmatprep.subr.mxu0 0.0
    %596 = vmatpush1.msra.mxu0 0.0
    %597 = vmatprep.subr.mxu0 0.0
    %598 = vmatpush1.msra.mxu0 0.0
    %599 = vmatprep.subr.mxu0 0.0
    %600 = vmatpush1.msra.mxu0 0.0
    %601 = vmatprep.subr.mxu0 0.0
    %602 = vmatpush1.msra.mxu0 0.0
    %603 = vmatprep.subr.mxu0 0.0
    %604 = vmatpush1.msra.mxu0 0.0
    %605 = vmatprep.subr.mxu0 0.0
    %606 = vmatpush1.msra.mxu0 0.0
    %607 = vmatprep.subr.mxu0 0.0
    %608 = vmatpush1.msra.mxu0 0.0
    %609 = vmatprep.subr.mxu0 0.0
    %610 = vmatpush1.msra.mxu0 0.0
    %611 = vmatprep.subr.mxu0 0.0
    %612 = vmatpush1.msra.mxu0 0.0
    %613 = vmatprep.subr.mxu0 0.0
    %614 = vmatpush1.msra.mxu0 0.0
    %615 = vmatprep.subr.mxu0 0.0
    %616 = vmatpush1.msra.mxu0 0.0
    %617 = vmatprep.subr.mxu0 0.0
    %618 = vmatpush1.msra.mxu0 0.0
    %619 = vmatprep.subr.mxu0 0.0
    %620 = vmatpush1.msra.mxu0 0.0
    %621 = vmatprep.subr.mxu0 0.0
    %622 = vmatpush1.msra.mxu0 0.0
    %623 = vmatprep.subr.mxu0 0.0
    %624 = vmatpush1.msra.mxu0 0.0
    %625 = vmatprep.subr.mxu0 0.0
    %626 = vmatpush1.msra.mxu0 0.0
    %627 = vmatprep.subr.mxu0 0.0
    %628 = vmatpush1.msra.mxu0 0.0
    %629 = vmatprep.subr.mxu0 0.0
    %630 = vmatpush1.msra.mxu0 0.0
    %631 = vmatprep.subr.mxu0 0.0
    %632 = vmatpush1.msra.mxu0 0.0
    %633 = vmatprep.subr.mxu0 0.0
    %634 = vmatpush1.msra.mxu0 0.0
    %635 = vmatprep.subr.mxu0 0.0
    %636 = vmatpush1.msra.mxu0 0.0
    %637 = vmatprep.subr.mxu0 0.0
    %638 = vmatpush1.msra.mxu0 0.0
    %639 = vmatprep.subr.mxu0 0.0
    %640 = vmatpush1.msra.mxu0 0.0
    %641 = vmatprep.mubr.f32.mxu0 0.0
    %642 = vmatmul.mubr.f32.gmra.mrb[0].mxu0 %v575
    %v643 = vpop.f32.mrb[0].mxu0
    %v644 = vadd.f32 0.0, %v643
    %v645 = vpop.f32.mrb[0].mxu0
    %646 = vdwg.mxu0
    %v648 = vsel %vm551, %v573, 0
    %650 = vmatprep.subr.mxu0 0.0
    %651 = vmatpush1.msra.mxu0 %v394
    %652 = vmatprep.subr.mxu0 0.0
    %653 = vmatpush1.msra.mxu0 0.0
    %654 = vmatprep.subr.mxu0 0.0
    %655 = vmatpush1.msra.mxu0 0.0
    %656 = vmatprep.subr.mxu0 0.0
    %657 = vmatpush1.msra.mxu0 0.0
    %658 = vmatprep.subr.mxu0 0.0
    %659 = vmatpush1.msra.mxu0 0.0
    %660 = vmatprep.subr.mxu0 0.0
    %661 = vmatpush1.msra.mxu0 0.0
    %662 = vmatprep.subr.mxu0 0.0
    %663 = vmatpush1.msra.mxu0 0.0
    %664 = vmatprep.subr.mxu0 0.0
    %665 = vmatpush1.msra.mxu0 0.0
    %666 = vmatprep.subr.mxu0 0.0
    %667 = vmatpush1.msra.mxu0 0.0
    %668 = vmatprep.subr.mxu0 0.0
    %669 = vmatpush1.msra.mxu0 0.0
    %670 = vmatprep.subr.mxu0 0.0
    %671 = vmatpush1.msra.mxu0 0.0
    %672 = vmatprep.subr.mxu0 0.0
    %673 = vmatpush1.msra.mxu0 0.0
    %674 = vmatprep.subr.mxu0 0.0
    %675 = vmatpush1.msra.mxu0 0.0
    %676 = vmatprep.subr.mxu0 0.0
    %677 = vmatpush1.msra.mxu0 0.0
    %678 = vmatprep.subr.mxu0 0.0
    %679 = vmatpush1.msra.mxu0 0.0
    %680 = vmatprep.subr.mxu0 0.0
    %681 = vmatpush1.msra.mxu0 0.0
    %682 = vmatprep.subr.mxu0 0.0
    %683 = vmatpush1.msra.mxu0 0.0
    %684 = vmatprep.subr.mxu0 0.0
    %685 = vmatpush1.msra.mxu0 0.0
    %686 = vmatprep.subr.mxu0 0.0
    %687 = vmatpush1.msra.mxu0 0.0
    %688 = vmatprep.subr.mxu0 0.0
    %689 = vmatpush1.msra.mxu0 0.0
    %690 = vmatprep.subr.mxu0 0.0
    %691 = vmatpush1.msra.mxu0 0.0
    %692 = vmatprep.subr.mxu0 0.0
    %693 = vmatpush1.msra.mxu0 0.0
    %694 = vmatprep.subr.mxu0 0.0
    %695 = vmatpush1.msra.mxu0 0.0
    %696 = vmatprep.subr.mxu0 0.0
    %697 = vmatpush1.msra.mxu0 0.0
    %698 = vmatprep.subr.mxu0 0.0
    %699 = vmatpush1.msra.mxu0 0.0
    %700 = vmatprep.subr.mxu0 0.0
    %701 = vmatpush1.msra.mxu0 0.0
    %702 = vmatprep.subr.mxu0 0.0
    %703 = vmatpush1.msra.mxu0 0.0
    %704 = vmatprep.subr.mxu0 0.0
    %705 = vmatpush1.msra.mxu0 0.0
    %706 = vmatprep.subr.mxu0 0.0
    %707 = vmatpush1.msra.mxu0 0.0
    %708 = vmatprep.subr.mxu0 0.0
    %709 = vmatpush1.msra.mxu0 0.0
    %710 = vmatprep.subr.mxu0 0.0
    %711 = vmatpush1.msra.mxu0 0.0
    %712 = vmatprep.subr.mxu0 0.0
    %713 = vmatpush1.msra.mxu0 0.0
    %714 = vmatprep.mubr.f32.mxu0 0.0
    %715 = vmatmul.mubr.f32.gmra.mrb[0].mxu0 %v648
    %v716 = vpop.f32.mrb[0].mxu0
    %v717 = vadd.f32 0.0, %v716
    %v718 = vpop.f32.mrb[0].mxu0
    %719 = vdwg.mxu0
    %v720 = vld [vmem:[%s7] sm:$0xff]
    %v721 = vld [vmem:[%s7 + $0x8] sm:$0xff]
    %722 = vrot.lane.b32.xlu0 %v146, 112
    %v723 = vpop.permute.xlu0 %722
    %724 = vrot.lane.b32.xlu0 %v267, 112
    %v725 = vpop.permute.xlu0 %724
    %v726 = vsel %vm398, %v723, 0
    %v728 = vsel %vm398, %v725, 0
    %730 = vmatprep.subr.mxu0 0.0
    %731 = vmatpush1.xpose.msra.mxu0 %v728
    %732 = vmatprep.subr.mxu0 0.0
    %733 = vmatpush1.xpose.msra.mxu0 0.0
    %734 = vmatprep.subr.mxu0 0.0
    %735 = vmatpush1.xpose.msra.mxu0 0.0
    %736 = vmatprep.subr.mxu0 0.0
    %737 = vmatpush1.xpose.msra.mxu0 0.0
    %738 = vmatprep.subr.mxu0 0.0
    %739 = vmatpush1.xpose.msra.mxu0 0.0
    %740 = vmatprep.subr.mxu0 0.0
    %741 = vmatpush1.xpose.msra.mxu0 0.0
    %742 = vmatprep.subr.mxu0 0.0
    %743 = vmatpush1.xpose.msra.mxu0 0.0
    %744 = vmatprep.subr.mxu0 0.0
    %745 = vmatpush1.xpose.msra.mxu0 0.0
    %746 = vmatprep.subr.mxu0 0.0
    %747 = vmatpush1.xpose.msra.mxu0 0.0
    %748 = vmatprep.subr.mxu0 0.0
    %749 = vmatpush1.xpose.msra.mxu0 0.0
    %750 = vmatprep.subr.mxu0 0.0
    %751 = vmatpush1.xpose.msra.mxu0 0.0
    %752 = vmatprep.subr.mxu0 0.0
    %753 = vmatpush1.xpose.msra.mxu0 0.0
    %754 = vmatprep.subr.mxu0 0.0
    %755 = vmatpush1.xpose.msra.mxu0 0.0
    %756 = vmatprep.subr.mxu0 0.0
    %757 = vmatpush1.xpose.msra.mxu0 0.0
    %758 = vmatprep.subr.mxu0 0.0
    %759 = vmatpush1.xpose.msra.mxu0 0.0
    %760 = vmatprep.subr.mxu0 0.0
    %761 = vmatpush1.xpose.msra.mxu0 0.0
    %762 = vmatprep.subr.mxu0 0.0
    %763 = vmatpush1.xpose.msra.mxu0 0.0
    %764 = vmatprep.subr.mxu0 0.0
    %765 = vmatpush1.xpose.msra.mxu0 0.0
    %766 = vmatprep.subr.mxu0 0.0
    %767 = vmatpush1.xpose.msra.mxu0 0.0
    %768 = vmatprep.subr.mxu0 0.0
    %769 = vmatpush1.xpose.msra.mxu0 0.0
    %770 = vmatprep.subr.mxu0 0.0
    %771 = vmatpush1.xpose.msra.mxu0 0.0
    %772 = vmatprep.subr.mxu0 0.0
    %773 = vmatpush1.xpose.msra.mxu0 0.0
    %774 = vmatprep.subr.mxu0 0.0
    %775 = vmatpush1.xpose.msra.mxu0 0.0
    %776 = vmatprep.subr.mxu0 0.0
    %777 = vmatpush1.xpose.msra.mxu0 0.0
    %778 = vmatprep.subr.mxu0 0.0
    %779 = vmatpush1.xpose.msra.mxu0 0.0
    %780 = vmatprep.subr.mxu0 0.0
    %781 = vmatpush1.xpose.msra.mxu0 0.0
    %782 = vmatprep.subr.mxu0 0.0
    %783 = vmatpush1.xpose.msra.mxu0 0.0
    %784 = vmatprep.subr.mxu0 0.0
    %785 = vmatpush1.xpose.msra.mxu0 0.0
    %786 = vmatprep.subr.mxu0 0.0
    %787 = vmatpush1.xpose.msra.mxu0 0.0
    %788 = vmatprep.subr.mxu0 0.0
    %789 = vmatpush1.xpose.msra.mxu0 0.0
    %790 = vmatprep.subr.mxu0 0.0
    %791 = vmatpush1.xpose.msra.mxu0 0.0
    %792 = vmatprep.subr.mxu0 0.0
    %793 = vmatpush1.xpose.msra.mxu0 0.0
    %794 = vmatprep.mubr.f32.mxu0 0.0
    %795 = vmatmul.mubr.f32.gmra.mrb[0].mxu0 %v726
    %v796 = vpop.f32.mrb[0].mxu0
    %v797 = vadd.f32 0.0, %v796
    %v798 = vpop.f32.mrb[0].mxu0
    %799 = vdwg.mxu0
    %800 = vrot.lane.b32.xlu0 %v152, 112
    %v801 = vpop.permute.xlu0 %800
    %802 = vrot.lane.b32.xlu0 %v273, 112
    %v803 = vpop.permute.xlu0 %802
    %v804 = vsel %vm398, %v801, 0
    %v806 = vsel %vm398, %v803, 0
    %808 = vmatprep.subr.mxu0 0.0
    %809 = vmatpush1.xpose.msra.mxu0 %v806
    %810 = vmatprep.subr.mxu0 0.0
    %811 = vmatpush1.xpose.msra.mxu0 0.0
    %812 = vmatprep.subr.mxu0 0.0
    %813 = vmatpush1.xpose.msra.mxu0 0.0
    %814 = vmatprep.subr.mxu0 0.0
    %815 = vmatpush1.xpose.msra.mxu0 0.0
    %816 = vmatprep.subr.mxu0 0.0
    %817 = vmatpush1.xpose.msra.mxu0 0.0
    %818 = vmatprep.subr.mxu0 0.0
    %819 = vmatpush1.xpose.msra.mxu0 0.0
    %820 = vmatprep.subr.mxu0 0.0
    %821 = vmatpush1.xpose.msra.mxu0 0.0
    %822 = vmatprep.subr.mxu0 0.0
    %823 = vmatpush1.xpose.msra.mxu0 0.0
    %824 = vmatprep.subr.mxu0 0.0
    %825 = vmatpush1.xpose.msra.mxu0 0.0
    %826 = vmatprep.subr.mxu0 0.0
    %827 = vmatpush1.xpose.msra.mxu0 0.0
    %828 = vmatprep.subr.mxu0 0.0
    %829 = vmatpush1.xpose.msra.mxu0 0.0
    %830 = vmatprep.subr.mxu0 0.0
    %831 = vmatpush1.xpose.msra.mxu0 0.0
    %832 = vmatprep.subr.mxu0 0.0
    %833 = vmatpush1.xpose.msra.mxu0 0.0
    %834 = vmatprep.subr.mxu0 0.0
    %835 = vmatpush1.xpose.msra.mxu0 0.0
    %836 = vmatprep.subr.mxu0 0.0
    %837 = vmatpush1.xpose.msra.mxu0 0.0
    %838 = vmatprep.subr.mxu0 0.0
    %839 = vmatpush1.xpose.msra.mxu0 0.0
    %840 = vmatprep.subr.mxu0 0.0
    %841 = vmatpush1.xpose.msra.mxu0 0.0
    %842 = vmatprep.subr.mxu0 0.0
    %843 = vmatpush1.xpose.msra.mxu0 0.0
    %844 = vmatprep.subr.mxu0 0.0
    %845 = vmatpush1.xpose.msra.mxu0 0.0
    %846 = vmatprep.subr.mxu0 0.0
    %847 = vmatpush1.xpose.msra.mxu0 0.0
    %848 = vmatprep.subr.mxu0 0.0
    %849 = vmatpush1.xpose.msra.mxu0 0.0
    %850 = vmatprep.subr.mxu0 0.0
    %851 = vmatpush1.xpose.msra.mxu0 0.0
    %852 = vmatprep.subr.mxu0 0.0
    %853 = vmatpush1.xpose.msra.mxu0 0.0
    %854 = vmatprep.subr.mxu0 0.0
    %855 = vmatpush1.xpose.msra.mxu0 0.0
    %856 = vmatprep.subr.mxu0 0.0
    %857 = vmatpush1.xpose.msra.mxu0 0.0
    %858 = vmatprep.subr.mxu0 0.0
    %859 = vmatpush1.xpose.msra.mxu0 0.0
    %860 = vmatprep.subr.mxu0 0.0
    %861 = vmatpush1.xpose.msra.mxu0 0.0
    %862 = vmatprep.subr.mxu0 0.0
    %863 = vmatpush1.xpose.msra.mxu0 0.0
    %864 = vmatprep.subr.mxu0 0.0
    %865 = vmatpush1.xpose.msra.mxu0 0.0
    %866 = vmatprep.subr.mxu0 0.0
    %867 = vmatpush1.xpose.msra.mxu0 0.0
    %868 = vmatprep.subr.mxu0 0.0
    %869 = vmatpush1.xpose.msra.mxu0 0.0
    %870 = vmatprep.subr.mxu0 0.0
    %871 = vmatpush1.xpose.msra.mxu0 0.0
    %872 = vmatprep.mubr.f32.mxu0 0.0
    %873 = vmatmul.mubr.f32.gmra.mrb[0].mxu0 %v804
    %v874 = vpop.f32.mrb[0].mxu0
    %v875 = vadd.f32 0.0, %v874
    %v876 = vpop.f32.mrb[0].mxu0
    %877 = vdwg.mxu0
    %v878 = vsel %vm551, %v797, -inf
    %879 = vmax.xlane.f32.xlu0 %v878
    %v880 = vpop.xlane.xlu0 %879
    %v881 = vsel %vm551, %v875, -inf
    %882 = vmax.xlane.f32.xlu0 %v881
    %v883 = vpop.xlane.xlu0 %882
    %v884 = vsub.f32 %v797, %v880
    %v885 = vsub.f32 %v875, %v883
    %v886 = vmul.f32 %v884, 1.442695
    %v887 = vpow.pop %v886
    %v888 = vmul.f32 %v885, 1.442695
    %v889 = vpow.pop %v888
    %v890 = vsel %vm551, %v887, 0.0
    %891 = vadd.xlane.f32.xlu0 %v890
    %v892 = vpop.xlane.xlu0 %891
    %v893 = vsel %vm551, %v889, 0.0
    %894 = vadd.xlane.f32.xlu0 %v893
    %v895 = vpop.xlane.xlu0 %894
    %v896 = vrcp.pop %v892
    %v897 = vrcp.pop %v895
    %v898 = vmul.f32 %v887, %v896
    %v899 = vmul.f32 %v889, %v897
    %901 = vrot.lane.b32.xlu0 %v388, 112
    %v902 = vpop.permute.xlu0 %901
    %v905 = vsel %vm551, %v898, 0
    %907 = vmatprep.subr.mxu0 0.0
    %908 = vmatpush1.msra.mxu0 %v902
    %909 = vmatprep.subr.mxu0 0.0
    %910 = vmatpush1.msra.mxu0 0.0
    %911 = vmatprep.subr.mxu0 0.0
    %912 = vmatpush1.msra.mxu0 0.0
    %913 = vmatprep.subr.mxu0 0.0
    %914 = vmatpush1.msra.mxu0 0.0
    %915 = vmatprep.subr.mxu0 0.0
    %916 = vmatpush1.msra.mxu0 0.0
    %917 = vmatprep.subr.mxu0 0.0
    %918 = vmatpush1.msra.mxu0 0.0
    %919 = vmatprep.subr.mxu0 0.0
    %920 = vmatpush1.msra.mxu0 0.0
    %921 = vmatprep.subr.mxu0 0.0
    %922 = vmatpush1.msra.mxu0 0.0
    %923 = vmatprep.subr.mxu0 0.0
    %924 = vmatpush1.msra.mxu0 0.0
    %925 = vmatprep.subr.mxu0 0.0
    %926 = vmatpush1.msra.mxu0 0.0
    %927 = vmatprep.subr.mxu0 0.0
    %928 = vmatpush1.msra.mxu0 0.0
    %929 = vmatprep.subr.mxu0 0.0
    %930 = vmatpush1.msra.mxu0 0.0
    %931 = vmatprep.subr.mxu0 0.0
    %932 = vmatpush1.msra.mxu0 0.0
    %933 = vmatprep.subr.mxu0 0.0
    %934 = vmatpush1.msra.mxu0 0.0
    %935 = vmatprep.subr.mxu0 0.0
    %936 = vmatpush1.msra.mxu0 0.0
    %937 = vmatprep.subr.mxu0 0.0
    %938 = vmatpush1.msra.mxu0 0.0
    %939 = vmatprep.subr.mxu0 0.0
    %940 = vmatpush1.msra.mxu0 0.0
    %941 = vmatprep.subr.mxu0 0.0
    %942 = vmatpush1.msra.mxu0 0.0
    %943 = vmatprep.subr.mxu0 0.0
    %944 = vmatpush1.msra.mxu0 0.0
    %945 = vmatprep.subr.mxu0 0.0
    %946 = vmatpush1.msra.mxu0 0.0
    %947 = vmatprep.subr.mxu0 0.0
    %948 = vmatpush1.msra.mxu0 0.0
    %949 = vmatprep.subr.mxu0 0.0
    %950 = vmatpush1.msra.mxu0 0.0
    %951 = vmatprep.subr.mxu0 0.0
    %952 = vmatpush1.msra.mxu0 0.0
    %953 = vmatprep.subr.mxu0 0.0
    %954 = vmatpush1.msra.mxu0 0.0
    %955 = vmatprep.subr.mxu0 0.0
    %956 = vmatpush1.msra.mxu0 0.0
    %957 = vmatprep.subr.mxu0 0.0
    %958 = vmatpush1.msra.mxu0 0.0
    %959 = vmatprep.subr.mxu0 0.0
    %960 = vmatpush1.msra.mxu0 0.0
    %961 = vmatprep.subr.mxu0 0.0
    %962 = vmatpush1.msra.mxu0 0.0
    %963 = vmatprep.subr.mxu0 0.0
    %964 = vmatpush1.msra.mxu0 0.0
    %965 = vmatprep.subr.mxu0 0.0
    %966 = vmatpush1.msra.mxu0 0.0
    %967 = vmatprep.subr.mxu0 0.0
    %968 = vmatpush1.msra.mxu0 0.0
    %969 = vmatprep.subr.mxu0 0.0
    %970 = vmatpush1.msra.mxu0 0.0
    %971 = vmatprep.mubr.f32.mxu0 0.0
    %972 = vmatmul.mubr.f32.gmra.mrb[0].mxu0 %v905
    %v973 = vpop.f32.mrb[0].mxu0
    %v974 = vadd.f32 0.0, %v973
    %v975 = vpop.f32.mrb[0].mxu0
    %976 = vdwg.mxu0
    %978 = vrot.lane.b32.xlu0 %v394, 112
    %v979 = vpop.permute.xlu0 %978
    %v982 = vsel %vm551, %v899, 0
    %984 = vmatprep.subr.mxu0 0.0
    %985 = vmatpush1.msra.mxu0 %v979
    %986 = vmatprep.subr.mxu0 0.0
    %987 = vmatpush1.msra.mxu0 0.0
    %988 = vmatprep.subr.mxu0 0.0
    %989 = vmatpush1.msra.mxu0 0.0
    %990 = vmatprep.subr.mxu0 0.0
    %991 = vmatpush1.msra.mxu0 0.0
    %992 = vmatprep.subr.mxu0 0.0
    %993 = vmatpush1.msra.mxu0 0.0
    %994 = vmatprep.subr.mxu0 0.0
    %995 = vmatpush1.msra.mxu0 0.0
    %996 = vmatprep.subr.mxu0 0.0
    %997 = vmatpush1.msra.mxu0 0.0
    %998 = vmatprep.subr.mxu0 0.0
    %999 = vmatpush1.msra.mxu0 0.0
    %1000 = vmatprep.subr.mxu0 0.0
    %1001 = vmatpush1.msra.mxu0 0.0
    %1002 = vmatprep.subr.mxu0 0.0
    %1003 = vmatpush1.msra.mxu0 0.0
    %1004 = vmatprep.subr.mxu0 0.0
    %1005 = vmatpush1.msra.mxu0 0.0
    %1006 = vmatprep.subr.mxu0 0.0
    %1007 = vmatpush1.msra.mxu0 0.0
    %1008 = vmatprep.subr.mxu0 0.0
    %1009 = vmatpush1.msra.mxu0 0.0
    %1010 = vmatprep.subr.mxu0 0.0
    %1011 = vmatpush1.msra.mxu0 0.0
    %1012 = vmatprep.subr.mxu0 0.0
    %1013 = vmatpush1.msra.mxu0 0.0
    %1014 = vmatprep.subr.mxu0 0.0
    %1015 = vmatpush1.msra.mxu0 0.0
    %1016 = vmatprep.subr.mxu0 0.0
    %1017 = vmatpush1.msra.mxu0 0.0
    %1018 = vmatprep.subr.mxu0 0.0
    %1019 = vmatpush1.msra.mxu0 0.0
    %1020 = vmatprep.subr.mxu0 0.0
    %1021 = vmatpush1.msra.mxu0 0.0
    %1022 = vmatprep.subr.mxu0 0.0
    %1023 = vmatpush1.msra.mxu0 0.0
    %1024 = vmatprep.subr.mxu0 0.0
    %1025 = vmatpush1.msra.mxu0 0.0
    %1026 = vmatprep.subr.mxu0 0.0
    %1027 = vmatpush1.msra.mxu0 0.0
    %1028 = vmatprep.subr.mxu0 0.0
    %1029 = vmatpush1.msra.mxu0 0.0
    %1030 = vmatprep.subr.mxu0 0.0
    %1031 = vmatpush1.msra.mxu0 0.0
    %1032 = vmatprep.subr.mxu0 0.0
    %1033 = vmatpush1.msra.mxu0 0.0
    %1034 = vmatprep.subr.mxu0 0.0
    %1035 = vmatpush1.msra.mxu0 0.0
    %1036 = vmatprep.subr.mxu0 0.0
    %1037 = vmatpush1.msra.mxu0 0.0
    %1038 = vmatprep.subr.mxu0 0.0
    %1039 = vmatpush1.msra.mxu0 0.0
    %1040 = vmatprep.subr.mxu0 0.0
    %1041 = vmatpush1.msra.mxu0 0.0
    %1042 = vmatprep.subr.mxu0 0.0
    %1043 = vmatpush1.msra.mxu0 0.0
    %1044 = vmatprep.subr.mxu0 0.0
    %1045 = vmatpush1.msra.mxu0 0.0
    %1046 = vmatprep.subr.mxu0 0.0
    %1047 = vmatpush1.msra.mxu0 0.0
    %1048 = vmatprep.mubr.f32.mxu0 0.0
    %1049 = vmatmul.mubr.f32.gmra.mrb[0].mxu0 %v982
    %v1050 = vpop.f32.mrb[0].mxu0
    %v1051 = vadd.f32 0.0, %v1050
    %v1052 = vpop.f32.mrb[0].mxu0
    %1053 = vdwg.mxu0
    %s1054 = scalar_lea.vmem %s7, 16
    %v1055 = vld [vmem:[%s1054] sm:$0xff]
    %v1056 = vld [vmem:[%s1054 + $0x8] sm:$0xff]
    %v1058 = vsel %vm398, %v974, 0
    %v1061 = vsel %vm398, %v1051, 0
    %1063 = vmatprep.subr.mxu0 0.0
    %1064 = vmatpush1.msra.mxu0 %v1055
    %1065 = vmatprep.subr.mxu0 0.0
    %1066 = vmatpush1.msra.mxu0 %v1056
    %1067 = vmatprep.subr.mxu0 0.0
    %1068 = vmatpush1.msra.mxu0 0.0
    %1069 = vmatprep.subr.mxu0 0.0
    %1070 = vmatpush1.msra.mxu0 0.0
    %1071 = vmatprep.subr.mxu0 0.0
    %1072 = vmatpush1.msra.mxu0 0.0
    %1073 = vmatprep.subr.mxu0 0.0
    %1074 = vmatpush1.msra.mxu0 0.0
    %1075 = vmatprep.subr.mxu0 0.0
    %1076 = vmatpush1.msra.mxu0 0.0
    %1077 = vmatprep.subr.mxu0 0.0
    %1078 = vmatpush1.msra.mxu0 0.0
    %1079 = vmatprep.subr.mxu0 0.0
    %1080 = vmatpush1.msra.mxu0 0.0
    %1081 = vmatprep.subr.mxu0 0.0
    %1082 = vmatpush1.msra.mxu0 0.0
    %1083 = vmatprep.subr.mxu0 0.0
    %1084 = vmatpush1.msra.mxu0 0.0
    %1085 = vmatprep.subr.mxu0 0.0
    %1086 = vmatpush1.msra.mxu0 0.0
    %1087 = vmatprep.subr.mxu0 0.0
    %1088 = vmatpush1.msra.mxu0 0.0
    %1089 = vmatprep.subr.mxu0 0.0
    %1090 = vmatpush1.msra.mxu0 0.0
    %1091 = vmatprep.subr.mxu0 0.0
    %1092 = vmatpush1.msra.mxu0 0.0
    %1093 = vmatprep.subr.mxu0 0.0
    %1094 = vmatpush1.msra.mxu0 0.0
    %1095 = vmatprep.subr.mxu0 0.0
    %1096 = vmatpush1.msra.mxu0 0.0
    %1097 = vmatprep.subr.mxu0 0.0
    %1098 = vmatpush1.msra.mxu0 0.0
    %1099 = vmatprep.subr.mxu0 0.0
    %1100 = vmatpush1.msra.mxu0 0.0
    %1101 = vmatprep.subr.mxu0 0.0
    %1102 = vmatpush1.msra.mxu0 0.0
    %1103 = vmatprep.subr.mxu0 0.0
    %1104 = vmatpush1.msra.mxu0 0.0
    %1105 = vmatprep.subr.mxu0 0.0
    %1106 = vmatpush1.msra.mxu0 0.0
    %1107 = vmatprep.subr.mxu0 0.0
    %1108 = vmatpush1.msra.mxu0 0.0
    %1109 = vmatprep.subr.mxu0 0.0
    %1110 = vmatpush1.msra.mxu0 0.0
    %1111 = vmatprep.subr.mxu0 0.0
    %1112 = vmatpush1.msra.mxu0 0.0
    %1113 = vmatprep.subr.mxu0 0.0
    %1114 = vmatpush1.msra.mxu0 0.0
    %1115 = vmatprep.subr.mxu0 0.0
    %1116 = vmatpush1.msra.mxu0 0.0
    %1117 = vmatprep.subr.mxu0 0.0
    %1118 = vmatpush1.msra.mxu0 0.0
    %1119 = vmatprep.subr.mxu0 0.0
    %1120 = vmatpush1.msra.mxu0 0.0
    %1121 = vmatprep.subr.mxu0 0.0
    %1122 = vmatpush1.msra.mxu0 0.0
    %1123 = vmatprep.subr.mxu0 0.0
    %1124 = vmatpush1.msra.mxu0 0.0
    %1125 = vmatprep.subr.mxu0 0.0
    %1126 = vmatpush1.msra.mxu0 0.0
    %1127 = vmatprep.mubr.f32.mxu0 0.0
    %1128 = vmatmul.mubr.f32.gmra.mrb[0].mxu0 %v1058
    %v1129 = vpop.f32.mrb[0].mxu0
    %v1130 = vadd.f32 0.0, %v1129
    %v1131 = vpop.f32.mrb[0].mxu0
    %1132 = vmatprep.mubr.f32.mxu0 0.0
    %1133 = vmatmul.mubr.f32.gmra.mrb[0].mxu0 %v1061
    %v1134 = vpop.f32.mrb[0].mxu0
    %v1135 = vadd.f32 0.0, %v1134
    %v1136 = vpop.f32.mrb[0].mxu0
    %1137 = vdwg.mxu0
    %v1139 = vsel %vm398, %v644, 0
    %v1142 = vsel %vm398, %v717, 0
    %1144 = vmatprep.subr.mxu0 0.0
    %1145 = vmatpush1.msra.mxu0 %v720
    %1146 = vmatprep.subr.mxu0 0.0
    %1147 = vmatpush1.msra.mxu0 %v721
    %1148 = vmatprep.subr.mxu0 0.0
    %1149 = vmatpush1.msra.mxu0 0.0
    %1150 = vmatprep.subr.mxu0 0.0
    %1151 = vmatpush1.msra.mxu0 0.0
    %1152 = vmatprep.subr.mxu0 0.0
    %1153 = vmatpush1.msra.mxu0 0.0
    %1154 = vmatprep.subr.mxu0 0.0
    %1155 = vmatpush1.msra.mxu0 0.0
    %1156 = vmatprep.subr.mxu0 0.0
    %1157 = vmatpush1.msra.mxu0 0.0
    %1158 = vmatprep.subr.mxu0 0.0
    %1159 = vmatpush1.msra.mxu0 0.0
    %1160 = vmatprep.subr.mxu0 0.0
    %1161 = vmatpush1.msra.mxu0 0.0
    %1162 = vmatprep.subr.mxu0 0.0
    %1163 = vmatpush1.msra.mxu0 0.0
    %1164 = vmatprep.subr.mxu0 0.0
    %1165 = vmatpush1.msra.mxu0 0.0
    %1166 = vmatprep.subr.mxu0 0.0
    %1167 = vmatpush1.msra.mxu0 0.0
    %1168 = vmatprep.subr.mxu0 0.0
    %1169 = vmatpush1.msra.mxu0 0.0
    %1170 = vmatprep.subr.mxu0 0.0
    %1171 = vmatpush1.msra.mxu0 0.0
    %1172 = vmatprep.subr.mxu0 0.0
    %1173 = vmatpush1.msra.mxu0 0.0
    %1174 = vmatprep.subr.mxu0 0.0
    %1175 = vmatpush1.msra.mxu0 0.0
    %1176 = vmatprep.subr.mxu0 0.0
    %1177 = vmatpush1.msra.mxu0 0.0
    %1178 = vmatprep.subr.mxu0 0.0
    %1179 = vmatpush1.msra.mxu0 0.0
    %1180 = vmatprep.subr.mxu0 0.0
    %1181 = vmatpush1.msra.mxu0 0.0
    %1182 = vmatprep.subr.mxu0 0.0
    %1183 = vmatpush1.msra.mxu0 0.0
    %1184 = vmatprep.subr.mxu0 0.0
    %1185 = vmatpush1.msra.mxu0 0.0
    %1186 = vmatprep.subr.mxu0 0.0
    %1187 = vmatpush1.msra.mxu0 0.0
    %1188 = vmatprep.subr.mxu0 0.0
    %1189 = vmatpush1.msra.mxu0 0.0
    %1190 = vmatprep.subr.mxu0 0.0
    %1191 = vmatpush1.msra.mxu0 0.0
    %1192 = vmatprep.subr.mxu0 0.0
    %1193 = vmatpush1.msra.mxu0 0.0
    %1194 = vmatprep.subr.mxu0 0.0
    %1195 = vmatpush1.msra.mxu0 0.0
    %1196 = vmatprep.subr.mxu0 0.0
    %1197 = vmatpush1.msra.mxu0 0.0
    %1198 = vmatprep.subr.mxu0 0.0
    %1199 = vmatpush1.msra.mxu0 0.0
    %1200 = vmatprep.subr.mxu0 0.0
    %1201 = vmatpush1.msra.mxu0 0.0
    %1202 = vmatprep.subr.mxu0 0.0
    %1203 = vmatpush1.msra.mxu0 0.0
    %1204 = vmatprep.subr.mxu0 0.0
    %1205 = vmatpush1.msra.mxu0 0.0
    %1206 = vmatprep.subr.mxu0 0.0
    %1207 = vmatpush1.msra.mxu0 0.0
    %1208 = vmatprep.mubr.f32.mxu0 0.0
    %1209 = vmatmul.mubr.f32.gmra.mrb[0].mxu0 %v1139
    %v1210 = vpop.f32.mrb[0].mxu0
    %v1211 = vadd.f32 %v1130, %v1210
    %v1212 = vpop.f32.mrb[0].mxu0
    %1213 = vmatprep.mubr.f32.mxu0 0.0
    %1214 = vmatmul.mubr.f32.gmra.mrb[0].mxu0 %v1142
    %v1215 = vpop.f32.mrb[0].mxu0
    %v1216 = vadd.f32 %v1135, %v1215
    %v1217 = vpop.f32.mrb[0].mxu0
    %1218 = vdwg.mxu0
    %1219 = vrot.lane.b32.xlu0 %v146, 96
    %v1220 = vpop.permute.xlu0 %1219
    %1221 = vrot.lane.b32.xlu0 %v267, 96
    %v1222 = vpop.permute.xlu0 %1221
    %v1223 = vsel %vm398, %v1220, 0
    %v1225 = vsel %vm398, %v1222, 0
    %1227 = vmatprep.subr.mxu0 0.0
    %1228 = vmatpush1.xpose.msra.mxu0 %v1225
    %1229 = vmatprep.subr.mxu0 0.0
    %1230 = vmatpush1.xpose.msra.mxu0 0.0
    %1231 = vmatprep.subr.mxu0 0.0
    %1232 = vmatpush1.xpose.msra.mxu0 0.0
    %1233 = vmatprep.subr.mxu0 0.0
    %1234 = vmatpush1.xpose.msra.mxu0 0.0
    %1235 = vmatprep.subr.mxu0 0.0
    %1236 = vmatpush1.xpose.msra.mxu0 0.0
    %1237 = vmatprep.subr.mxu0 0.0
    %1238 = vmatpush1.xpose.msra.mxu0 0.0
    %1239 = vmatprep.subr.mxu0 0.0
    %1240 = vmatpush1.xpose.msra.mxu0 0.0
    %1241 = vmatprep.subr.mxu0 0.0
    %1242 = vmatpush1.xpose.msra.mxu0 0.0
    %1243 = vmatprep.subr.mxu0 0.0
    %1244 = vmatpush1.xpose.msra.mxu0 0.0
    %1245 = vmatprep.subr.mxu0 0.0
    %1246 = vmatpush1.xpose.msra.mxu0 0.0
    %1247 = vmatprep.subr.mxu0 0.0
    %1248 = vmatpush1.xpose.msra.mxu0 0.0
    %1249 = vmatprep.subr.mxu0 0.0
    %1250 = vmatpush1.xpose.msra.mxu0 0.0
    %1251 = vmatprep.subr.mxu0 0.0
    %1252 = vmatpush1.xpose.msra.mxu0 0.0
    %1253 = vmatprep.subr.mxu0 0.0
    %1254 = vmatpush1.xpose.msra.mxu0 0.0
    %1255 = vmatprep.subr.mxu0 0.0
    %1256 = vmatpush1.xpose.msra.mxu0 0.0
    %1257 = vmatprep.subr.mxu0 0.0
    %1258 = vmatpush1.xpose.msra.mxu0 0.0
    %1259 = vmatprep.subr.mxu0 0.0
    %1260 = vmatpush1.xpose.msra.mxu0 0.0
    %1261 = vmatprep.subr.mxu0 0.0
    %1262 = vmatpush1.xpose.msra.mxu0 0.0
    %1263 = vmatprep.subr.mxu0 0.0
    %1264 = vmatpush1.xpose.msra.mxu0 0.0
    %1265 = vmatprep.subr.mxu0 0.0
    %1266 = vmatpush1.xpose.msra.mxu0 0.0
    %1267 = vmatprep.subr.mxu0 0.0
    %1268 = vmatpush1.xpose.msra.mxu0 0.0
    %1269 = vmatprep.subr.mxu0 0.0
    %1270 = vmatpush1.xpose.msra.mxu0 0.0
    %1271 = vmatprep.subr.mxu0 0.0
    %1272 = vmatpush1.xpose.msra.mxu0 0.0
    %1273 = vmatprep.subr.mxu0 0.0
    %1274 = vmatpush1.xpose.msra.mxu0 0.0
    %1275 = vmatprep.subr.mxu0 0.0
    %1276 = vmatpush1.xpose.msra.mxu0 0.0
    %1277 = vmatprep.subr.mxu0 0.0
    %1278 = vmatpush1.xpose.msra.mxu0 0.0
    %1279 = vmatprep.subr.mxu0 0.0
    %1280 = vmatpush1.xpose.msra.mxu0 0.0
    %1281 = vmatprep.subr.mxu0 0.0
    %1282 = vmatpush1.xpose.msra.mxu0 0.0
    %1283 = vmatprep.subr.mxu0 0.0
    %1284 = vmatpush1.xpose.msra.mxu0 0.0
    %1285 = vmatprep.subr.mxu0 0.0
    %1286 = vmatpush1.xpose.msra.mxu0 0.0
    %1287 = vmatprep.subr.mxu0 0.0
    %1288 = vmatpush1.xpose.msra.mxu0 0.0
    %1289 = vmatprep.subr.mxu0 0.0
    %1290 = vmatpush1.xpose.msra.mxu0 0.0
    %1291 = vmatprep.mubr.f32.mxu0 0.0
    %1292 = vmatmul.mubr.f32.gmra.mrb[0].mxu0 %v1223
    %v1293 = vpop.f32.mrb[0].mxu0
    %v1294 = vadd.f32 0.0, %v1293
    %v1295 = vpop.f32.mrb[0].mxu0
    %1296 = vdwg.mxu0
    %1297 = vrot.lane.b32.xlu0 %v152, 96
    %v1298 = vpop.permute.xlu0 %1297
    %1299 = vrot.lane.b32.xlu0 %v273, 96
    %v1300 = vpop.permute.xlu0 %1299
    %v1301 = vsel %vm398, %v1298, 0
    %v1303 = vsel %vm398, %v1300, 0
    %1305 = vmatprep.subr.mxu0 0.0
    %1306 = vmatpush1.xpose.msra.mxu0 %v1303
    %1307 = vmatprep.subr.mxu0 0.0
    %1308 = vmatpush1.xpose.msra.mxu0 0.0
    %1309 = vmatprep.subr.mxu0 0.0
    %1310 = vmatpush1.xpose.msra.mxu0 0.0
    %1311 = vmatprep.subr.mxu0 0.0
    %1312 = vmatpush1.xpose.msra.mxu0 0.0
    %1313 = vmatprep.subr.mxu0 0.0
    %1314 = vmatpush1.xpose.msra.mxu0 0.0
    %1315 = vmatprep.subr.mxu0 0.0
    %1316 = vmatpush1.xpose.msra.mxu0 0.0
    %1317 = vmatprep.subr.mxu0 0.0
    %1318 = vmatpush1.xpose.msra.mxu0 0.0
    %1319 = vmatprep.subr.mxu0 0.0
    %1320 = vmatpush1.xpose.msra.mxu0 0.0
    %1321 = vmatprep.subr.mxu0 0.0
    %1322 = vmatpush1.xpose.msra.mxu0 0.0
    %1323 = vmatprep.subr.mxu0 0.0
    %1324 = vmatpush1.xpose.msra.mxu0 0.0
    %1325 = vmatprep.subr.mxu0 0.0
    %1326 = vmatpush1.xpose.msra.mxu0 0.0
    %1327 = vmatprep.subr.mxu0 0.0
    %1328 = vmatpush1.xpose.msra.mxu0 0.0
    %1329 = vmatprep.subr.mxu0 0.0
    %1330 = vmatpush1.xpose.msra.mxu0 0.0
    %1331 = vmatprep.subr.mxu0 0.0
    %1332 = vmatpush1.xpose.msra.mxu0 0.0
    %1333 = vmatprep.subr.mxu0 0.0
    %1334 = vmatpush1.xpose.msra.mxu0 0.0
    %1335 = vmatprep.subr.mxu0 0.0
    %1336 = vmatpush1.xpose.msra.mxu0 0.0
    %1337 = vmatprep.subr.mxu0 0.0
    %1338 = vmatpush1.xpose.msra.mxu0 0.0
    %1339 = vmatprep.subr.mxu0 0.0
    %1340 = vmatpush1.xpose.msra.mxu0 0.0
    %1341 = vmatprep.subr.mxu0 0.0
    %1342 = vmatpush1.xpose.msra.mxu0 0.0
    %1343 = vmatprep.subr.mxu0 0.0
    %1344 = vmatpush1.xpose.msra.mxu0 0.0
    %1345 = vmatprep.subr.mxu0 0.0
    %1346 = vmatpush1.xpose.msra.mxu0 0.0
    %1347 = vmatprep.subr.mxu0 0.0
    %1348 = vmatpush1.xpose.msra.mxu0 0.0
    %1349 = vmatprep.subr.mxu0 0.0
    %1350 = vmatpush1.xpose.msra.mxu0 0.0
    %1351 = vmatprep.subr.mxu0 0.0
    %1352 = vmatpush1.xpose.msra.mxu0 0.0
    %1353 = vmatprep.subr.mxu0 0.0
    %1354 = vmatpush1.xpose.msra.mxu0 0.0
    %1355 = vmatprep.subr.mxu0 0.0
    %1356 = vmatpush1.xpose.msra.mxu0 0.0
    %1357 = vmatprep.subr.mxu0 0.0
    %1358 = vmatpush1.xpose.msra.mxu0 0.0
    %1359 = vmatprep.subr.mxu0 0.0
    %1360 = vmatpush1.xpose.msra.mxu0 0.0
    %1361 = vmatprep.subr.mxu0 0.0
    %1362 = vmatpush1.xpose.msra.mxu0 0.0
    %1363 = vmatprep.subr.mxu0 0.0
    %1364 = vmatpush1.xpose.msra.mxu0 0.0
    %1365 = vmatprep.subr.mxu0 0.0
    %1366 = vmatpush1.xpose.msra.mxu0 0.0
    %1367 = vmatprep.subr.mxu0 0.0
    %1368 = vmatpush1.xpose.msra.mxu0 0.0
    %1369 = vmatprep.mubr.f32.mxu0 0.0
    %1370 = vmatmul.mubr.f32.gmra.mrb[0].mxu0 %v1301
    %v1371 = vpop.f32.mrb[0].mxu0
    %v1372 = vadd.f32 0.0, %v1371
    %v1373 = vpop.f32.mrb[0].mxu0
    %1374 = vdwg.mxu0
    %v1375 = vsel %vm551, %v1294, -inf
    %1376 = vmax.xlane.f32.xlu0 %v1375
    %v1377 = vpop.xlane.xlu0 %1376
    %v1378 = vsel %vm551, %v1372, -inf
    %1379 = vmax.xlane.f32.xlu0 %v1378
    %v1380 = vpop.xlane.xlu0 %1379
    %v1381 = vsub.f32 %v1294, %v1377
    %v1382 = vsub.f32 %v1372, %v1380
    %v1383 = vmul.f32 %v1381, 1.442695
    %v1384 = vpow.pop %v1383
    %v1385 = vmul.f32 %v1382, 1.442695
    %v1386 = vpow.pop %v1385
    %v1387 = vsel %vm551, %v1384, 0.0
    %1388 = vadd.xlane.f32.xlu0 %v1387
    %v1389 = vpop.xlane.xlu0 %1388
    %v1390 = vsel %vm551, %v1386, 0.0
    %1391 = vadd.xlane.f32.xlu0 %v1390
    %v1392 = vpop.xlane.xlu0 %1391
    %v1393 = vrcp.pop %v1389
    %v1394 = vrcp.pop %v1392
    %v1395 = vmul.f32 %v1384, %v1393
    %v1396 = vmul.f32 %v1386, %v1394
    %1397 = vrot.lane.b32.xlu0 %v388, 96
    %v1398 = vpop.permute.xlu0 %1397
    %v1401 = vsel %vm551, %v1395, 0
    %1403 = vmatprep.subr.mxu0 0.0
    %1404 = vmatpush1.msra.mxu0 %v1398
    %1405 = vmatprep.subr.mxu0 0.0
    %1406 = vmatpush1.msra.mxu0 0.0
    %1407 = vmatprep.subr.mxu0 0.0
    %1408 = vmatpush1.msra.mxu0 0.0
    %1409 = vmatprep.subr.mxu0 0.0
    %1410 = vmatpush1.msra.mxu0 0.0
    %1411 = vmatprep.subr.mxu0 0.0
    %1412 = vmatpush1.msra.mxu0 0.0
    %1413 = vmatprep.subr.mxu0 0.0
    %1414 = vmatpush1.msra.mxu0 0.0
    %1415 = vmatprep.subr.mxu0 0.0
    %1416 = vmatpush1.msra.mxu0 0.0
    %1417 = vmatprep.subr.mxu0 0.0
    %1418 = vmatpush1.msra.mxu0 0.0
    %1419 = vmatprep.subr.mxu0 0.0
    %1420 = vmatpush1.msra.mxu0 0.0
    %1421 = vmatprep.subr.mxu0 0.0
    %1422 = vmatpush1.msra.mxu0 0.0
    %1423 = vmatprep.subr.mxu0 0.0
    %1424 = vmatpush1.msra.mxu0 0.0
    %1425 = vmatprep.subr.mxu0 0.0
    %1426 = vmatpush1.msra.mxu0 0.0
    %1427 = vmatprep.subr.mxu0 0.0
    %1428 = vmatpush1.msra.mxu0 0.0
    %1429 = vmatprep.subr.mxu0 0.0
    %1430 = vmatpush1.msra.mxu0 0.0
    %1431 = vmatprep.subr.mxu0 0.0
    %1432 = vmatpush1.msra.mxu0 0.0
    %1433 = vmatprep.subr.mxu0 0.0
    %1434 = vmatpush1.msra.mxu0 0.0
    %1435 = vmatprep.subr.mxu0 0.0
    %1436 = vmatpush1.msra.mxu0 0.0
    %1437 = vmatprep.subr.mxu0 0.0
    %1438 = vmatpush1.msra.mxu0 0.0
    %1439 = vmatprep.subr.mxu0 0.0
    %1440 = vmatpush1.msra.mxu0 0.0
    %1441 = vmatprep.subr.mxu0 0.0
    %1442 = vmatpush1.msra.mxu0 0.0
    %1443 = vmatprep.subr.mxu0 0.0
    %1444 = vmatpush1.msra.mxu0 0.0
    %1445 = vmatprep.subr.mxu0 0.0
    %1446 = vmatpush1.msra.mxu0 0.0
    %1447 = vmatprep.subr.mxu0 0.0
    %1448 = vmatpush1.msra.mxu0 0.0
    %1449 = vmatprep.subr.mxu0 0.0
    %1450 = vmatpush1.msra.mxu0 0.0
    %1451 = vmatprep.subr.mxu0 0.0
    %1452 = vmatpush1.msra.mxu0 0.0
    %1453 = vmatprep.subr.mxu0 0.0
    %1454 = vmatpush1.msra.mxu0 0.0
    %1455 = vmatprep.subr.mxu0 0.0
    %1456 = vmatpush1.msra.mxu0 0.0
    %1457 = vmatprep.subr.mxu0 0.0
    %1458 = vmatpush1.msra.mxu0 0.0
    %1459 = vmatprep.subr.mxu0 0.0
    %1460 = vmatpush1.msra.mxu0 0.0
    %1461 = vmatprep.subr.mxu0 0.0
    %1462 = vmatpush1.msra.mxu0 0.0
    %1463 = vmatprep.subr.mxu0 0.0
    %1464 = vmatpush1.msra.mxu0 0.0
    %1465 = vmatprep.subr.mxu0 0.0
    %1466 = vmatpush1.msra.mxu0 0.0
    %1467 = vmatprep.mubr.f32.mxu0 0.0
    %1468 = vmatmul.mubr.f32.gmra.mrb[0].mxu0 %v1401
    %v1469 = vpop.f32.mrb[0].mxu0
    %v1470 = vadd.f32 0.0, %v1469
    %v1471 = vpop.f32.mrb[0].mxu0
    %1472 = vdwg.mxu0
    %1473 = vrot.lane.b32.xlu0 %v394, 96
    %v1474 = vpop.permute.xlu0 %1473
    %v1477 = vsel %vm551, %v1396, 0
    %1479 = vmatprep.subr.mxu0 0.0
    %1480 = vmatpush1.msra.mxu0 %v1474
    %1481 = vmatprep.subr.mxu0 0.0
    %1482 = vmatpush1.msra.mxu0 0.0
    %1483 = vmatprep.subr.mxu0 0.0
    %1484 = vmatpush1.msra.mxu0 0.0
    %1485 = vmatprep.subr.mxu0 0.0
    %1486 = vmatpush1.msra.mxu0 0.0
    %1487 = vmatprep.subr.mxu0 0.0
    %1488 = vmatpush1.msra.mxu0 0.0
    %1489 = vmatprep.subr.mxu0 0.0
    %1490 = vmatpush1.msra.mxu0 0.0
    %1491 = vmatprep.subr.mxu0 0.0
    %1492 = vmatpush1.msra.mxu0 0.0
    %1493 = vmatprep.subr.mxu0 0.0
    %1494 = vmatpush1.msra.mxu0 0.0
    %1495 = vmatprep.subr.mxu0 0.0
    %1496 = vmatpush1.msra.mxu0 0.0
    %1497 = vmatprep.subr.mxu0 0.0
    %1498 = vmatpush1.msra.mxu0 0.0
    %1499 = vmatprep.subr.mxu0 0.0
    %1500 = vmatpush1.msra.mxu0 0.0
    %1501 = vmatprep.subr.mxu0 0.0
    %1502 = vmatpush1.msra.mxu0 0.0
    %1503 = vmatprep.subr.mxu0 0.0
    %1504 = vmatpush1.msra.mxu0 0.0
    %1505 = vmatprep.subr.mxu0 0.0
    %1506 = vmatpush1.msra.mxu0 0.0
    %1507 = vmatprep.subr.mxu0 0.0
    %1508 = vmatpush1.msra.mxu0 0.0
    %1509 = vmatprep.subr.mxu0 0.0
    %1510 = vmatpush1.msra.mxu0 0.0
    %1511 = vmatprep.subr.mxu0 0.0
    %1512 = vmatpush1.msra.mxu0 0.0
    %1513 = vmatprep.subr.mxu0 0.0
    %1514 = vmatpush1.msra.mxu0 0.0
    %1515 = vmatprep.subr.mxu0 0.0
    %1516 = vmatpush1.msra.mxu0 0.0
    %1517 = vmatprep.subr.mxu0 0.0
    %1518 = vmatpush1.msra.mxu0 0.0
    %1519 = vmatprep.subr.mxu0 0.0
    %1520 = vmatpush1.msra.mxu0 0.0
    %1521 = vmatprep.subr.mxu0 0.0
    %1522 = vmatpush1.msra.mxu0 0.0
    %1523 = vmatprep.subr.mxu0 0.0
    %1524 = vmatpush1.msra.mxu0 0.0
    %1525 = vmatprep.subr.mxu0 0.0
    %1526 = vmatpush1.msra.mxu0 0.0
    %1527 = vmatprep.subr.mxu0 0.0
    %1528 = vmatpush1.msra.mxu0 0.0
    %1529 = vmatprep.subr.mxu0 0.0
    %1530 = vmatpush1.msra.mxu0 0.0
    %1531 = vmatprep.subr.mxu0 0.0
    %1532 = vmatpush1.msra.mxu0 0.0
    %1533 = vmatprep.subr.mxu0 0.0
    %1534 = vmatpush1.msra.mxu0 0.0
    %1535 = vmatprep.subr.mxu0 0.0
    %1536 = vmatpush1.msra.mxu0 0.0
    %1537 = vmatprep.subr.mxu0 0.0
    %1538 = vmatpush1.msra.mxu0 0.0
    %1539 = vmatprep.subr.mxu0 0.0
    %1540 = vmatpush1.msra.mxu0 0.0
    %1541 = vmatprep.subr.mxu0 0.0
    %1542 = vmatpush1.msra.mxu0 0.0
    %1543 = vmatprep.mubr.f32.mxu0 0.0
    %1544 = vmatmul.mubr.f32.gmra.mrb[0].mxu0 %v1477
    %v1545 = vpop.f32.mrb[0].mxu0
    %v1546 = vadd.f32 0.0, %v1545
    %v1547 = vpop.f32.mrb[0].mxu0
    %1548 = vdwg.mxu0
    %s1549 = scalar_lea.vmem %s7, 32
    %v1550 = vld [vmem:[%s1549] sm:$0xff]
    %v1551 = vld [vmem:[%s1549 + $0x8] sm:$0xff]
    %v1553 = vsel %vm398, %v1470, 0
    %v1556 = vsel %vm398, %v1546, 0
    %1558 = vmatprep.subr.mxu0 0.0
    %1559 = vmatpush1.msra.mxu0 %v1550
    %1560 = vmatprep.subr.mxu0 0.0
    %1561 = vmatpush1.msra.mxu0 %v1551
    %1562 = vmatprep.subr.mxu0 0.0
    %1563 = vmatpush1.msra.mxu0 0.0
    %1564 = vmatprep.subr.mxu0 0.0
    %1565 = vmatpush1.msra.mxu0 0.0
    %1566 = vmatprep.subr.mxu0 0.0
    %1567 = vmatpush1.msra.mxu0 0.0
    %1568 = vmatprep.subr.mxu0 0.0
    %1569 = vmatpush1.msra.mxu0 0.0
    %1570 = vmatprep.subr.mxu0 0.0
    %1571 = vmatpush1.msra.mxu0 0.0
    %1572 = vmatprep.subr.mxu0 0.0
    %1573 = vmatpush1.msra.mxu0 0.0
    %1574 = vmatprep.subr.mxu0 0.0
    %1575 = vmatpush1.msra.mxu0 0.0
    %1576 = vmatprep.subr.mxu0 0.0
    %1577 = vmatpush1.msra.mxu0 0.0
    %1578 = vmatprep.subr.mxu0 0.0
    %1579 = vmatpush1.msra.mxu0 0.0
    %1580 = vmatprep.subr.mxu0 0.0
    %1581 = vmatpush1.msra.mxu0 0.0
    %1582 = vmatprep.subr.mxu0 0.0
    %1583 = vmatpush1.msra.mxu0 0.0
    %1584 = vmatprep.subr.mxu0 0.0
    %1585 = vmatpush1.msra.mxu0 0.0
    %1586 = vmatprep.subr.mxu0 0.0
    %1587 = vmatpush1.msra.mxu0 0.0
    %1588 = vmatprep.subr.mxu0 0.0
    %1589 = vmatpush1.msra.mxu0 0.0
    %1590 = vmatprep.subr.mxu0 0.0
    %1591 = vmatpush1.msra.mxu0 0.0
    %1592 = vmatprep.subr.mxu0 0.0
    %1593 = vmatpush1.msra.mxu0 0.0
    %1594 = vmatprep.subr.mxu0 0.0
    %1595 = vmatpush1.msra.mxu0 0.0
    %1596 = vmatprep.subr.mxu0 0.0
    %1597 = vmatpush1.msra.mxu0 0.0
    %1598 = vmatprep.subr.mxu0 0.0
    %1599 = vmatpush1.msra.mxu0 0.0
    %1600 = vmatprep.subr.mxu0 0.0
    %1601 = vmatpush1.msra.mxu0 0.0
    %1602 = vmatprep.subr.mxu0 0.0
    %1603 = vmatpush1.msra.mxu0 0.0
    %1604 = vmatprep.subr.mxu0 0.0
    %1605 = vmatpush1.msra.mxu0 0.0
    %1606 = vmatprep.subr.mxu0 0.0
    %1607 = vmatpush1.msra.mxu0 0.0
    %1608 = vmatprep.subr.mxu0 0.0
    %1609 = vmatpush1.msra.mxu0 0.0
    %1610 = vmatprep.subr.mxu0 0.0
    %1611 = vmatpush1.msra.mxu0 0.0
    %1612 = vmatprep.subr.mxu0 0.0
    %1613 = vmatpush1.msra.mxu0 0.0
    %1614 = vmatprep.subr.mxu0 0.0
    %1615 = vmatpush1.msra.mxu0 0.0
    %1616 = vmatprep.subr.mxu0 0.0
    %1617 = vmatpush1.msra.mxu0 0.0
    %1618 = vmatprep.subr.mxu0 0.0
    %1619 = vmatpush1.msra.mxu0 0.0
    %1620 = vmatprep.subr.mxu0 0.0
    %1621 = vmatpush1.msra.mxu0 0.0
    %1622 = vmatprep.mubr.f32.mxu0 0.0
    %1623 = vmatmul.mubr.f32.gmra.mrb[0].mxu0 %v1553
    %v1624 = vpop.f32.mrb[0].mxu0
    %v1625 = vadd.f32 0.0, %v1624
    %v1626 = vpop.f32.mrb[0].mxu0
    %1627 = vmatprep.mubr.f32.mxu0 0.0
    %1628 = vmatmul.mubr.f32.gmra.mrb[0].mxu0 %v1556
    %v1629 = vpop.f32.mrb[0].mxu0
    %v1630 = vadd.f32 0.0, %v1629
    %v1631 = vpop.f32.mrb[0].mxu0
    %1632 = vdwg.mxu0
    %v1633 = vadd.f32 %v1211, %v1625
    %v1634 = vadd.f32 %v1216, %v1630
    %1635 = vrot.lane.b32.xlu0 %v146, 80
    %v1636 = vpop.permute.xlu0 %1635
    %1637 = vrot.lane.b32.xlu0 %v267, 80
    %v1638 = vpop.permute.xlu0 %1637
    %v1639 = vsel %vm398, %v1636, 0
    %v1641 = vsel %vm398, %v1638, 0
    %1643 = vmatprep.subr.mxu0 0.0
    %1644 = vmatpush1.xpose.msra.mxu0 %v1641
    %1645 = vmatprep.subr.mxu0 0.0
    %1646 = vmatpush1.xpose.msra.mxu0 0.0
    %1647 = vmatprep.subr.mxu0 0.0
    %1648 = vmatpush1.xpose.msra.mxu0 0.0
    %1649 = vmatprep.subr.mxu0 0.0
    %1650 = vmatpush1.xpose.msra.mxu0 0.0
    %1651 = vmatprep.subr.mxu0 0.0
    %1652 = vmatpush1.xpose.msra.mxu0 0.0
    %1653 = vmatprep.subr.mxu0 0.0
    %1654 = vmatpush1.xpose.msra.mxu0 0.0
    %1655 = vmatprep.subr.mxu0 0.0
    %1656 = vmatpush1.xpose.msra.mxu0 0.0
    %1657 = vmatprep.subr.mxu0 0.0
    %1658 = vmatpush1.xpose.msra.mxu0 0.0
    %1659 = vmatprep.subr.mxu0 0.0
    %1660 = vmatpush1.xpose.msra.mxu0 0.0
    %1661 = vmatprep.subr.mxu0 0.0
    %1662 = vmatpush1.xpose.msra.mxu0 0.0
    %1663 = vmatprep.subr.mxu0 0.0
    %1664 = vmatpush1.xpose.msra.mxu0 0.0
    %1665 = vmatprep.subr.mxu0 0.0
    %1666 = vmatpush1.xpose.msra.mxu0 0.0
    %1667 = vmatprep.subr.mxu0 0.0
    %1668 = vmatpush1.xpose.msra.mxu0 0.0
    %1669 = vmatprep.subr.mxu0 0.0
    %1670 = vmatpush1.xpose.msra.mxu0 0.0
    %1671 = vmatprep.subr.mxu0 0.0
    %1672 = vmatpush1.xpose.msra.mxu0 0.0
    %1673 = vmatprep.subr.mxu0 0.0
    %1674 = vmatpush1.xpose.msra.mxu0 0.0
    %1675 = vmatprep.subr.mxu0 0.0
    %1676 = vmatpush1.xpose.msra.mxu0 0.0
    %1677 = vmatprep.subr.mxu0 0.0
    %1678 = vmatpush1.xpose.msra.mxu0 0.0
    %1679 = vmatprep.subr.mxu0 0.0
    %1680 = vmatpush1.xpose.msra.mxu0 0.0
    %1681 = vmatprep.subr.mxu0 0.0
    %1682 = vmatpush1.xpose.msra.mxu0 0.0
    %1683 = vmatprep.subr.mxu0 0.0
    %1684 = vmatpush1.xpose.msra.mxu0 0.0
    %1685 = vmatprep.subr.mxu0 0.0
    %1686 = vmatpush1.xpose.msra.mxu0 0.0
    %1687 = vmatprep.subr.mxu0 0.0
    %1688 = vmatpush1.xpose.msra.mxu0 0.0
    %1689 = vmatprep.subr.mxu0 0.0
    %1690 = vmatpush1.xpose.msra.mxu0 0.0
    %1691 = vmatprep.subr.mxu0 0.0
    %1692 = vmatpush1.xpose.msra.mxu0 0.0
    %1693 = vmatprep.subr.mxu0 0.0
    %1694 = vmatpush1.xpose.msra.mxu0 0.0
    %1695 = vmatprep.subr.mxu0 0.0
    %1696 = vmatpush1.xpose.msra.mxu0 0.0
    %1697 = vmatprep.subr.mxu0 0.0
    %1698 = vmatpush1.xpose.msra.mxu0 0.0
    %1699 = vmatprep.subr.mxu0 0.0
    %1700 = vmatpush1.xpose.msra.mxu0 0.0
    %1701 = vmatprep.subr.mxu0 0.0
    %1702 = vmatpush1.xpose.msra.mxu0 0.0
    %1703 = vmatprep.subr.mxu0 0.0
    %1704 = vmatpush1.xpose.msra.mxu0 0.0
    %1705 = vmatprep.subr.mxu0 0.0
    %1706 = vmatpush1.xpose.msra.mxu0 0.0
    %1707 = vmatprep.mubr.f32.mxu0 0.0
    %1708 = vmatmul.mubr.f32.gmra.mrb[0].mxu0 %v1639
    %v1709 = vpop.f32.mrb[0].mxu0
    %v1710 = vadd.f32 0.0, %v1709
    %v1711 = vpop.f32.mrb[0].mxu0
    %1712 = vdwg.mxu0
    %1713 = vrot.lane.b32.xlu0 %v152, 80
    %v1714 = vpop.permute.xlu0 %1713
    %1715 = vrot.lane.b32.xlu0 %v273, 80
    %v1716 = vpop.permute.xlu0 %1715
    %v1717 = vsel %vm398, %v1714, 0
    %v1719 = vsel %vm398, %v1716, 0
    %1721 = vmatprep.subr.mxu0 0.0
    %1722 = vmatpush1.xpose.msra.mxu0 %v1719
    %1723 = vmatprep.subr.mxu0 0.0
    %1724 = vmatpush1.xpose.msra.mxu0 0.0
    %1725 = vmatprep.subr.mxu0 0.0
    %1726 = vmatpush1.xpose.msra.mxu0 0.0
    %1727 = vmatprep.subr.mxu0 0.0
    %1728 = vmatpush1.xpose.msra.mxu0 0.0
    %1729 = vmatprep.subr.mxu0 0.0
    %1730 = vmatpush1.xpose.msra.mxu0 0.0
    %1731 = vmatprep.subr.mxu0 0.0
    %1732 = vmatpush1.xpose.msra.mxu0 0.0
    %1733 = vmatprep.subr.mxu0 0.0
    %1734 = vmatpush1.xpose.msra.mxu0 0.0
    %1735 = vmatprep.subr.mxu0 0.0
    %1736 = vmatpush1.xpose.msra.mxu0 0.0
    %1737 = vmatprep.subr.mxu0 0.0
    %1738 = vmatpush1.xpose.msra.mxu0 0.0
    %1739 = vmatprep.subr.mxu0 0.0
    %1740 = vmatpush1.xpose.msra.mxu0 0.0
    %1741 = vmatprep.subr.mxu0 0.0
    %1742 = vmatpush1.xpose.msra.mxu0 0.0
    %1743 = vmatprep.subr.mxu0 0.0
    %1744 = vmatpush1.xpose.msra.mxu0 0.0
    %1745 = vmatprep.subr.mxu0 0.0
    %1746 = vmatpush1.xpose.msra.mxu0 0.0
    %1747 = vmatprep.subr.mxu0 0.0
    %1748 = vmatpush1.xpose.msra.mxu0 0.0
    %1749 = vmatprep.subr.mxu0 0.0
    %1750 = vmatpush1.xpose.msra.mxu0 0.0
    %1751 = vmatprep.subr.mxu0 0.0
    %1752 = vmatpush1.xpose.msra.mxu0 0.0
    %1753 = vmatprep.subr.mxu0 0.0
    %1754 = vmatpush1.xpose.msra.mxu0 0.0
    %1755 = vmatprep.subr.mxu0 0.0
    %1756 = vmatpush1.xpose.msra.mxu0 0.0
    %1757 = vmatprep.subr.mxu0 0.0
    %1758 = vmatpush1.xpose.msra.mxu0 0.0
    %1759 = vmatprep.subr.mxu0 0.0
    %1760 = vmatpush1.xpose.msra.mxu0 0.0
    %1761 = vmatprep.subr.mxu0 0.0
    %1762 = vmatpush1.xpose.msra.mxu0 0.0
    %1763 = vmatprep.subr.mxu0 0.0
    %1764 = vmatpush1.xpose.msra.mxu0 0.0
    %1765 = vmatprep.subr.mxu0 0.0
    %1766 = vmatpush1.xpose.msra.mxu0 0.0
    %1767 = vmatprep.subr.mxu0 0.0
    %1768 = vmatpush1.xpose.msra.mxu0 0.0
    %1769 = vmatprep.subr.mxu0 0.0
    %1770 = vmatpush1.xpose.msra.mxu0 0.0
    %1771 = vmatprep.subr.mxu0 0.0
    %1772 = vmatpush1.xpose.msra.mxu0 0.0
    %1773 = vmatprep.subr.mxu0 0.0
    %1774 = vmatpush1.xpose.msra.mxu0 0.0
    %1775 = vmatprep.subr.mxu0 0.0
    %1776 = vmatpush1.xpose.msra.mxu0 0.0
    %1777 = vmatprep.subr.mxu0 0.0
    %1778 = vmatpush1.xpose.msra.mxu0 0.0
    %1779 = vmatprep.subr.mxu0 0.0
    %1780 = vmatpush1.xpose.msra.mxu0 0.0
    %1781 = vmatprep.subr.mxu0 0.0
    %1782 = vmatpush1.xpose.msra.mxu0 0.0
    %1783 = vmatprep.subr.mxu0 0.0
    %1784 = vmatpush1.xpose.msra.mxu0 0.0
    %1785 = vmatprep.mubr.f32.mxu0 0.0
    %1786 = vmatmul.mubr.f32.gmra.mrb[0].mxu0 %v1717
    %v1787 = vpop.f32.mrb[0].mxu0
    %v1788 = vadd.f32 0.0, %v1787
    %v1789 = vpop.f32.mrb[0].mxu0
    %1790 = vdwg.mxu0
    %v1791 = vsel %vm551, %v1710, -inf
    %1792 = vmax.xlane.f32.xlu0 %v1791
    %v1793 = vpop.xlane.xlu0 %1792
    %v1794 = vsel %vm551, %v1788, -inf
    %1795 = vmax.xlane.f32.xlu0 %v1794
    %v1796 = vpop.xlane.xlu0 %1795
    %v1797 = vsub.f32 %v1710, %v1793
    %v1798 = vsub.f32 %v1788, %v1796
    %v1799 = vmul.f32 %v1797, 1.442695
    %v1800 = vpow.pop %v1799
    %v1801 = vmul.f32 %v1798, 1.442695
    %v1802 = vpow.pop %v1801
    %v1803 = vsel %vm551, %v1800, 0.0
    %1804 = vadd.xlane.f32.xlu0 %v1803
    %v1805 = vpop.xlane.xlu0 %1804
    %v1806 = vsel %vm551, %v1802, 0.0
    %1807 = vadd.xlane.f32.xlu0 %v1806
    %v1808 = vpop.xlane.xlu0 %1807
    %v1809 = vrcp.pop %v1805
    %v1810 = vrcp.pop %v1808
    %v1811 = vmul.f32 %v1800, %v1809
    %v1812 = vmul.f32 %v1802, %v1810
    %1813 = vrot.lane.b32.xlu0 %v388, 80
    %v1814 = vpop.permute.xlu0 %1813
    %v1817 = vsel %vm551, %v1811, 0
    %1819 = vmatprep.subr.mxu0 0.0
    %1820 = vmatpush1.msra.mxu0 %v1814
    %1821 = vmatprep.subr.mxu0 0.0
    %1822 = vmatpush1.msra.mxu0 0.0
    %1823 = vmatprep.subr.mxu0 0.0
    %1824 = vmatpush1.msra.mxu0 0.0
    %1825 = vmatprep.subr.mxu0 0.0
    %1826 = vmatpush1.msra.mxu0 0.0
    %1827 = vmatprep.subr.mxu0 0.0
    %1828 = vmatpush1.msra.mxu0 0.0
    %1829 = vmatprep.subr.mxu0 0.0
    %1830 = vmatpush1.msra.mxu0 0.0
    %1831 = vmatprep.subr.mxu0 0.0
    %1832 = vmatpush1.msra.mxu0 0.0
    %1833 = vmatprep.subr.mxu0 0.0
    %1834 = vmatpush1.msra.mxu0 0.0
    %1835 = vmatprep.subr.mxu0 0.0
    %1836 = vmatpush1.msra.mxu0 0.0
    %1837 = vmatprep.subr.mxu0 0.0
    %1838 = vmatpush1.msra.mxu0 0.0
    %1839 = vmatprep.subr.mxu0 0.0
    %1840 = vmatpush1.msra.mxu0 0.0
    %1841 = vmatprep.subr.mxu0 0.0
    %1842 = vmatpush1.msra.mxu0 0.0
    %1843 = vmatprep.subr.mxu0 0.0
    %1844 = vmatpush1.msra.mxu0 0.0
    %1845 = vmatprep.subr.mxu0 0.0
    %1846 = vmatpush1.msra.mxu0 0.0
    %1847 = vmatprep.subr.mxu0 0.0
    %1848 = vmatpush1.msra.mxu0 0.0
    %1849 = vmatprep.subr.mxu0 0.0
    %1850 = vmatpush1.msra.mxu0 0.0
    %1851 = vmatprep.subr.mxu0 0.0
    %1852 = vmatpush1.msra.mxu0 0.0
    %1853 = vmatprep.subr.mxu0 0.0
    %1854 = vmatpush1.msra.mxu0 0.0
    %1855 = vmatprep.subr.mxu0 0.0
    %1856 = vmatpush1.msra.mxu0 0.0
    %1857 = vmatprep.subr.mxu0 0.0
    %1858 = vmatpush1.msra.mxu0 0.0
    %1859 = vmatprep.subr.mxu0 0.0
    %1860 = vmatpush1.msra.mxu0 0.0
    %1861 = vmatprep.subr.mxu0 0.0
    %1862 = vmatpush1.msra.mxu0 0.0
    %1863 = vmatprep.subr.mxu0 0.0
    %1864 = vmatpush1.msra.mxu0 0.0
    %1865 = vmatprep.subr.mxu0 0.0
    %1866 = vmatpush1.msra.mxu0 0.0
    %1867 = vmatprep.subr.mxu0 0.0
    %1868 = vmatpush1.msra.mxu0 0.0
    %1869 = vmatprep.subr.mxu0 0.0
    %1870 = vmatpush1.msra.mxu0 0.0
    %1871 = vmatprep.subr.mxu0 0.0
    %1872 = vmatpush1.msra.mxu0 0.0
    %1873 = vmatprep.subr.mxu0 0.0
    %1874 = vmatpush1.msra.mxu0 0.0
    %1875 = vmatprep.subr.mxu0 0.0
    %1876 = vmatpush1.msra.mxu0 0.0
    %1877 = vmatprep.subr.mxu0 0.0
    %1878 = vmatpush1.msra.mxu0 0.0
    %1879 = vmatprep.subr.mxu0 0.0
    %1880 = vmatpush1.msra.mxu0 0.0
    %1881 = vmatprep.subr.mxu0 0.0
    %1882 = vmatpush1.msra.mxu0 0.0
    %1883 = vmatprep.mubr.f32.mxu0 0.0
    %1884 = vmatmul.mubr.f32.gmra.mrb[0].mxu0 %v1817
    %v1885 = vpop.f32.mrb[0].mxu0
    %v1886 = vadd.f32 0.0, %v1885
    %v1887 = vpop.f32.mrb[0].mxu0
    %1888 = vdwg.mxu0
    %1889 = vrot.lane.b32.xlu0 %v394, 80
    %v1890 = vpop.permute.xlu0 %1889
    %v1893 = vsel %vm551, %v1812, 0
    %1895 = vmatprep.subr.mxu0 0.0
    %1896 = vmatpush1.msra.mxu0 %v1890
    %1897 = vmatprep.subr.mxu0 0.0
    %1898 = vmatpush1.msra.mxu0 0.0
    %1899 = vmatprep.subr.mxu0 0.0
    %1900 = vmatpush1.msra.mxu0 0.0
    %1901 = vmatprep.subr.mxu0 0.0
    %1902 = vmatpush1.msra.mxu0 0.0
    %1903 = vmatprep.subr.mxu0 0.0
    %1904 = vmatpush1.msra.mxu0 0.0
    %1905 = vmatprep.subr.mxu0 0.0
    %1906 = vmatpush1.msra.mxu0 0.0
    %1907 = vmatprep.subr.mxu0 0.0
    %1908 = vmatpush1.msra.mxu0 0.0
    %1909 = vmatprep.subr.mxu0 0.0
    %1910 = vmatpush1.msra.mxu0 0.0
    %1911 = vmatprep.subr.mxu0 0.0
    %1912 = vmatpush1.msra.mxu0 0.0
    %1913 = vmatprep.subr.mxu0 0.0
    %1914 = vmatpush1.msra.mxu0 0.0
    %1915 = vmatprep.subr.mxu0 0.0
    %1916 = vmatpush1.msra.mxu0 0.0
    %1917 = vmatprep.subr.mxu0 0.0
    %1918 = vmatpush1.msra.mxu0 0.0
    %1919 = vmatprep.subr.mxu0 0.0
    %1920 = vmatpush1.msra.mxu0 0.0
    %1921 = vmatprep.subr.mxu0 0.0
    %1922 = vmatpush1.msra.mxu0 0.0
    %1923 = vmatprep.subr.mxu0 0.0
    %1924 = vmatpush1.msra.mxu0 0.0
    %1925 = vmatprep.subr.mxu0 0.0
    %1926 = vmatpush1.msra.mxu0 0.0
    %1927 = vmatprep.subr.mxu0 0.0
    %1928 = vmatpush1.msra.mxu0 0.0
    %1929 = vmatprep.subr.mxu0 0.0
    %1930 = vmatpush1.msra.mxu0 0.0
    %1931 = vmatprep.subr.mxu0 0.0
    %1932 = vmatpush1.msra.mxu0 0.0
    %1933 = vmatprep.subr.mxu0 0.0
    %1934 = vmatpush1.msra.mxu0 0.0
    %1935 = vmatprep.subr.mxu0 0.0
    %1936 = vmatpush1.msra.mxu0 0.0
    %1937 = vmatprep.subr.mxu0 0.0
    %1938 = vmatpush1.msra.mxu0 0.0
    %1939 = vmatprep.subr.mxu0 0.0
    %1940 = vmatpush1.msra.mxu0 0.0
    %1941 = vmatprep.subr.mxu0 0.0
    %1942 = vmatpush1.msra.mxu0 0.0
    %1943 = vmatprep.subr.mxu0 0.0
    %1944 = vmatpush1.msra.mxu0 0.0
    %1945 = vmatprep.subr.mxu0 0.0
    %1946 = vmatpush1.msra.mxu0 0.0
    %1947 = vmatprep.subr.mxu0 0.0
    %1948 = vmatpush1.msra.mxu0 0.0
    %1949 = vmatprep.subr.mxu0 0.0
    %1950 = vmatpush1.msra.mxu0 0.0
    %1951 = vmatprep.subr.mxu0 0.0
    %1952 = vmatpush1.msra.mxu0 0.0
    %1953 = vmatprep.subr.mxu0 0.0
    %1954 = vmatpush1.msra.mxu0 0.0
    %1955 = vmatprep.subr.mxu0 0.0
    %1956 = vmatpush1.msra.mxu0 0.0
    %1957 = vmatprep.subr.mxu0 0.0
    %1958 = vmatpush1.msra.mxu0 0.0
    %1959 = vmatprep.mubr.f32.mxu0 0.0
    %1960 = vmatmul.mubr.f32.gmra.mrb[0].mxu0 %v1893
    %v1961 = vpop.f32.mrb[0].mxu0
    %v1962 = vadd.f32 0.0, %v1961
    %v1963 = vpop.f32.mrb[0].mxu0
    %1964 = vdwg.mxu0
    %s1965 = scalar_lea.vmem %s7, 48
    %v1966 = vld [vmem:[%s1965] sm:$0xff]
    %v1967 = vld [vmem:[%s1965 + $0x8] sm:$0xff]
    %v1969 = vsel %vm398, %v1886, 0
    %v1972 = vsel %vm398, %v1962, 0
    %1974 = vmatprep.subr.mxu0 0.0
    %1975 = vmatpush1.msra.mxu0 %v1966
    %1976 = vmatprep.subr.mxu0 0.0
    %1977 = vmatpush1.msra.mxu0 %v1967
    %1978 = vmatprep.subr.mxu0 0.0
    %1979 = vmatpush1.msra.mxu0 0.0
    %1980 = vmatprep.subr.mxu0 0.0
    %1981 = vmatpush1.msra.mxu0 0.0
    %1982 = vmatprep.subr.mxu0 0.0
    %1983 = vmatpush1.msra.mxu0 0.0
    %1984 = vmatprep.subr.mxu0 0.0
    %1985 = vmatpush1.msra.mxu0 0.0
    %1986 = vmatprep.subr.mxu0 0.0
    %1987 = vmatpush1.msra.mxu0 0.0
    %1988 = vmatprep.subr.mxu0 0.0
    %1989 = vmatpush1.msra.mxu0 0.0
    %1990 = vmatprep.subr.mxu0 0.0
    %1991 = vmatpush1.msra.mxu0 0.0
    %1992 = vmatprep.subr.mxu0 0.0
    %1993 = vmatpush1.msra.mxu0 0.0
    %1994 = vmatprep.subr.mxu0 0.0
    %1995 = vmatpush1.msra.mxu0 0.0
    %1996 = vmatprep.subr.mxu0 0.0
    %1997 = vmatpush1.msra.mxu0 0.0
    %1998 = vmatprep.subr.mxu0 0.0
    %1999 = vmatpush1.msra.mxu0 0.0
    %2000 = vmatprep.subr.mxu0 0.0
    %2001 = vmatpush1.msra.mxu0 0.0
    %2002 = vmatprep.subr.mxu0 0.0
    %2003 = vmatpush1.msra.mxu0 0.0
    %2004 = vmatprep.subr.mxu0 0.0
    %2005 = vmatpush1.msra.mxu0 0.0
    %2006 = vmatprep.subr.mxu0 0.0
    %2007 = vmatpush1.msra.mxu0 0.0
    %2008 = vmatprep.subr.mxu0 0.0
    %2009 = vmatpush1.msra.mxu0 0.0
    %2010 = vmatprep.subr.mxu0 0.0
    %2011 = vmatpush1.msra.mxu0 0.0
    %2012 = vmatprep.subr.mxu0 0.0
    %2013 = vmatpush1.msra.mxu0 0.0
    %2014 = vmatprep.subr.mxu0 0.0
    %2015 = vmatpush1.msra.mxu0 0.0
    %2016 = vmatprep.subr.mxu0 0.0
    %2017 = vmatpush1.msra.mxu0 0.0
    %2018 = vmatprep.subr.mxu0 0.0
    %2019 = vmatpush1.msra.mxu0 0.0
    %2020 = vmatprep.subr.mxu0 0.0
    %2021 = vmatpush1.msra.mxu0 0.0
    %2022 = vmatprep.subr.mxu0 0.0
    %2023 = vmatpush1.msra.mxu0 0.0
    %2024 = vmatprep.subr.mxu0 0.0
    %2025 = vmatpush1.msra.mxu0 0.0
    %2026 = vmatprep.subr.mxu0 0.0
    %2027 = vmatpush1.msra.mxu0 0.0
    %2028 = vmatprep.subr.mxu0 0.0
    %2029 = vmatpush1.msra.mxu0 0.0
    %2030 = vmatprep.subr.mxu0 0.0
    %2031 = vmatpush1.msra.mxu0 0.0
    %2032 = vmatprep.subr.mxu0 0.0
    %2033 = vmatpush1.msra.mxu0 0.0
    %2034 = vmatprep.subr.mxu0 0.0
    %2035 = vmatpush1.msra.mxu0 0.0
    %2036 = vmatprep.subr.mxu0 0.0
    %2037 = vmatpush1.msra.mxu0 0.0
    %2038 = vmatprep.mubr.f32.mxu0 0.0
    %2039 = vmatmul.mubr.f32.gmra.mrb[0].mxu0 %v1969
    %v2040 = vpop.f32.mrb[0].mxu0
    %v2041 = vadd.f32 0.0, %v2040
    %v2042 = vpop.f32.mrb[0].mxu0
    %2043 = vmatprep.mubr.f32.mxu0 0.0
    %2044 = vmatmul.mubr.f32.gmra.mrb[0].mxu0 %v1972
    %v2045 = vpop.f32.mrb[0].mxu0
    %v2046 = vadd.f32 0.0, %v2045
    %v2047 = vpop.f32.mrb[0].mxu0
    %2048 = vdwg.mxu0
    %v2049 = vadd.f32 %v1633, %v2041
    %v2050 = vadd.f32 %v1634, %v2046
    %2051 = vrot.lane.b32.xlu0 %v146, 64
    %v2052 = vpop.permute.xlu0 %2051
    %2053 = vrot.lane.b32.xlu0 %v267, 64
    %v2054 = vpop.permute.xlu0 %2053
    %v2055 = vsel %vm398, %v2052, 0
    %v2057 = vsel %vm398, %v2054, 0
    %2059 = vmatprep.subr.mxu0 0.0
    %2060 = vmatpush1.xpose.msra.mxu0 %v2057
    %2061 = vmatprep.subr.mxu0 0.0
    %2062 = vmatpush1.xpose.msra.mxu0 0.0
    %2063 = vmatprep.subr.mxu0 0.0
    %2064 = vmatpush1.xpose.msra.mxu0 0.0
    %2065 = vmatprep.subr.mxu0 0.0
    %2066 = vmatpush1.xpose.msra.mxu0 0.0
    %2067 = vmatprep.subr.mxu0 0.0
    %2068 = vmatpush1.xpose.msra.mxu0 0.0
    %2069 = vmatprep.subr.mxu0 0.0
    %2070 = vmatpush1.xpose.msra.mxu0 0.0
    %2071 = vmatprep.subr.mxu0 0.0
    %2072 = vmatpush1.xpose.msra.mxu0 0.0
    %2073 = vmatprep.subr.mxu0 0.0
    %2074 = vmatpush1.xpose.msra.mxu0 0.0
    %2075 = vmatprep.subr.mxu0 0.0
    %2076 = vmatpush1.xpose.msra.mxu0 0.0
    %2077 = vmatprep.subr.mxu0 0.0
    %2078 = vmatpush1.xpose.msra.mxu0 0.0
    %2079 = vmatprep.subr.mxu0 0.0
    %2080 = vmatpush1.xpose.msra.mxu0 0.0
    %2081 = vmatprep.subr.mxu0 0.0
    %2082 = vmatpush1.xpose.msra.mxu0 0.0
    %2083 = vmatprep.subr.mxu0 0.0
    %2084 = vmatpush1.xpose.msra.mxu0 0.0
    %2085 = vmatprep.subr.mxu0 0.0
    %2086 = vmatpush1.xpose.msra.mxu0 0.0
    %2087 = vmatprep.subr.mxu0 0.0
    %2088 = vmatpush1.xpose.msra.mxu0 0.0
    %2089 = vmatprep.subr.mxu0 0.0
    %2090 = vmatpush1.xpose.msra.mxu0 0.0
    %2091 = vmatprep.subr.mxu0 0.0
    %2092 = vmatpush1.xpose.msra.mxu0 0.0
    %2093 = vmatprep.subr.mxu0 0.0
    %2094 = vmatpush1.xpose.msra.mxu0 0.0
    %2095 = vmatprep.subr.mxu0 0.0
    %2096 = vmatpush1.xpose.msra.mxu0 0.0
    %2097 = vmatprep.subr.mxu0 0.0
    %2098 = vmatpush1.xpose.msra.mxu0 0.0
    %2099 = vmatprep.subr.mxu0 0.0
    %2100 = vmatpush1.xpose.msra.mxu0 0.0
    %2101 = vmatprep.subr.mxu0 0.0
    %2102 = vmatpush1.xpose.msra.mxu0 0.0
    %2103 = vmatprep.subr.mxu0 0.0
    %2104 = vmatpush1.xpose.msra.mxu0 0.0
    %2105 = vmatprep.subr.mxu0 0.0
    %2106 = vmatpush1.xpose.msra.mxu0 0.0
    %2107 = vmatprep.subr.mxu0 0.0
    %2108 = vmatpush1.xpose.msra.mxu0 0.0
    %2109 = vmatprep.subr.mxu0 0.0
    %2110 = vmatpush1.xpose.msra.mxu0 0.0
    %2111 = vmatprep.subr.mxu0 0.0
    %2112 = vmatpush1.xpose.msra.mxu0 0.0
    %2113 = vmatprep.subr.mxu0 0.0
    %2114 = vmatpush1.xpose.msra.mxu0 0.0
    %2115 = vmatprep.subr.mxu0 0.0
    %2116 = vmatpush1.xpose.msra.mxu0 0.0
    %2117 = vmatprep.subr.mxu0 0.0
    %2118 = vmatpush1.xpose.msra.mxu0 0.0
    %2119 = vmatprep.subr.mxu0 0.0
    %2120 = vmatpush1.xpose.msra.mxu0 0.0
    %2121 = vmatprep.subr.mxu0 0.0
    %2122 = vmatpush1.xpose.msra.mxu0 0.0
    %2123 = vmatprep.mubr.f32.mxu0 0.0
    %2124 = vmatmul.mubr.f32.gmra.mrb[0].mxu0 %v2055
    %v2125 = vpop.f32.mrb[0].mxu0
    %v2126 = vadd.f32 0.0, %v2125
    %v2127 = vpop.f32.mrb[0].mxu0
    %2128 = vdwg.mxu0
    %2129 = vrot.lane.b32.xlu0 %v152, 64
    %v2130 = vpop.permute.xlu0 %2129
    %2131 = vrot.lane.b32.xlu0 %v273, 64
    %v2132 = vpop.permute.xlu0 %2131
    %v2133 = vsel %vm398, %v2130, 0
    %v2135 = vsel %vm398, %v2132, 0
    %2137 = vmatprep.subr.mxu0 0.0
    %2138 = vmatpush1.xpose.msra.mxu0 %v2135
    %2139 = vmatprep.subr.mxu0 0.0
    %2140 = vmatpush1.xpose.msra.mxu0 0.0
    %2141 = vmatprep.subr.mxu0 0.0
    %2142 = vmatpush1.xpose.msra.mxu0 0.0
    %2143 = vmatprep.subr.mxu0 0.0
    %2144 = vmatpush1.xpose.msra.mxu0 0.0
    %2145 = vmatprep.subr.mxu0 0.0
    %2146 = vmatpush1.xpose.msra.mxu0 0.0
    %2147 = vmatprep.subr.mxu0 0.0
    %2148 = vmatpush1.xpose.msra.mxu0 0.0
    %2149 = vmatprep.subr.mxu0 0.0
    %2150 = vmatpush1.xpose.msra.mxu0 0.0
    %2151 = vmatprep.subr.mxu0 0.0
    %2152 = vmatpush1.xpose.msra.mxu0 0.0
    %2153 = vmatprep.subr.mxu0 0.0
    %2154 = vmatpush1.xpose.msra.mxu0 0.0
    %2155 = vmatprep.subr.mxu0 0.0
    %2156 = vmatpush1.xpose.msra.mxu0 0.0
    %2157 = vmatprep.subr.mxu0 0.0
    %2158 = vmatpush1.xpose.msra.mxu0 0.0
    %2159 = vmatprep.subr.mxu0 0.0
    %2160 = vmatpush1.xpose.msra.mxu0 0.0
    %2161 = vmatprep.subr.mxu0 0.0
    %2162 = vmatpush1.xpose.msra.mxu0 0.0
    %2163 = vmatprep.subr.mxu0 0.0
    %2164 = vmatpush1.xpose.msra.mxu0 0.0
    %2165 = vmatprep.subr.mxu0 0.0
    %2166 = vmatpush1.xpose.msra.mxu0 0.0
    %2167 = vmatprep.subr.mxu0 0.0
    %2168 = vmatpush1.xpose.msra.mxu0 0.0
    %2169 = vmatprep.subr.mxu0 0.0
    %2170 = vmatpush1.xpose.msra.mxu0 0.0
    %2171 = vmatprep.subr.mxu0 0.0
    %2172 = vmatpush1.xpose.msra.mxu0 0.0
    %2173 = vmatprep.subr.mxu0 0.0
    %2174 = vmatpush1.xpose.msra.mxu0 0.0
    %2175 = vmatprep.subr.mxu0 0.0
    %2176 = vmatpush1.xpose.msra.mxu0 0.0
    %2177 = vmatprep.subr.mxu0 0.0
    %2178 = vmatpush1.xpose.msra.mxu0 0.0
    %2179 = vmatprep.subr.mxu0 0.0
    %2180 = vmatpush1.xpose.msra.mxu0 0.0
    %2181 = vmatprep.subr.mxu0 0.0
    %2182 = vmatpush1.xpose.msra.mxu0 0.0
    %2183 = vmatprep.subr.mxu0 0.0
    %2184 = vmatpush1.xpose.msra.mxu0 0.0
    %2185 = vmatprep.subr.mxu0 0.0
    %2186 = vmatpush1.xpose.msra.mxu0 0.0
    %2187 = vmatprep.subr.mxu0 0.0
    %2188 = vmatpush1.xpose.msra.mxu0 0.0
    %2189 = vmatprep.subr.mxu0 0.0
    %2190 = vmatpush1.xpose.msra.mxu0 0.0
    %2191 = vmatprep.subr.mxu0 0.0
    %2192 = vmatpush1.xpose.msra.mxu0 0.0
    %2193 = vmatprep.subr.mxu0 0.0
    %2194 = vmatpush1.xpose.msra.mxu0 0.0
    %2195 = vmatprep.subr.mxu0 0.0
    %2196 = vmatpush1.xpose.msra.mxu0 0.0
    %2197 = vmatprep.subr.mxu0 0.0
    %2198 = vmatpush1.xpose.msra.mxu0 0.0
    %2199 = vmatprep.subr.mxu0 0.0
    %2200 = vmatpush1.xpose.msra.mxu0 0.0
    %2201 = vmatprep.mubr.f32.mxu0 0.0
    %2202 = vmatmul.mubr.f32.gmra.mrb[0].mxu0 %v2133
    %v2203 = vpop.f32.mrb[0].mxu0
    %v2204 = vadd.f32 0.0, %v2203
    %v2205 = vpop.f32.mrb[0].mxu0
    %2206 = vdwg.mxu0
    %v2207 = vsel %vm551, %v2126, -inf
    %2208 = vmax.xlane.f32.xlu0 %v2207
    %v2209 = vpop.xlane.xlu0 %2208
    %v2210 = vsel %vm551, %v2204, -inf
    %2211 = vmax.xlane.f32.xlu0 %v2210
    %v2212 = vpop.xlane.xlu0 %2211
    %v2213 = vsub.f32 %v2126, %v2209
    %v2214 = vsub.f32 %v2204, %v2212
    %v2215 = vmul.f32 %v2213, 1.442695
    %v2216 = vpow.pop %v2215
    %v2217 = vmul.f32 %v2214, 1.442695
    %v2218 = vpow.pop %v2217
    %v2219 = vsel %vm551, %v2216, 0.0
    %2220 = vadd.xlane.f32.xlu0 %v2219
    %v2221 = vpop.xlane.xlu0 %2220
    %v2222 = vsel %vm551, %v2218, 0.0
    %2223 = vadd.xlane.f32.xlu0 %v2222
    %v2224 = vpop.xlane.xlu0 %2223
    %v2225 = vrcp.pop %v2221
    %v2226 = vrcp.pop %v2224
    %v2227 = vmul.f32 %v2216, %v2225
    %v2228 = vmul.f32 %v2218, %v2226
    %2229 = vrot.lane.b32.xlu0 %v388, 64
    %v2230 = vpop.permute.xlu0 %2229
    %v2233 = vsel %vm551, %v2227, 0
    %2235 = vmatprep.subr.mxu0 0.0
    %2236 = vmatpush1.msra.mxu0 %v2230
    %2237 = vmatprep.subr.mxu0 0.0
    %2238 = vmatpush1.msra.mxu0 0.0
    %2239 = vmatprep.subr.mxu0 0.0
    %2240 = vmatpush1.msra.mxu0 0.0
    %2241 = vmatprep.subr.mxu0 0.0
    %2242 = vmatpush1.msra.mxu0 0.0
    %2243 = vmatprep.subr.mxu0 0.0
    %2244 = vmatpush1.msra.mxu0 0.0
    %2245 = vmatprep.subr.mxu0 0.0
    %2246 = vmatpush1.msra.mxu0 0.0
    %2247 = vmatprep.subr.mxu0 0.0
    %2248 = vmatpush1.msra.mxu0 0.0
    %2249 = vmatprep.subr.mxu0 0.0
    %2250 = vmatpush1.msra.mxu0 0.0
    %2251 = vmatprep.subr.mxu0 0.0
    %2252 = vmatpush1.msra.mxu0 0.0
    %2253 = vmatprep.subr.mxu0 0.0
    %2254 = vmatpush1.msra.mxu0 0.0
    %2255 = vmatprep.subr.mxu0 0.0
    %2256 = vmatpush1.msra.mxu0 0.0
    %2257 = vmatprep.subr.mxu0 0.0
    %2258 = vmatpush1.msra.mxu0 0.0
    %2259 = vmatprep.subr.mxu0 0.0
    %2260 = vmatpush1.msra.mxu0 0.0
    %2261 = vmatprep.subr.mxu0 0.0
    %2262 = vmatpush1.msra.mxu0 0.0
    %2263 = vmatprep.subr.mxu0 0.0
    %2264 = vmatpush1.msra.mxu0 0.0
    %2265 = vmatprep.subr.mxu0 0.0
    %2266 = vmatpush1.msra.mxu0 0.0
    %2267 = vmatprep.subr.mxu0 0.0
    %2268 = vmatpush1.msra.mxu0 0.0
    %2269 = vmatprep.subr.mxu0 0.0
    %2270 = vmatpush1.msra.mxu0 0.0
    %2271 = vmatprep.subr.mxu0 0.0
    %2272 = vmatpush1.msra.mxu0 0.0
    %2273 = vmatprep.subr.mxu0 0.0
    %2274 = vmatpush1.msra.mxu0 0.0
    %2275 = vmatprep.subr.mxu0 0.0
    %2276 = vmatpush1.msra.mxu0 0.0
    %2277 = vmatprep.subr.mxu0 0.0
    %2278 = vmatpush1.msra.mxu0 0.0
    %2279 = vmatprep.subr.mxu0 0.0
    %2280 = vmatpush1.msra.mxu0 0.0
    %2281 = vmatprep.subr.mxu0 0.0
    %2282 = vmatpush1.msra.mxu0 0.0
    %2283 = vmatprep.subr.mxu0 0.0
    %2284 = vmatpush1.msra.mxu0 0.0
    %2285 = vmatprep.subr.mxu0 0.0
    %2286 = vmatpush1.msra.mxu0 0.0
    %2287 = vmatprep.subr.mxu0 0.0
    %2288 = vmatpush1.msra.mxu0 0.0
    %2289 = vmatprep.subr.mxu0 0.0
    %2290 = vmatpush1.msra.mxu0 0.0
    %2291 = vmatprep.subr.mxu0 0.0
    %2292 = vmatpush1.msra.mxu0 0.0
    %2293 = vmatprep.subr.mxu0 0.0
    %2294 = vmatpush1.msra.mxu0 0.0
    %2295 = vmatprep.subr.mxu0 0.0
    %2296 = vmatpush1.msra.mxu0 0.0
    %2297 = vmatprep.subr.mxu0 0.0
    %2298 = vmatpush1.msra.mxu0 0.0
    %2299 = vmatprep.mubr.f32.mxu0 0.0
    %2300 = vmatmul.mubr.f32.gmra.mrb[0].mxu0 %v2233
    %v2301 = vpop.f32.mrb[0].mxu0
    %v2302 = vadd.f32 0.0, %v2301
    %v2303 = vpop.f32.mrb[0].mxu0
    %2304 = vdwg.mxu0
    %2305 = vrot.lane.b32.xlu0 %v394, 64
    %v2306 = vpop.permute.xlu0 %2305
    %v2309 = vsel %vm551, %v2228, 0
    %2311 = vmatprep.subr.mxu0 0.0
    %2312 = vmatpush1.msra.mxu0 %v2306
    %2313 = vmatprep.subr.mxu0 0.0
    %2314 = vmatpush1.msra.mxu0 0.0
    %2315 = vmatprep.subr.mxu0 0.0
    %2316 = vmatpush1.msra.mxu0 0.0
    %2317 = vmatprep.subr.mxu0 0.0
    %2318 = vmatpush1.msra.mxu0 0.0
    %2319 = vmatprep.subr.mxu0 0.0
    %2320 = vmatpush1.msra.mxu0 0.0
    %2321 = vmatprep.subr.mxu0 0.0
    %2322 = vmatpush1.msra.mxu0 0.0
    %2323 = vmatprep.subr.mxu0 0.0
    %2324 = vmatpush1.msra.mxu0 0.0
    %2325 = vmatprep.subr.mxu0 0.0
    %2326 = vmatpush1.msra.mxu0 0.0
    %2327 = vmatprep.subr.mxu0 0.0
    %2328 = vmatpush1.msra.mxu0 0.0
    %2329 = vmatprep.subr.mxu0 0.0
    %2330 = vmatpush1.msra.mxu0 0.0
    %2331 = vmatprep.subr.mxu0 0.0
    %2332 = vmatpush1.msra.mxu0 0.0
    %2333 = vmatprep.subr.mxu0 0.0
    %2334 = vmatpush1.msra.mxu0 0.0
    %2335 = vmatprep.subr.mxu0 0.0
    %2336 = vmatpush1.msra.mxu0 0.0
    %2337 = vmatprep.subr.mxu0 0.0
    %2338 = vmatpush1.msra.mxu0 0.0
    %2339 = vmatprep.subr.mxu0 0.0
    %2340 = vmatpush1.msra.mxu0 0.0
    %2341 = vmatprep.subr.mxu0 0.0
    %2342 = vmatpush1.msra.mxu0 0.0
    %2343 = vmatprep.subr.mxu0 0.0
    %2344 = vmatpush1.msra.mxu0 0.0
    %2345 = vmatprep.subr.mxu0 0.0
    %2346 = vmatpush1.msra.mxu0 0.0
    %2347 = vmatprep.subr.mxu0 0.0
    %2348 = vmatpush1.msra.mxu0 0.0
    %2349 = vmatprep.subr.mxu0 0.0
    %2350 = vmatpush1.msra.mxu0 0.0
    %2351 = vmatprep.subr.mxu0 0.0
    %2352 = vmatpush1.msra.mxu0 0.0
    %2353 = vmatprep.subr.mxu0 0.0
    %2354 = vmatpush1.msra.mxu0 0.0
    %2355 = vmatprep.subr.mxu0 0.0
    %2356 = vmatpush1.msra.mxu0 0.0
    %2357 = vmatprep.subr.mxu0 0.0
    %2358 = vmatpush1.msra.mxu0 0.0
    %2359 = vmatprep.subr.mxu0 0.0
    %2360 = vmatpush1.msra.mxu0 0.0
    %2361 = vmatprep.subr.mxu0 0.0
    %2362 = vmatpush1.msra.mxu0 0.0
    %2363 = vmatprep.subr.mxu0 0.0
    %2364 = vmatpush1.msra.mxu0 0.0
    %2365 = vmatprep.subr.mxu0 0.0
    %2366 = vmatpush1.msra.mxu0 0.0
    %2367 = vmatprep.subr.mxu0 0.0
    %2368 = vmatpush1.msra.mxu0 0.0
    %2369 = vmatprep.subr.mxu0 0.0
    %2370 = vmatpush1.msra.mxu0 0.0
    %2371 = vmatprep.subr.mxu0 0.0
    %2372 = vmatpush1.msra.mxu0 0.0
    %2373 = vmatprep.subr.mxu0 0.0
    %2374 = vmatpush1.msra.mxu0 0.0
    %2375 = vmatprep.mubr.f32.mxu0 0.0
    %2376 = vmatmul.mubr.f32.gmra.mrb[0].mxu0 %v2309
    %v2377 = vpop.f32.mrb[0].mxu0
    %v2378 = vadd.f32 0.0, %v2377
    %v2379 = vpop.f32.mrb[0].mxu0
    %2380 = vdwg.mxu0
    %s2381 = scalar_lea.vmem %s7, 64
    %v2382 = vld [vmem:[%s2381] sm:$0xff]
    %v2383 = vld [vmem:[%s2381 + $0x8] sm:$0xff]
    %v2385 = vsel %vm398, %v2302, 0
    %v2388 = vsel %vm398, %v2378, 0
    %2390 = vmatprep.subr.mxu0 0.0
    %2391 = vmatpush1.msra.mxu0 %v2382
    %2392 = vmatprep.subr.mxu0 0.0
    %2393 = vmatpush1.msra.mxu0 %v2383
    %2394 = vmatprep.subr.mxu0 0.0
    %2395 = vmatpush1.msra.mxu0 0.0
    %2396 = vmatprep.subr.mxu0 0.0
    %2397 = vmatpush1.msra.mxu0 0.0
    %2398 = vmatprep.subr.mxu0 0.0
    %2399 = vmatpush1.msra.mxu0 0.0
    %2400 = vmatprep.subr.mxu0 0.0
    %2401 = vmatpush1.msra.mxu0 0.0
    %2402 = vmatprep.subr.mxu0 0.0
    %2403 = vmatpush1.msra.mxu0 0.0
    %2404 = vmatprep.subr.mxu0 0.0
    %2405 = vmatpush1.msra.mxu0 0.0
    %2406 = vmatprep.subr.mxu0 0.0
    %2407 = vmatpush1.msra.mxu0 0.0
    %2408 = vmatprep.subr.mxu0 0.0
    %2409 = vmatpush1.msra.mxu0 0.0
    %2410 = vmatprep.subr.mxu0 0.0
    %2411 = vmatpush1.msra.mxu0 0.0
    %2412 = vmatprep.subr.mxu0 0.0
    %2413 = vmatpush1.msra.mxu0 0.0
    %2414 = vmatprep.subr.mxu0 0.0
    %2415 = vmatpush1.msra.mxu0 0.0
    %2416 = vmatprep.subr.mxu0 0.0
    %2417 = vmatpush1.msra.mxu0 0.0
    %2418 = vmatprep.subr.mxu0 0.0
    %2419 = vmatpush1.msra.mxu0 0.0
    %2420 = vmatprep.subr.mxu0 0.0
    %2421 = vmatpush1.msra.mxu0 0.0
    %2422 = vmatprep.subr.mxu0 0.0
    %2423 = vmatpush1.msra.mxu0 0.0
    %2424 = vmatprep.subr.mxu0 0.0
    %2425 = vmatpush1.msra.mxu0 0.0
    %2426 = vmatprep.subr.mxu0 0.0
    %2427 = vmatpush1.msra.mxu0 0.0
    %2428 = vmatprep.subr.mxu0 0.0
    %2429 = vmatpush1.msra.mxu0 0.0
    %2430 = vmatprep.subr.mxu0 0.0
    %2431 = vmatpush1.msra.mxu0 0.0
    %2432 = vmatprep.subr.mxu0 0.0
    %2433 = vmatpush1.msra.mxu0 0.0
    %2434 = vmatprep.subr.mxu0 0.0
    %2435 = vmatpush1.msra.mxu0 0.0
    %2436 = vmatprep.subr.mxu0 0.0
    %2437 = vmatpush1.msra.mxu0 0.0
    %2438 = vmatprep.subr.mxu0 0.0
    %2439 = vmatpush1.msra.mxu0 0.0
    %2440 = vmatprep.subr.mxu0 0.0
    %2441 = vmatpush1.msra.mxu0 0.0
    %2442 = vmatprep.subr.mxu0 0.0
    %2443 = vmatpush1.msra.mxu0 0.0
    %2444 = vmatprep.subr.mxu0 0.0
    %2445 = vmatpush1.msra.mxu0 0.0
    %2446 = vmatprep.subr.mxu0 0.0
    %2447 = vmatpush1.msra.mxu0 0.0
    %2448 = vmatprep.subr.mxu0 0.0
    %2449 = vmatpush1.msra.mxu0 0.0
    %2450 = vmatprep.subr.mxu0 0.0
    %2451 = vmatpush1.msra.mxu0 0.0
    %2452 = vmatprep.subr.mxu0 0.0
    %2453 = vmatpush1.msra.mxu0 0.0
    %2454 = vmatprep.mubr.f32.mxu0 0.0
    %2455 = vmatmul.mubr.f32.gmra.mrb[0].mxu0 %v2385
    %v2456 = vpop.f32.mrb[0].mxu0
    %v2457 = vadd.f32 0.0, %v2456
    %v2458 = vpop.f32.mrb[0].mxu0
    %2459 = vmatprep.mubr.f32.mxu0 0.0
    %2460 = vmatmul.mubr.f32.gmra.mrb[0].mxu0 %v2388
    %v2461 = vpop.f32.mrb[0].mxu0
    %v2462 = vadd.f32 0.0, %v2461
    %v2463 = vpop.f32.mrb[0].mxu0
    %2464 = vdwg.mxu0
    %v2465 = vadd.f32 %v2049, %v2457
    %v2466 = vadd.f32 %v2050, %v2462
    %2467 = vrot.lane.b32.xlu0 %v146, 48
    %v2468 = vpop.permute.xlu0 %2467
    %2469 = vrot.lane.b32.xlu0 %v267, 48
    %v2470 = vpop.permute.xlu0 %2469
    %v2471 = vsel %vm398, %v2468, 0
    %v2473 = vsel %vm398, %v2470, 0
    %2475 = vmatprep.subr.mxu0 0.0
    %2476 = vmatpush1.xpose.msra.mxu0 %v2473
    %2477 = vmatprep.subr.mxu0 0.0
    %2478 = vmatpush1.xpose.msra.mxu0 0.0
    %2479 = vmatprep.subr.mxu0 0.0
    %2480 = vmatpush1.xpose.msra.mxu0 0.0
    %2481 = vmatprep.subr.mxu0 0.0
    %2482 = vmatpush1.xpose.msra.mxu0 0.0
    %2483 = vmatprep.subr.mxu0 0.0
    %2484 = vmatpush1.xpose.msra.mxu0 0.0
    %2485 = vmatprep.subr.mxu0 0.0
    %2486 = vmatpush1.xpose.msra.mxu0 0.0
    %2487 = vmatprep.subr.mxu0 0.0
    %2488 = vmatpush1.xpose.msra.mxu0 0.0
    %2489 = vmatprep.subr.mxu0 0.0
    %2490 = vmatpush1.xpose.msra.mxu0 0.0
    %2491 = vmatprep.subr.mxu0 0.0
    %2492 = vmatpush1.xpose.msra.mxu0 0.0
    %2493 = vmatprep.subr.mxu0 0.0
    %2494 = vmatpush1.xpose.msra.mxu0 0.0
    %2495 = vmatprep.subr.mxu0 0.0
    %2496 = vmatpush1.xpose.msra.mxu0 0.0
    %2497 = vmatprep.subr.mxu0 0.0
    %2498 = vmatpush1.xpose.msra.mxu0 0.0
    %2499 = vmatprep.subr.mxu0 0.0
    %2500 = vmatpush1.xpose.msra.mxu0 0.0
    %2501 = vmatprep.subr.mxu0 0.0
    %2502 = vmatpush1.xpose.msra.mxu0 0.0
    %2503 = vmatprep.subr.mxu0 0.0
    %2504 = vmatpush1.xpose.msra.mxu0 0.0
    %2505 = vmatprep.subr.mxu0 0.0
    %2506 = vmatpush1.xpose.msra.mxu0 0.0
    %2507 = vmatprep.subr.mxu0 0.0
    %2508 = vmatpush1.xpose.msra.mxu0 0.0
    %2509 = vmatprep.subr.mxu0 0.0
    %2510 = vmatpush1.xpose.msra.mxu0 0.0
    %2511 = vmatprep.subr.mxu0 0.0
    %2512 = vmatpush1.xpose.msra.mxu0 0.0
    %2513 = vmatprep.subr.mxu0 0.0
    %2514 = vmatpush1.xpose.msra.mxu0 0.0
    %2515 = vmatprep.subr.mxu0 0.0
    %2516 = vmatpush1.xpose.msra.mxu0 0.0
    %2517 = vmatprep.subr.mxu0 0.0
    %2518 = vmatpush1.xpose.msra.mxu0 0.0
    %2519 = vmatprep.subr.mxu0 0.0
    %2520 = vmatpush1.xpose.msra.mxu0 0.0
    %2521 = vmatprep.subr.mxu0 0.0
    %2522 = vmatpush1.xpose.msra.mxu0 0.0
    %2523 = vmatprep.subr.mxu0 0.0
    %2524 = vmatpush1.xpose.msra.mxu0 0.0
    %2525 = vmatprep.subr.mxu0 0.0
    %2526 = vmatpush1.xpose.msra.mxu0 0.0
    %2527 = vmatprep.subr.mxu0 0.0
    %2528 = vmatpush1.xpose.msra.mxu0 0.0
    %2529 = vmatprep.subr.mxu0 0.0
    %2530 = vmatpush1.xpose.msra.mxu0 0.0
    %2531 = vmatprep.subr.mxu0 0.0
    %2532 = vmatpush1.xpose.msra.mxu0 0.0
    %2533 = vmatprep.subr.mxu0 0.0
    %2534 = vmatpush1.xpose.msra.mxu0 0.0
    %2535 = vmatprep.subr.mxu0 0.0
    %2536 = vmatpush1.xpose.msra.mxu0 0.0
    %2537 = vmatprep.subr.mxu0 0.0
    %2538 = vmatpush1.xpose.msra.mxu0 0.0
    %2539 = vmatprep.mubr.f32.mxu0 0.0
    %2540 = vmatmul.mubr.f32.gmra.mrb[0].mxu0 %v2471
    %v2541 = vpop.f32.mrb[0].mxu0
    %v2542 = vadd.f32 0.0, %v2541
    %v2543 = vpop.f32.mrb[0].mxu0
    %2544 = vdwg.mxu0
    %2545 = vrot.lane.b32.xlu0 %v152, 48
    %v2546 = vpop.permute.xlu0 %2545
    %2547 = vrot.lane.b32.xlu0 %v273, 48
    %v2548 = vpop.permute.xlu0 %2547
    %v2549 = vsel %vm398, %v2546, 0
    %v2551 = vsel %vm398, %v2548, 0
    %2553 = vmatprep.subr.mxu0 0.0
    %2554 = vmatpush1.xpose.msra.mxu0 %v2551
    %2555 = vmatprep.subr.mxu0 0.0
    %2556 = vmatpush1.xpose.msra.mxu0 0.0
    %2557 = vmatprep.subr.mxu0 0.0
    %2558 = vmatpush1.xpose.msra.mxu0 0.0
    %2559 = vmatprep.subr.mxu0 0.0
    %2560 = vmatpush1.xpose.msra.mxu0 0.0
    %2561 = vmatprep.subr.mxu0 0.0
    %2562 = vmatpush1.xpose.msra.mxu0 0.0
    %2563 = vmatprep.subr.mxu0 0.0
    %2564 = vmatpush1.xpose.msra.mxu0 0.0
    %2565 = vmatprep.subr.mxu0 0.0
    %2566 = vmatpush1.xpose.msra.mxu0 0.0
    %2567 = vmatprep.subr.mxu0 0.0
    %2568 = vmatpush1.xpose.msra.mxu0 0.0
    %2569 = vmatprep.subr.mxu0 0.0
    %2570 = vmatpush1.xpose.msra.mxu0 0.0
    %2571 = vmatprep.subr.mxu0 0.0
    %2572 = vmatpush1.xpose.msra.mxu0 0.0
    %2573 = vmatprep.subr.mxu0 0.0
    %2574 = vmatpush1.xpose.msra.mxu0 0.0
    %2575 = vmatprep.subr.mxu0 0.0
    %2576 = vmatpush1.xpose.msra.mxu0 0.0
    %2577 = vmatprep.subr.mxu0 0.0
    %2578 = vmatpush1.xpose.msra.mxu0 0.0
    %2579 = vmatprep.subr.mxu0 0.0
    %2580 = vmatpush1.xpose.msra.mxu0 0.0
    %2581 = vmatprep.subr.mxu0 0.0
    %2582 = vmatpush1.xpose.msra.mxu0 0.0
    %2583 = vmatprep.subr.mxu0 0.0
    %2584 = vmatpush1.xpose.msra.mxu0 0.0
    %2585 = vmatprep.subr.mxu0 0.0
    %2586 = vmatpush1.xpose.msra.mxu0 0.0
    %2587 = vmatprep.subr.mxu0 0.0
    %2588 = vmatpush1.xpose.msra.mxu0 0.0
    %2589 = vmatprep.subr.mxu0 0.0
    %2590 = vmatpush1.xpose.msra.mxu0 0.0
    %2591 = vmatprep.subr.mxu0 0.0
    %2592 = vmatpush1.xpose.msra.mxu0 0.0
    %2593 = vmatprep.subr.mxu0 0.0
    %2594 = vmatpush1.xpose.msra.mxu0 0.0
    %2595 = vmatprep.subr.mxu0 0.0
    %2596 = vmatpush1.xpose.msra.mxu0 0.0
    %2597 = vmatprep.subr.mxu0 0.0
    %2598 = vmatpush1.xpose.msra.mxu0 0.0
    %2599 = vmatprep.subr.mxu0 0.0
    %2600 = vmatpush1.xpose.msra.mxu0 0.0
    %2601 = vmatprep.subr.mxu0 0.0
    %2602 = vmatpush1.xpose.msra.mxu0 0.0
    %2603 = vmatprep.subr.mxu0 0.0
    %2604 = vmatpush1.xpose.msra.mxu0 0.0
    %2605 = vmatprep.subr.mxu0 0.0
    %2606 = vmatpush1.xpose.msra.mxu0 0.0
    %2607 = vmatprep.subr.mxu0 0.0
    %2608 = vmatpush1.xpose.msra.mxu0 0.0
    %2609 = vmatprep.subr.mxu0 0.0
    %2610 = vmatpush1.xpose.msra.mxu0 0.0
    %2611 = vmatprep.subr.mxu0 0.0
    %2612 = vmatpush1.xpose.msra.mxu0 0.0
    %2613 = vmatprep.subr.mxu0 0.0
    %2614 = vmatpush1.xpose.msra.mxu0 0.0
    %2615 = vmatprep.subr.mxu0 0.0
    %2616 = vmatpush1.xpose.msra.mxu0 0.0
    %2617 = vmatprep.mubr.f32.mxu0 0.0
    %2618 = vmatmul.mubr.f32.gmra.mrb[0].mxu0 %v2549
    %v2619 = vpop.f32.mrb[0].mxu0
    %v2620 = vadd.f32 0.0, %v2619
    %v2621 = vpop.f32.mrb[0].mxu0
    %2622 = vdwg.mxu0
    %v2623 = vsel %vm551, %v2542, -inf
    %2624 = vmax.xlane.f32.xlu0 %v2623
    %v2625 = vpop.xlane.xlu0 %2624
    %v2626 = vsel %vm551, %v2620, -inf
    %2627 = vmax.xlane.f32.xlu0 %v2626
    %v2628 = vpop.xlane.xlu0 %2627
    %v2629 = vsub.f32 %v2542, %v2625
    %v2630 = vsub.f32 %v2620, %v2628
    %v2631 = vmul.f32 %v2629, 1.442695
    %v2632 = vpow.pop %v2631
    %v2633 = vmul.f32 %v2630, 1.442695
    %v2634 = vpow.pop %v2633
    %v2635 = vsel %vm551, %v2632, 0.0
    %2636 = vadd.xlane.f32.xlu0 %v2635
    %v2637 = vpop.xlane.xlu0 %2636
    %v2638 = vsel %vm551, %v2634, 0.0
    %2639 = vadd.xlane.f32.xlu0 %v2638
    %v2640 = vpop.xlane.xlu0 %2639
    %v2641 = vrcp.pop %v2637
    %v2642 = vrcp.pop %v2640
    %v2643 = vmul.f32 %v2632, %v2641
    %v2644 = vmul.f32 %v2634, %v2642
    %2645 = vrot.lane.b32.xlu0 %v388, 48
    %v2646 = vpop.permute.xlu0 %2645
    %v2649 = vsel %vm551, %v2643, 0
    %2651 = vmatprep.subr.mxu0 0.0
    %2652 = vmatpush1.msra.mxu0 %v2646
    %2653 = vmatprep.subr.mxu0 0.0
    %2654 = vmatpush1.msra.mxu0 0.0
    %2655 = vmatprep.subr.mxu0 0.0
    %2656 = vmatpush1.msra.mxu0 0.0
    %2657 = vmatprep.subr.mxu0 0.0
    %2658 = vmatpush1.msra.mxu0 0.0
    %2659 = vmatprep.subr.mxu0 0.0
    %2660 = vmatpush1.msra.mxu0 0.0
    %2661 = vmatprep.subr.mxu0 0.0
    %2662 = vmatpush1.msra.mxu0 0.0
    %2663 = vmatprep.subr.mxu0 0.0
    %2664 = vmatpush1.msra.mxu0 0.0
    %2665 = vmatprep.subr.mxu0 0.0
    %2666 = vmatpush1.msra.mxu0 0.0
    %2667 = vmatprep.subr.mxu0 0.0
    %2668 = vmatpush1.msra.mxu0 0.0
    %2669 = vmatprep.subr.mxu0 0.0
    %2670 = vmatpush1.msra.mxu0 0.0
    %2671 = vmatprep.subr.mxu0 0.0
    %2672 = vmatpush1.msra.mxu0 0.0
    %2673 = vmatprep.subr.mxu0 0.0
    %2674 = vmatpush1.msra.mxu0 0.0
    %2675 = vmatprep.subr.mxu0 0.0
    %2676 = vmatpush1.msra.mxu0 0.0
    %2677 = vmatprep.subr.mxu0 0.0
    %2678 = vmatpush1.msra.mxu0 0.0
    %2679 = vmatprep.subr.mxu0 0.0
    %2680 = vmatpush1.msra.mxu0 0.0
    %2681 = vmatprep.subr.mxu0 0.0
    %2682 = vmatpush1.msra.mxu0 0.0
    %2683 = vmatprep.subr.mxu0 0.0
    %2684 = vmatpush1.msra.mxu0 0.0
    %2685 = vmatprep.subr.mxu0 0.0
    %2686 = vmatpush1.msra.mxu0 0.0
    %2687 = vmatprep.subr.mxu0 0.0
    %2688 = vmatpush1.msra.mxu0 0.0
    %2689 = vmatprep.subr.mxu0 0.0
    %2690 = vmatpush1.msra.mxu0 0.0
    %2691 = vmatprep.subr.mxu0 0.0
    %2692 = vmatpush1.msra.mxu0 0.0
    %2693 = vmatprep.subr.mxu0 0.0
    %2694 = vmatpush1.msra.mxu0 0.0
    %2695 = vmatprep.subr.mxu0 0.0
    %2696 = vmatpush1.msra.mxu0 0.0
    %2697 = vmatprep.subr.mxu0 0.0
    %2698 = vmatpush1.msra.mxu0 0.0
    %2699 = vmatprep.subr.mxu0 0.0
    %2700 = vmatpush1.msra.mxu0 0.0
    %2701 = vmatprep.subr.mxu0 0.0
    %2702 = vmatpush1.msra.mxu0 0.0
    %2703 = vmatprep.subr.mxu0 0.0
    %2704 = vmatpush1.msra.mxu0 0.0
    %2705 = vmatprep.subr.mxu0 0.0
    %2706 = vmatpush1.msra.mxu0 0.0
    %2707 = vmatprep.subr.mxu0 0.0
    %2708 = vmatpush1.msra.mxu0 0.0
    %2709 = vmatprep.subr.mxu0 0.0
    %2710 = vmatpush1.msra.mxu0 0.0
    %2711 = vmatprep.subr.mxu0 0.0
    %2712 = vmatpush1.msra.mxu0 0.0
    %2713 = vmatprep.subr.mxu0 0.0
    %2714 = vmatpush1.msra.mxu0 0.0
    %2715 = vmatprep.mubr.f32.mxu0 0.0
    %2716 = vmatmul.mubr.f32.gmra.mrb[0].mxu0 %v2649
    %v2717 = vpop.f32.mrb[0].mxu0
    %v2718 = vadd.f32 0.0, %v2717
    %v2719 = vpop.f32.mrb[0].mxu0
    %2720 = vdwg.mxu0
    %2721 = vrot.lane.b32.xlu0 %v394, 48
    %v2722 = vpop.permute.xlu0 %2721
    %v2725 = vsel %vm551, %v2644, 0
    %2727 = vmatprep.subr.mxu0 0.0
    %2728 = vmatpush1.msra.mxu0 %v2722
    %2729 = vmatprep.subr.mxu0 0.0
    %2730 = vmatpush1.msra.mxu0 0.0
    %2731 = vmatprep.subr.mxu0 0.0
    %2732 = vmatpush1.msra.mxu0 0.0
    %2733 = vmatprep.subr.mxu0 0.0
    %2734 = vmatpush1.msra.mxu0 0.0
    %2735 = vmatprep.subr.mxu0 0.0
    %2736 = vmatpush1.msra.mxu0 0.0
    %2737 = vmatprep.subr.mxu0 0.0
    %2738 = vmatpush1.msra.mxu0 0.0
    %2739 = vmatprep.subr.mxu0 0.0
    %2740 = vmatpush1.msra.mxu0 0.0
    %2741 = vmatprep.subr.mxu0 0.0
    %2742 = vmatpush1.msra.mxu0 0.0
    %2743 = vmatprep.subr.mxu0 0.0
    %2744 = vmatpush1.msra.mxu0 0.0
    %2745 = vmatprep.subr.mxu0 0.0
    %2746 = vmatpush1.msra.mxu0 0.0
    %2747 = vmatprep.subr.mxu0 0.0
    %2748 = vmatpush1.msra.mxu0 0.0
    %2749 = vmatprep.subr.mxu0 0.0
    %2750 = vmatpush1.msra.mxu0 0.0
    %2751 = vmatprep.subr.mxu0 0.0
    %2752 = vmatpush1.msra.mxu0 0.0
    %2753 = vmatprep.subr.mxu0 0.0
    %2754 = vmatpush1.msra.mxu0 0.0
    %2755 = vmatprep.subr.mxu0 0.0
    %2756 = vmatpush1.msra.mxu0 0.0
    %2757 = vmatprep.subr.mxu0 0.0
    %2758 = vmatpush1.msra.mxu0 0.0
    %2759 = vmatprep.subr.mxu0 0.0
    %2760 = vmatpush1.msra.mxu0 0.0
    %2761 = vmatprep.subr.mxu0 0.0
    %2762 = vmatpush1.msra.mxu0 0.0
    %2763 = vmatprep.subr.mxu0 0.0
    %2764 = vmatpush1.msra.mxu0 0.0
    %2765 = vmatprep.subr.mxu0 0.0
    %2766 = vmatpush1.msra.mxu0 0.0
    %2767 = vmatprep.subr.mxu0 0.0
    %2768 = vmatpush1.msra.mxu0 0.0
    %2769 = vmatprep.subr.mxu0 0.0
    %2770 = vmatpush1.msra.mxu0 0.0
    %2771 = vmatprep.subr.mxu0 0.0
    %2772 = vmatpush1.msra.mxu0 0.0
    %2773 = vmatprep.subr.mxu0 0.0
    %2774 = vmatpush1.msra.mxu0 0.0
    %2775 = vmatprep.subr.mxu0 0.0
    %2776 = vmatpush1.msra.mxu0 0.0
    %2777 = vmatprep.subr.mxu0 0.0
    %2778 = vmatpush1.msra.mxu0 0.0
    %2779 = vmatprep.subr.mxu0 0.0
    %2780 = vmatpush1.msra.mxu0 0.0
    %2781 = vmatprep.subr.mxu0 0.0
    %2782 = vmatpush1.msra.mxu0 0.0
    %2783 = vmatprep.subr.mxu0 0.0
    %2784 = vmatpush1.msra.mxu0 0.0
    %2785 = vmatprep.subr.mxu0 0.0
    %2786 = vmatpush1.msra.mxu0 0.0
    %2787 = vmatprep.subr.mxu0 0.0
    %2788 = vmatpush1.msra.mxu0 0.0
    %2789 = vmatprep.subr.mxu0 0.0
    %2790 = vmatpush1.msra.mxu0 0.0
    %2791 = vmatprep.mubr.f32.mxu0 0.0
    %2792 = vmatmul.mubr.f32.gmra.mrb[0].mxu0 %v2725
    %v2793 = vpop.f32.mrb[0].mxu0
    %v2794 = vadd.f32 0.0, %v2793
    %v2795 = vpop.f32.mrb[0].mxu0
    %2796 = vdwg.mxu0
    %s2797 = scalar_lea.vmem %s7, 80
    %v2798 = vld [vmem:[%s2797] sm:$0xff]
    %v2799 = vld [vmem:[%s2797 + $0x8] sm:$0xff]
    %v2801 = vsel %vm398, %v2718, 0
    %v2804 = vsel %vm398, %v2794, 0
    %2806 = vmatprep.subr.mxu0 0.0
    %2807 = vmatpush1.msra.mxu0 %v2798
    %2808 = vmatprep.subr.mxu0 0.0
    %2809 = vmatpush1.msra.mxu0 %v2799
    %2810 = vmatprep.subr.mxu0 0.0
    %2811 = vmatpush1.msra.mxu0 0.0
    %2812 = vmatprep.subr.mxu0 0.0
    %2813 = vmatpush1.msra.mxu0 0.0
    %2814 = vmatprep.subr.mxu0 0.0
    %2815 = vmatpush1.msra.mxu0 0.0
    %2816 = vmatprep.subr.mxu0 0.0
    %2817 = vmatpush1.msra.mxu0 0.0
    %2818 = vmatprep.subr.mxu0 0.0
    %2819 = vmatpush1.msra.mxu0 0.0
    %2820 = vmatprep.subr.mxu0 0.0
    %2821 = vmatpush1.msra.mxu0 0.0
    %2822 = vmatprep.subr.mxu0 0.0
    %2823 = vmatpush1.msra.mxu0 0.0
    %2824 = vmatprep.subr.mxu0 0.0
    %2825 = vmatpush1.msra.mxu0 0.0
    %2826 = vmatprep.subr.mxu0 0.0
    %2827 = vmatpush1.msra.mxu0 0.0
    %2828 = vmatprep.subr.mxu0 0.0
    %2829 = vmatpush1.msra.mxu0 0.0
    %2830 = vmatprep.subr.mxu0 0.0
    %2831 = vmatpush1.msra.mxu0 0.0
    %2832 = vmatprep.subr.mxu0 0.0
    %2833 = vmatpush1.msra.mxu0 0.0
    %2834 = vmatprep.subr.mxu0 0.0
    %2835 = vmatpush1.msra.mxu0 0.0
    %2836 = vmatprep.subr.mxu0 0.0
    %2837 = vmatpush1.msra.mxu0 0.0
    %2838 = vmatprep.subr.mxu0 0.0
    %2839 = vmatpush1.msra.mxu0 0.0
    %2840 = vmatprep.subr.mxu0 0.0
    %2841 = vmatpush1.msra.mxu0 0.0
    %2842 = vmatprep.subr.mxu0 0.0
    %2843 = vmatpush1.msra.mxu0 0.0
    %2844 = vmatprep.subr.mxu0 0.0
    %2845 = vmatpush1.msra.mxu0 0.0
    %2846 = vmatprep.subr.mxu0 0.0
    %2847 = vmatpush1.msra.mxu0 0.0
    %2848 = vmatprep.subr.mxu0 0.0
    %2849 = vmatpush1.msra.mxu0 0.0
    %2850 = vmatprep.subr.mxu0 0.0
    %2851 = vmatpush1.msra.mxu0 0.0
    %2852 = vmatprep.subr.mxu0 0.0
    %2853 = vmatpush1.msra.mxu0 0.0
    %2854 = vmatprep.subr.mxu0 0.0
    %2855 = vmatpush1.msra.mxu0 0.0
    %2856 = vmatprep.subr.mxu0 0.0
    %2857 = vmatpush1.msra.mxu0 0.0
    %2858 = vmatprep.subr.mxu0 0.0
    %2859 = vmatpush1.msra.mxu0 0.0
    %2860 = vmatprep.subr.mxu0 0.0
    %2861 = vmatpush1.msra.mxu0 0.0
    %2862 = vmatprep.subr.mxu0 0.0
    %2863 = vmatpush1.msra.mxu0 0.0
    %2864 = vmatprep.subr.mxu0 0.0
    %2865 = vmatpush1.msra.mxu0 0.0
    %2866 = vmatprep.subr.mxu0 0.0
    %2867 = vmatpush1.msra.mxu0 0.0
    %2868 = vmatprep.subr.mxu0 0.0
    %2869 = vmatpush1.msra.mxu0 0.0
    %2870 = vmatprep.mubr.f32.mxu0 0.0
    %2871 = vmatmul.mubr.f32.gmra.mrb[0].mxu0 %v2801
    %v2872 = vpop.f32.mrb[0].mxu0
    %v2873 = vadd.f32 0.0, %v2872
    %v2874 = vpop.f32.mrb[0].mxu0
    %2875 = vmatprep.mubr.f32.mxu0 0.0
    %2876 = vmatmul.mubr.f32.gmra.mrb[0].mxu0 %v2804
    %v2877 = vpop.f32.mrb[0].mxu0
    %v2878 = vadd.f32 0.0, %v2877
    %v2879 = vpop.f32.mrb[0].mxu0
    %2880 = vdwg.mxu0
    %v2881 = vadd.f32 %v2465, %v2873
    %v2882 = vadd.f32 %v2466, %v2878
    %2883 = vrot.lane.b32.xlu0 %v146, 32
    %v2884 = vpop.permute.xlu0 %2883
    %2885 = vrot.lane.b32.xlu0 %v267, 32
    %v2886 = vpop.permute.xlu0 %2885
    %v2887 = vsel %vm398, %v2884, 0
    %v2889 = vsel %vm398, %v2886, 0
    %2891 = vmatprep.subr.mxu0 0.0
    %2892 = vmatpush1.xpose.msra.mxu0 %v2889
    %2893 = vmatprep.subr.mxu0 0.0
    %2894 = vmatpush1.xpose.msra.mxu0 0.0
    %2895 = vmatprep.subr.mxu0 0.0
    %2896 = vmatpush1.xpose.msra.mxu0 0.0
    %2897 = vmatprep.subr.mxu0 0.0
    %2898 = vmatpush1.xpose.msra.mxu0 0.0
    %2899 = vmatprep.subr.mxu0 0.0
    %2900 = vmatpush1.xpose.msra.mxu0 0.0
    %2901 = vmatprep.subr.mxu0 0.0
    %2902 = vmatpush1.xpose.msra.mxu0 0.0
    %2903 = vmatprep.subr.mxu0 0.0
    %2904 = vmatpush1.xpose.msra.mxu0 0.0
    %2905 = vmatprep.subr.mxu0 0.0
    %2906 = vmatpush1.xpose.msra.mxu0 0.0
    %2907 = vmatprep.subr.mxu0 0.0
    %2908 = vmatpush1.xpose.msra.mxu0 0.0
    %2909 = vmatprep.subr.mxu0 0.0
    %2910 = vmatpush1.xpose.msra.mxu0 0.0
    %2911 = vmatprep.subr.mxu0 0.0
    %2912 = vmatpush1.xpose.msra.mxu0 0.0
    %2913 = vmatprep.subr.mxu0 0.0
    %2914 = vmatpush1.xpose.msra.mxu0 0.0
    %2915 = vmatprep.subr.mxu0 0.0
    %2916 = vmatpush1.xpose.msra.mxu0 0.0
    %2917 = vmatprep.subr.mxu0 0.0
    %2918 = vmatpush1.xpose.msra.mxu0 0.0
    %2919 = vmatprep.subr.mxu0 0.0
    %2920 = vmatpush1.xpose.msra.mxu0 0.0
    %2921 = vmatprep.subr.mxu0 0.0
    %2922 = vmatpush1.xpose.msra.mxu0 0.0
    %2923 = vmatprep.subr.mxu0 0.0
    %2924 = vmatpush1.xpose.msra.mxu0 0.0
    %2925 = vmatprep.subr.mxu0 0.0
    %2926 = vmatpush1.xpose.msra.mxu0 0.0
    %2927 = vmatprep.subr.mxu0 0.0
    %2928 = vmatpush1.xpose.msra.mxu0 0.0
    %2929 = vmatprep.subr.mxu0 0.0
    %2930 = vmatpush1.xpose.msra.mxu0 0.0
    %2931 = vmatprep.subr.mxu0 0.0
    %2932 = vmatpush1.xpose.msra.mxu0 0.0
    %2933 = vmatprep.subr.mxu0 0.0
    %2934 = vmatpush1.xpose.msra.mxu0 0.0
    %2935 = vmatprep.subr.mxu0 0.0
    %2936 = vmatpush1.xpose.msra.mxu0 0.0
    %2937 = vmatprep.subr.mxu0 0.0
    %2938 = vmatpush1.xpose.msra.mxu0 0.0
    %2939 = vmatprep.subr.mxu0 0.0
    %2940 = vmatpush1.xpose.msra.mxu0 0.0
    %2941 = vmatprep.subr.mxu0 0.0
    %2942 = vmatpush1.xpose.msra.mxu0 0.0
    %2943 = vmatprep.subr.mxu0 0.0
    %2944 = vmatpush1.xpose.msra.mxu0 0.0
    %2945 = vmatprep.subr.mxu0 0.0
    %2946 = vmatpush1.xpose.msra.mxu0 0.0
    %2947 = vmatprep.subr.mxu0 0.0
    %2948 = vmatpush1.xpose.msra.mxu0 0.0
    %2949 = vmatprep.subr.mxu0 0.0
    %2950 = vmatpush1.xpose.msra.mxu0 0.0
    %2951 = vmatprep.subr.mxu0 0.0
    %2952 = vmatpush1.xpose.msra.mxu0 0.0
    %2953 = vmatprep.subr.mxu0 0.0
    %2954 = vmatpush1.xpose.msra.mxu0 0.0
    %2955 = vmatprep.mubr.f32.mxu0 0.0
    %2956 = vmatmul.mubr.f32.gmra.mrb[0].mxu0 %v2887
    %v2957 = vpop.f32.mrb[0].mxu0
    %v2958 = vadd.f32 0.0, %v2957
    %v2959 = vpop.f32.mrb[0].mxu0
    %2960 = vdwg.mxu0
    %2961 = vrot.lane.b32.xlu0 %v152, 32
    %v2962 = vpop.permute.xlu0 %2961
    %2963 = vrot.lane.b32.xlu0 %v273, 32
    %v2964 = vpop.permute.xlu0 %2963
    %v2965 = vsel %vm398, %v2962, 0
    %v2967 = vsel %vm398, %v2964, 0
    %2969 = vmatprep.subr.mxu0 0.0
    %2970 = vmatpush1.xpose.msra.mxu0 %v2967
    %2971 = vmatprep.subr.mxu0 0.0
    %2972 = vmatpush1.xpose.msra.mxu0 0.0
    %2973 = vmatprep.subr.mxu0 0.0
    %2974 = vmatpush1.xpose.msra.mxu0 0.0
    %2975 = vmatprep.subr.mxu0 0.0
    %2976 = vmatpush1.xpose.msra.mxu0 0.0
    %2977 = vmatprep.subr.mxu0 0.0
    %2978 = vmatpush1.xpose.msra.mxu0 0.0
    %2979 = vmatprep.subr.mxu0 0.0
    %2980 = vmatpush1.xpose.msra.mxu0 0.0
    %2981 = vmatprep.subr.mxu0 0.0
    %2982 = vmatpush1.xpose.msra.mxu0 0.0
    %2983 = vmatprep.subr.mxu0 0.0
    %2984 = vmatpush1.xpose.msra.mxu0 0.0
    %2985 = vmatprep.subr.mxu0 0.0
    %2986 = vmatpush1.xpose.msra.mxu0 0.0
    %2987 = vmatprep.subr.mxu0 0.0
    %2988 = vmatpush1.xpose.msra.mxu0 0.0
    %2989 = vmatprep.subr.mxu0 0.0
    %2990 = vmatpush1.xpose.msra.mxu0 0.0
    %2991 = vmatprep.subr.mxu0 0.0
    %2992 = vmatpush1.xpose.msra.mxu0 0.0
    %2993 = vmatprep.subr.mxu0 0.0
    %2994 = vmatpush1.xpose.msra.mxu0 0.0
    %2995 = vmatprep.subr.mxu0 0.0
    %2996 = vmatpush1.xpose.msra.mxu0 0.0
    %2997 = vmatprep.subr.mxu0 0.0
    %2998 = vmatpush1.xpose.msra.mxu0 0.0
    %2999 = vmatprep.subr.mxu0 0.0
    %3000 = vmatpush1.xpose.msra.mxu0 0.0
    %3001 = vmatprep.subr.mxu0 0.0
    %3002 = vmatpush1.xpose.msra.mxu0 0.0
    %3003 = vmatprep.subr.mxu0 0.0
    %3004 = vmatpush1.xpose.msra.mxu0 0.0
    %3005 = vmatprep.subr.mxu0 0.0
    %3006 = vmatpush1.xpose.msra.mxu0 0.0
    %3007 = vmatprep.subr.mxu0 0.0
    %3008 = vmatpush1.xpose.msra.mxu0 0.0
    %3009 = vmatprep.subr.mxu0 0.0
    %3010 = vmatpush1.xpose.msra.mxu0 0.0
    %3011 = vmatprep.subr.mxu0 0.0
    %3012 = vmatpush1.xpose.msra.mxu0 0.0
    %3013 = vmatprep.subr.mxu0 0.0
    %3014 = vmatpush1.xpose.msra.mxu0 0.0
    %3015 = vmatprep.subr.mxu0 0.0
    %3016 = vmatpush1.xpose.msra.mxu0 0.0
    %3017 = vmatprep.subr.mxu0 0.0
    %3018 = vmatpush1.xpose.msra.mxu0 0.0
    %3019 = vmatprep.subr.mxu0 0.0
    %3020 = vmatpush1.xpose.msra.mxu0 0.0
    %3021 = vmatprep.subr.mxu0 0.0
    %3022 = vmatpush1.xpose.msra.mxu0 0.0
    %3023 = vmatprep.subr.mxu0 0.0
    %3024 = vmatpush1.xpose.msra.mxu0 0.0
    %3025 = vmatprep.subr.mxu0 0.0
    %3026 = vmatpush1.xpose.msra.mxu0 0.0
    %3027 = vmatprep.subr.mxu0 0.0
    %3028 = vmatpush1.xpose.msra.mxu0 0.0
    %3029 = vmatprep.subr.mxu0 0.0
    %3030 = vmatpush1.xpose.msra.mxu0 0.0
    %3031 = vmatprep.subr.mxu0 0.0
    %3032 = vmatpush1.xpose.msra.mxu0 0.0
    %3033 = vmatprep.mubr.f32.mxu0 0.0
    %3034 = vmatmul.mubr.f32.gmra.mrb[0].mxu0 %v2965
    %v3035 = vpop.f32.mrb[0].mxu0
    %v3036 = vadd.f32 0.0, %v3035
    %v3037 = vpop.f32.mrb[0].mxu0
    %3038 = vdwg.mxu0
    %v3039 = vsel %vm551, %v2958, -inf
    %3040 = vmax.xlane.f32.xlu0 %v3039
    %v3041 = vpop.xlane.xlu0 %3040
    %v3042 = vsel %vm551, %v3036, -inf
    %3043 = vmax.xlane.f32.xlu0 %v3042
    %v3044 = vpop.xlane.xlu0 %3043
    %v3045 = vsub.f32 %v2958, %v3041
    %v3046 = vsub.f32 %v3036, %v3044
    %v3047 = vmul.f32 %v3045, 1.442695
    %v3048 = vpow.pop %v3047
    %v3049 = vmul.f32 %v3046, 1.442695
    %v3050 = vpow.pop %v3049
    %v3051 = vsel %vm551, %v3048, 0.0
    %3052 = vadd.xlane.f32.xlu0 %v3051
    %v3053 = vpop.xlane.xlu0 %3052
    %v3054 = vsel %vm551, %v3050, 0.0
    %3055 = vadd.xlane.f32.xlu0 %v3054
    %v3056 = vpop.xlane.xlu0 %3055
    %v3057 = vrcp.pop %v3053
    %v3058 = vrcp.pop %v3056
    %v3059 = vmul.f32 %v3048, %v3057
    %v3060 = vmul.f32 %v3050, %v3058
    %3061 = vrot.lane.b32.xlu0 %v388, 32
    %v3062 = vpop.permute.xlu0 %3061
    %v3065 = vsel %vm551, %v3059, 0
    %3067 = vmatprep.subr.mxu0 0.0
    %3068 = vmatpush1.msra.mxu0 %v3062
    %3069 = vmatprep.subr.mxu0 0.0
    %3070 = vmatpush1.msra.mxu0 0.0
    %3071 = vmatprep.subr.mxu0 0.0
    %3072 = vmatpush1.msra.mxu0 0.0
    %3073 = vmatprep.subr.mxu0 0.0
    %3074 = vmatpush1.msra.mxu0 0.0
    %3075 = vmatprep.subr.mxu0 0.0
    %3076 = vmatpush1.msra.mxu0 0.0
    %3077 = vmatprep.subr.mxu0 0.0
    %3078 = vmatpush1.msra.mxu0 0.0
    %3079 = vmatprep.subr.mxu0 0.0
    %3080 = vmatpush1.msra.mxu0 0.0
    %3081 = vmatprep.subr.mxu0 0.0
    %3082 = vmatpush1.msra.mxu0 0.0
    %3083 = vmatprep.subr.mxu0 0.0
    %3084 = vmatpush1.msra.mxu0 0.0
    %3085 = vmatprep.subr.mxu0 0.0
    %3086 = vmatpush1.msra.mxu0 0.0
    %3087 = vmatprep.subr.mxu0 0.0
    %3088 = vmatpush1.msra.mxu0 0.0
    %3089 = vmatprep.subr.mxu0 0.0
    %3090 = vmatpush1.msra.mxu0 0.0
    %3091 = vmatprep.subr.mxu0 0.0
    %3092 = vmatpush1.msra.mxu0 0.0
    %3093 = vmatprep.subr.mxu0 0.0
    %3094 = vmatpush1.msra.mxu0 0.0
    %3095 = vmatprep.subr.mxu0 0.0
    %3096 = vmatpush1.msra.mxu0 0.0
    %3097 = vmatprep.subr.mxu0 0.0
    %3098 = vmatpush1.msra.mxu0 0.0
    %3099 = vmatprep.subr.mxu0 0.0
    %3100 = vmatpush1.msra.mxu0 0.0
    %3101 = vmatprep.subr.mxu0 0.0
    %3102 = vmatpush1.msra.mxu0 0.0
    %3103 = vmatprep.subr.mxu0 0.0
    %3104 = vmatpush1.msra.mxu0 0.0
    %3105 = vmatprep.subr.mxu0 0.0
    %3106 = vmatpush1.msra.mxu0 0.0
    %3107 = vmatprep.subr.mxu0 0.0
    %3108 = vmatpush1.msra.mxu0 0.0
    %3109 = vmatprep.subr.mxu0 0.0
    %3110 = vmatpush1.msra.mxu0 0.0
    %3111 = vmatprep.subr.mxu0 0.0
    %3112 = vmatpush1.msra.mxu0 0.0
    %3113 = vmatprep.subr.mxu0 0.0
    %3114 = vmatpush1.msra.mxu0 0.0
    %3115 = vmatprep.subr.mxu0 0.0
    %3116 = vmatpush1.msra.mxu0 0.0
    %3117 = vmatprep.subr.mxu0 0.0
    %3118 = vmatpush1.msra.mxu0 0.0
    %3119 = vmatprep.subr.mxu0 0.0
    %3120 = vmatpush1.msra.mxu0 0.0
    %3121 = vmatprep.subr.mxu0 0.0
    %3122 = vmatpush1.msra.mxu0 0.0
    %3123 = vmatprep.subr.mxu0 0.0
    %3124 = vmatpush1.msra.mxu0 0.0
    %3125 = vmatprep.subr.mxu0 0.0
    %3126 = vmatpush1.msra.mxu0 0.0
    %3127 = vmatprep.subr.mxu0 0.0
    %3128 = vmatpush1.msra.mxu0 0.0
    %3129 = vmatprep.subr.mxu0 0.0
    %3130 = vmatpush1.msra.mxu0 0.0
    %3131 = vmatprep.mubr.f32.mxu0 0.0
    %3132 = vmatmul.mubr.f32.gmra.mrb[0].mxu0 %v3065
    %v3133 = vpop.f32.mrb[0].mxu0
    %v3134 = vadd.f32 0.0, %v3133
    %v3135 = vpop.f32.mrb[0].mxu0
    %3136 = vdwg.mxu0
    %3137 = vrot.lane.b32.xlu0 %v394, 32
    %v3138 = vpop.permute.xlu0 %3137
    %v3141 = vsel %vm551, %v3060, 0
    %3143 = vmatprep.subr.mxu0 0.0
    %3144 = vmatpush1.msra.mxu0 %v3138
    %3145 = vmatprep.subr.mxu0 0.0
    %3146 = vmatpush1.msra.mxu0 0.0
    %3147 = vmatprep.subr.mxu0 0.0
    %3148 = vmatpush1.msra.mxu0 0.0
    %3149 = vmatprep.subr.mxu0 0.0
    %3150 = vmatpush1.msra.mxu0 0.0
    %3151 = vmatprep.subr.mxu0 0.0
    %3152 = vmatpush1.msra.mxu0 0.0
    %3153 = vmatprep.subr.mxu0 0.0
    %3154 = vmatpush1.msra.mxu0 0.0
    %3155 = vmatprep.subr.mxu0 0.0
    %3156 = vmatpush1.msra.mxu0 0.0
    %3157 = vmatprep.subr.mxu0 0.0
    %3158 = vmatpush1.msra.mxu0 0.0
    %3159 = vmatprep.subr.mxu0 0.0
    %3160 = vmatpush1.msra.mxu0 0.0
    %3161 = vmatprep.subr.mxu0 0.0
    %3162 = vmatpush1.msra.mxu0 0.0
    %3163 = vmatprep.subr.mxu0 0.0
    %3164 = vmatpush1.msra.mxu0 0.0
    %3165 = vmatprep.subr.mxu0 0.0
    %3166 = vmatpush1.msra.mxu0 0.0
    %3167 = vmatprep.subr.mxu0 0.0
    %3168 = vmatpush1.msra.mxu0 0.0
    %3169 = vmatprep.subr.mxu0 0.0
    %3170 = vmatpush1.msra.mxu0 0.0
    %3171 = vmatprep.subr.mxu0 0.0
    %3172 = vmatpush1.msra.mxu0 0.0
    %3173 = vmatprep.subr.mxu0 0.0
    %3174 = vmatpush1.msra.mxu0 0.0
    %3175 = vmatprep.subr.mxu0 0.0
    %3176 = vmatpush1.msra.mxu0 0.0
    %3177 = vmatprep.subr.mxu0 0.0
    %3178 = vmatpush1.msra.mxu0 0.0
    %3179 = vmatprep.subr.mxu0 0.0
    %3180 = vmatpush1.msra.mxu0 0.0
    %3181 = vmatprep.subr.mxu0 0.0
    %3182 = vmatpush1.msra.mxu0 0.0
    %3183 = vmatprep.subr.mxu0 0.0
    %3184 = vmatpush1.msra.mxu0 0.0
    %3185 = vmatprep.subr.mxu0 0.0
    %3186 = vmatpush1.msra.mxu0 0.0
    %3187 = vmatprep.subr.mxu0 0.0
    %3188 = vmatpush1.msra.mxu0 0.0
    %3189 = vmatprep.subr.mxu0 0.0
    %3190 = vmatpush1.msra.mxu0 0.0
    %3191 = vmatprep.subr.mxu0 0.0
    %3192 = vmatpush1.msra.mxu0 0.0
    %3193 = vmatprep.subr.mxu0 0.0
    %3194 = vmatpush1.msra.mxu0 0.0
    %3195 = vmatprep.subr.mxu0 0.0
    %3196 = vmatpush1.msra.mxu0 0.0
    %3197 = vmatprep.subr.mxu0 0.0
    %3198 = vmatpush1.msra.mxu0 0.0
    %3199 = vmatprep.subr.mxu0 0.0
    %3200 = vmatpush1.msra.mxu0 0.0
    %3201 = vmatprep.subr.mxu0 0.0
    %3202 = vmatpush1.msra.mxu0 0.0
    %3203 = vmatprep.subr.mxu0 0.0
    %3204 = vmatpush1.msra.mxu0 0.0
    %3205 = vmatprep.subr.mxu0 0.0
    %3206 = vmatpush1.msra.mxu0 0.0
    %3207 = vmatprep.mubr.f32.mxu0 0.0
    %3208 = vmatmul.mubr.f32.gmra.mrb[0].mxu0 %v3141
    %v3209 = vpop.f32.mrb[0].mxu0
    %v3210 = vadd.f32 0.0, %v3209
    %v3211 = vpop.f32.mrb[0].mxu0
    %3212 = vdwg.mxu0
    %s3213 = scalar_lea.vmem %s7, 96
    %v3214 = vld [vmem:[%s3213] sm:$0xff]
    %v3215 = vld [vmem:[%s3213 + $0x8] sm:$0xff]
    %v3217 = vsel %vm398, %v3134, 0
    %v3220 = vsel %vm398, %v3210, 0
    %3222 = vmatprep.subr.mxu0 0.0
    %3223 = vmatpush1.msra.mxu0 %v3214
    %3224 = vmatprep.subr.mxu0 0.0
    %3225 = vmatpush1.msra.mxu0 %v3215
    %3226 = vmatprep.subr.mxu0 0.0
    %3227 = vmatpush1.msra.mxu0 0.0
    %3228 = vmatprep.subr.mxu0 0.0
    %3229 = vmatpush1.msra.mxu0 0.0
    %3230 = vmatprep.subr.mxu0 0.0
    %3231 = vmatpush1.msra.mxu0 0.0
    %3232 = vmatprep.subr.mxu0 0.0
    %3233 = vmatpush1.msra.mxu0 0.0
    %3234 = vmatprep.subr.mxu0 0.0
    %3235 = vmatpush1.msra.mxu0 0.0
    %3236 = vmatprep.subr.mxu0 0.0
    %3237 = vmatpush1.msra.mxu0 0.0
    %3238 = vmatprep.subr.mxu0 0.0
    %3239 = vmatpush1.msra.mxu0 0.0
    %3240 = vmatprep.subr.mxu0 0.0
    %3241 = vmatpush1.msra.mxu0 0.0
    %3242 = vmatprep.subr.mxu0 0.0
    %3243 = vmatpush1.msra.mxu0 0.0
    %3244 = vmatprep.subr.mxu0 0.0
    %3245 = vmatpush1.msra.mxu0 0.0
    %3246 = vmatprep.subr.mxu0 0.0
    %3247 = vmatpush1.msra.mxu0 0.0
    %3248 = vmatprep.subr.mxu0 0.0
    %3249 = vmatpush1.msra.mxu0 0.0
    %3250 = vmatprep.subr.mxu0 0.0
    %3251 = vmatpush1.msra.mxu0 0.0
    %3252 = vmatprep.subr.mxu0 0.0
    %3253 = vmatpush1.msra.mxu0 0.0
    %3254 = vmatprep.subr.mxu0 0.0
    %3255 = vmatpush1.msra.mxu0 0.0
    %3256 = vmatprep.subr.mxu0 0.0
    %3257 = vmatpush1.msra.mxu0 0.0
    %3258 = vmatprep.subr.mxu0 0.0
    %3259 = vmatpush1.msra.mxu0 0.0
    %3260 = vmatprep.subr.mxu0 0.0
    %3261 = vmatpush1.msra.mxu0 0.0
    %3262 = vmatprep.subr.mxu0 0.0
    %3263 = vmatpush1.msra.mxu0 0.0
    %3264 = vmatprep.subr.mxu0 0.0
    %3265 = vmatpush1.msra.mxu0 0.0
    %3266 = vmatprep.subr.mxu0 0.0
    %3267 = vmatpush1.msra.mxu0 0.0
    %3268 = vmatprep.subr.mxu0 0.0
    %3269 = vmatpush1.msra.mxu0 0.0
    %3270 = vmatprep.subr.mxu0 0.0
    %3271 = vmatpush1.msra.mxu0 0.0
    %3272 = vmatprep.subr.mxu0 0.0
    %3273 = vmatpush1.msra.mxu0 0.0
    %3274 = vmatprep.subr.mxu0 0.0
    %3275 = vmatpush1.msra.mxu0 0.0
    %3276 = vmatprep.subr.mxu0 0.0
    %3277 = vmatpush1.msra.mxu0 0.0
    %3278 = vmatprep.subr.mxu0 0.0
    %3279 = vmatpush1.msra.mxu0 0.0
    %3280 = vmatprep.subr.mxu0 0.0
    %3281 = vmatpush1.msra.mxu0 0.0
    %3282 = vmatprep.subr.mxu0 0.0
    %3283 = vmatpush1.msra.mxu0 0.0
    %3284 = vmatprep.subr.mxu0 0.0
    %3285 = vmatpush1.msra.mxu0 0.0
    %3286 = vmatprep.mubr.f32.mxu0 0.0
    %3287 = vmatmul.mubr.f32.gmra.mrb[0].mxu0 %v3217
    %v3288 = vpop.f32.mrb[0].mxu0
    %v3289 = vadd.f32 0.0, %v3288
    %v3290 = vpop.f32.mrb[0].mxu0
    %3291 = vmatprep.mubr.f32.mxu0 0.0
    %3292 = vmatmul.mubr.f32.gmra.mrb[0].mxu0 %v3220
    %v3293 = vpop.f32.mrb[0].mxu0
    %v3294 = vadd.f32 0.0, %v3293
    %v3295 = vpop.f32.mrb[0].mxu0
    %3296 = vdwg.mxu0
    %v3297 = vadd.f32 %v2881, %v3289
    %v3298 = vadd.f32 %v2882, %v3294
    %3299 = vrot.lane.b32.xlu0 %v146, 16
    %v3300 = vpop.permute.xlu0 %3299
    %3301 = vrot.lane.b32.xlu0 %v267, 16
    %v3302 = vpop.permute.xlu0 %3301
    %v3303 = vsel %vm398, %v3300, 0
    %v3305 = vsel %vm398, %v3302, 0
    %3307 = vmatprep.subr.mxu0 0.0
    %3308 = vmatpush1.xpose.msra.mxu0 %v3305
    %3309 = vmatprep.subr.mxu0 0.0
    %3310 = vmatpush1.xpose.msra.mxu0 0.0
    %3311 = vmatprep.subr.mxu0 0.0
    %3312 = vmatpush1.xpose.msra.mxu0 0.0
    %3313 = vmatprep.subr.mxu0 0.0
    %3314 = vmatpush1.xpose.msra.mxu0 0.0
    %3315 = vmatprep.subr.mxu0 0.0
    %3316 = vmatpush1.xpose.msra.mxu0 0.0
    %3317 = vmatprep.subr.mxu0 0.0
    %3318 = vmatpush1.xpose.msra.mxu0 0.0
    %3319 = vmatprep.subr.mxu0 0.0
    %3320 = vmatpush1.xpose.msra.mxu0 0.0
    %3321 = vmatprep.subr.mxu0 0.0
    %3322 = vmatpush1.xpose.msra.mxu0 0.0
    %3323 = vmatprep.subr.mxu0 0.0
    %3324 = vmatpush1.xpose.msra.mxu0 0.0
    %3325 = vmatprep.subr.mxu0 0.0
    %3326 = vmatpush1.xpose.msra.mxu0 0.0
    %3327 = vmatprep.subr.mxu0 0.0
    %3328 = vmatpush1.xpose.msra.mxu0 0.0
    %3329 = vmatprep.subr.mxu0 0.0
    %3330 = vmatpush1.xpose.msra.mxu0 0.0
    %3331 = vmatprep.subr.mxu0 0.0
    %3332 = vmatpush1.xpose.msra.mxu0 0.0
    %3333 = vmatprep.subr.mxu0 0.0
    %3334 = vmatpush1.xpose.msra.mxu0 0.0
    %3335 = vmatprep.subr.mxu0 0.0
    %3336 = vmatpush1.xpose.msra.mxu0 0.0
    %3337 = vmatprep.subr.mxu0 0.0
    %3338 = vmatpush1.xpose.msra.mxu0 0.0
    %3339 = vmatprep.subr.mxu0 0.0
    %3340 = vmatpush1.xpose.msra.mxu0 0.0
    %3341 = vmatprep.subr.mxu0 0.0
    %3342 = vmatpush1.xpose.msra.mxu0 0.0
    %3343 = vmatprep.subr.mxu0 0.0
    %3344 = vmatpush1.xpose.msra.mxu0 0.0
    %3345 = vmatprep.subr.mxu0 0.0
    %3346 = vmatpush1.xpose.msra.mxu0 0.0
    %3347 = vmatprep.subr.mxu0 0.0
    %3348 = vmatpush1.xpose.msra.mxu0 0.0
    %3349 = vmatprep.subr.mxu0 0.0
    %3350 = vmatpush1.xpose.msra.mxu0 0.0
    %3351 = vmatprep.subr.mxu0 0.0
    %3352 = vmatpush1.xpose.msra.mxu0 0.0
    %3353 = vmatprep.subr.mxu0 0.0
    %3354 = vmatpush1.xpose.msra.mxu0 0.0
    %3355 = vmatprep.subr.mxu0 0.0
    %3356 = vmatpush1.xpose.msra.mxu0 0.0
    %3357 = vmatprep.subr.mxu0 0.0
    %3358 = vmatpush1.xpose.msra.mxu0 0.0
    %3359 = vmatprep.subr.mxu0 0.0
    %3360 = vmatpush1.xpose.msra.mxu0 0.0
    %3361 = vmatprep.subr.mxu0 0.0
    %3362 = vmatpush1.xpose.msra.mxu0 0.0
    %3363 = vmatprep.subr.mxu0 0.0
    %3364 = vmatpush1.xpose.msra.mxu0 0.0
    %3365 = vmatprep.subr.mxu0 0.0
    %3366 = vmatpush1.xpose.msra.mxu0 0.0
    %3367 = vmatprep.subr.mxu0 0.0
    %3368 = vmatpush1.xpose.msra.mxu0 0.0
    %3369 = vmatprep.subr.mxu0 0.0
    %3370 = vmatpush1.xpose.msra.mxu0 0.0
    %3371 = vmatprep.mubr.f32.mxu0 0.0
    %3372 = vmatmul.mubr.f32.gmra.mrb[0].mxu0 %v3303
    %v3373 = vpop.f32.mrb[0].mxu0
    %v3374 = vadd.f32 0.0, %v3373
    %v3375 = vpop.f32.mrb[0].mxu0
    %3376 = vdwg.mxu0
    %3377 = vrot.lane.b32.xlu0 %v152, 16
    %v3378 = vpop.permute.xlu0 %3377
    %3379 = vrot.lane.b32.xlu0 %v273, 16
    %v3380 = vpop.permute.xlu0 %3379
    %v3381 = vsel %vm398, %v3378, 0
    %v3383 = vsel %vm398, %v3380, 0
    %3385 = vmatprep.subr.mxu0 0.0
    %3386 = vmatpush1.xpose.msra.mxu0 %v3383
    %3387 = vmatprep.subr.mxu0 0.0
    %3388 = vmatpush1.xpose.msra.mxu0 0.0
    %3389 = vmatprep.subr.mxu0 0.0
    %3390 = vmatpush1.xpose.msra.mxu0 0.0
    %3391 = vmatprep.subr.mxu0 0.0
    %3392 = vmatpush1.xpose.msra.mxu0 0.0
    %3393 = vmatprep.subr.mxu0 0.0
    %3394 = vmatpush1.xpose.msra.mxu0 0.0
    %3395 = vmatprep.subr.mxu0 0.0
    %3396 = vmatpush1.xpose.msra.mxu0 0.0
    %3397 = vmatprep.subr.mxu0 0.0
    %3398 = vmatpush1.xpose.msra.mxu0 0.0
    %3399 = vmatprep.subr.mxu0 0.0
    %3400 = vmatpush1.xpose.msra.mxu0 0.0
    %3401 = vmatprep.subr.mxu0 0.0
    %3402 = vmatpush1.xpose.msra.mxu0 0.0
    %3403 = vmatprep.subr.mxu0 0.0
    %3404 = vmatpush1.xpose.msra.mxu0 0.0
    %3405 = vmatprep.subr.mxu0 0.0
    %3406 = vmatpush1.xpose.msra.mxu0 0.0
    %3407 = vmatprep.subr.mxu0 0.0
    %3408 = vmatpush1.xpose.msra.mxu0 0.0
    %3409 = vmatprep.subr.mxu0 0.0
    %3410 = vmatpush1.xpose.msra.mxu0 0.0
    %3411 = vmatprep.subr.mxu0 0.0
    %3412 = vmatpush1.xpose.msra.mxu0 0.0
    %3413 = vmatprep.subr.mxu0 0.0
    %3414 = vmatpush1.xpose.msra.mxu0 0.0
    %3415 = vmatprep.subr.mxu0 0.0
    %3416 = vmatpush1.xpose.msra.mxu0 0.0
    %3417 = vmatprep.subr.mxu0 0.0
    %3418 = vmatpush1.xpose.msra.mxu0 0.0
    %3419 = vmatprep.subr.mxu0 0.0
    %3420 = vmatpush1.xpose.msra.mxu0 0.0
    %3421 = vmatprep.subr.mxu0 0.0
    %3422 = vmatpush1.xpose.msra.mxu0 0.0
    %3423 = vmatprep.subr.mxu0 0.0
    %3424 = vmatpush1.xpose.msra.mxu0 0.0
    %3425 = vmatprep.subr.mxu0 0.0
    %3426 = vmatpush1.xpose.msra.mxu0 0.0
    %3427 = vmatprep.subr.mxu0 0.0
    %3428 = vmatpush1.xpose.msra.mxu0 0.0
    %3429 = vmatprep.subr.mxu0 0.0
    %3430 = vmatpush1.xpose.msra.mxu0 0.0
    %3431 = vmatprep.subr.mxu0 0.0
    %3432 = vmatpush1.xpose.msra.mxu0 0.0
    %3433 = vmatprep.subr.mxu0 0.0
    %3434 = vmatpush1.xpose.msra.mxu0 0.0
    %3435 = vmatprep.subr.mxu0 0.0
    %3436 = vmatpush1.xpose.msra.mxu0 0.0
    %3437 = vmatprep.subr.mxu0 0.0
    %3438 = vmatpush1.xpose.msra.mxu0 0.0
    %3439 = vmatprep.subr.mxu0 0.0
    %3440 = vmatpush1.xpose.msra.mxu0 0.0
    %3441 = vmatprep.subr.mxu0 0.0
    %3442 = vmatpush1.xpose.msra.mxu0 0.0
    %3443 = vmatprep.subr.mxu0 0.0
    %3444 = vmatpush1.xpose.msra.mxu0 0.0
    %3445 = vmatprep.subr.mxu0 0.0
    %3446 = vmatpush1.xpose.msra.mxu0 0.0
    %3447 = vmatprep.subr.mxu0 0.0
    %3448 = vmatpush1.xpose.msra.mxu0 0.0
    %3449 = vmatprep.mubr.f32.mxu0 0.0
    %3450 = vmatmul.mubr.f32.gmra.mrb[0].mxu0 %v3381
    %v3451 = vpop.f32.mrb[0].mxu0
    %v3452 = vadd.f32 0.0, %v3451
    %v3453 = vpop.f32.mrb[0].mxu0
    %3454 = vdwg.mxu0
    %v3455 = vsel %vm551, %v3374, -inf
    %3456 = vmax.xlane.f32.xlu0 %v3455
    %v3457 = vpop.xlane.xlu0 %3456
    %v3458 = vsel %vm551, %v3452, -inf
    %3459 = vmax.xlane.f32.xlu0 %v3458
    %v3460 = vpop.xlane.xlu0 %3459
    %v3461 = vsub.f32 %v3374, %v3457
    %v3462 = vsub.f32 %v3452, %v3460
    %v3463 = vmul.f32 %v3461, 1.442695
    %v3464 = vpow.pop %v3463
    %v3465 = vmul.f32 %v3462, 1.442695
    %v3466 = vpow.pop %v3465
    %v3467 = vsel %vm551, %v3464, 0.0
    %3468 = vadd.xlane.f32.xlu0 %v3467
    %v3469 = vpop.xlane.xlu0 %3468
    %v3470 = vsel %vm551, %v3466, 0.0
    %3471 = vadd.xlane.f32.xlu0 %v3470
    %v3472 = vpop.xlane.xlu0 %3471
    %v3473 = vrcp.pop %v3469
    %v3474 = vrcp.pop %v3472
    %v3475 = vmul.f32 %v3464, %v3473
    %v3476 = vmul.f32 %v3466, %v3474
    %3477 = vrot.lane.b32.xlu0 %v388, 16
    %v3478 = vpop.permute.xlu0 %3477
    %v3481 = vsel %vm551, %v3475, 0
    %3483 = vmatprep.subr.mxu0 0.0
    %3484 = vmatpush1.msra.mxu0 %v3478
    %3485 = vmatprep.subr.mxu0 0.0
    %3486 = vmatpush1.msra.mxu0 0.0
    %3487 = vmatprep.subr.mxu0 0.0
    %3488 = vmatpush1.msra.mxu0 0.0
    %3489 = vmatprep.subr.mxu0 0.0
    %3490 = vmatpush1.msra.mxu0 0.0
    %3491 = vmatprep.subr.mxu0 0.0
    %3492 = vmatpush1.msra.mxu0 0.0
    %3493 = vmatprep.subr.mxu0 0.0
    %3494 = vmatpush1.msra.mxu0 0.0
    %3495 = vmatprep.subr.mxu0 0.0
    %3496 = vmatpush1.msra.mxu0 0.0
    %3497 = vmatprep.subr.mxu0 0.0
    %3498 = vmatpush1.msra.mxu0 0.0
    %3499 = vmatprep.subr.mxu0 0.0
    %3500 = vmatpush1.msra.mxu0 0.0
    %3501 = vmatprep.subr.mxu0 0.0
    %3502 = vmatpush1.msra.mxu0 0.0
    %3503 = vmatprep.subr.mxu0 0.0
    %3504 = vmatpush1.msra.mxu0 0.0
    %3505 = vmatprep.subr.mxu0 0.0
    %3506 = vmatpush1.msra.mxu0 0.0
    %3507 = vmatprep.subr.mxu0 0.0
    %3508 = vmatpush1.msra.mxu0 0.0
    %3509 = vmatprep.subr.mxu0 0.0
    %3510 = vmatpush1.msra.mxu0 0.0
    %3511 = vmatprep.subr.mxu0 0.0
    %3512 = vmatpush1.msra.mxu0 0.0
    %3513 = vmatprep.subr.mxu0 0.0
    %3514 = vmatpush1.msra.mxu0 0.0
    %3515 = vmatprep.subr.mxu0 0.0
    %3516 = vmatpush1.msra.mxu0 0.0
    %3517 = vmatprep.subr.mxu0 0.0
    %3518 = vmatpush1.msra.mxu0 0.0
    %3519 = vmatprep.subr.mxu0 0.0
    %3520 = vmatpush1.msra.mxu0 0.0
    %3521 = vmatprep.subr.mxu0 0.0
    %3522 = vmatpush1.msra.mxu0 0.0
    %3523 = vmatprep.subr.mxu0 0.0
    %3524 = vmatpush1.msra.mxu0 0.0
    %3525 = vmatprep.subr.mxu0 0.0
    %3526 = vmatpush1.msra.mxu0 0.0
    %3527 = vmatprep.subr.mxu0 0.0
    %3528 = vmatpush1.msra.mxu0 0.0
    %3529 = vmatprep.subr.mxu0 0.0
    %3530 = vmatpush1.msra.mxu0 0.0
    %3531 = vmatprep.subr.mxu0 0.0
    %3532 = vmatpush1.msra.mxu0 0.0
    %3533 = vmatprep.subr.mxu0 0.0
    %3534 = vmatpush1.msra.mxu0 0.0
    %3535 = vmatprep.subr.mxu0 0.0
    %3536 = vmatpush1.msra.mxu0 0.0
    %3537 = vmatprep.subr.mxu0 0.0
    %3538 = vmatpush1.msra.mxu0 0.0
    %3539 = vmatprep.subr.mxu0 0.0
    %3540 = vmatpush1.msra.mxu0 0.0
    %3541 = vmatprep.subr.mxu0 0.0
    %3542 = vmatpush1.msra.mxu0 0.0
    %3543 = vmatprep.subr.mxu0 0.0
    %3544 = vmatpush1.msra.mxu0 0.0
    %3545 = vmatprep.subr.mxu0 0.0
    %3546 = vmatpush1.msra.mxu0 0.0
    %3547 = vmatprep.mubr.f32.mxu0 0.0
    %3548 = vmatmul.mubr.f32.gmra.mrb[0].mxu0 %v3481
    %v3549 = vpop.f32.mrb[0].mxu0
    %v3550 = vadd.f32 0.0, %v3549
    %v3551 = vpop.f32.mrb[0].mxu0
    %3552 = vdwg.mxu0
    %3553 = vrot.lane.b32.xlu0 %v394, 16
    %v3554 = vpop.permute.xlu0 %3553
    %v3557 = vsel %vm551, %v3476, 0
    %3559 = vmatprep.subr.mxu0 0.0
    %3560 = vmatpush1.msra.mxu0 %v3554
    %3561 = vmatprep.subr.mxu0 0.0
    %3562 = vmatpush1.msra.mxu0 0.0
    %3563 = vmatprep.subr.mxu0 0.0
    %3564 = vmatpush1.msra.mxu0 0.0
    %3565 = vmatprep.subr.mxu0 0.0
    %3566 = vmatpush1.msra.mxu0 0.0
    %3567 = vmatprep.subr.mxu0 0.0
    %3568 = vmatpush1.msra.mxu0 0.0
    %3569 = vmatprep.subr.mxu0 0.0
    %3570 = vmatpush1.msra.mxu0 0.0
    %3571 = vmatprep.subr.mxu0 0.0
    %3572 = vmatpush1.msra.mxu0 0.0
    %3573 = vmatprep.subr.mxu0 0.0
    %3574 = vmatpush1.msra.mxu0 0.0
    %3575 = vmatprep.subr.mxu0 0.0
    %3576 = vmatpush1.msra.mxu0 0.0
    %3577 = vmatprep.subr.mxu0 0.0
    %3578 = vmatpush1.msra.mxu0 0.0
    %3579 = vmatprep.subr.mxu0 0.0
    %3580 = vmatpush1.msra.mxu0 0.0
    %3581 = vmatprep.subr.mxu0 0.0
    %3582 = vmatpush1.msra.mxu0 0.0
    %3583 = vmatprep.subr.mxu0 0.0
    %3584 = vmatpush1.msra.mxu0 0.0
    %3585 = vmatprep.subr.mxu0 0.0
    %3586 = vmatpush1.msra.mxu0 0.0
    %3587 = vmatprep.subr.mxu0 0.0
    %3588 = vmatpush1.msra.mxu0 0.0
    %3589 = vmatprep.subr.mxu0 0.0
    %3590 = vmatpush1.msra.mxu0 0.0
    %3591 = vmatprep.subr.mxu0 0.0
    %3592 = vmatpush1.msra.mxu0 0.0
    %3593 = vmatprep.subr.mxu0 0.0
    %3594 = vmatpush1.msra.mxu0 0.0
    %3595 = vmatprep.subr.mxu0 0.0
    %3596 = vmatpush1.msra.mxu0 0.0
    %3597 = vmatprep.subr.mxu0 0.0
    %3598 = vmatpush1.msra.mxu0 0.0
    %3599 = vmatprep.subr.mxu0 0.0
    %3600 = vmatpush1.msra.mxu0 0.0
    %3601 = vmatprep.subr.mxu0 0.0
    %3602 = vmatpush1.msra.mxu0 0.0
    %3603 = vmatprep.subr.mxu0 0.0
    %3604 = vmatpush1.msra.mxu0 0.0
    %3605 = vmatprep.subr.mxu0 0.0
    %3606 = vmatpush1.msra.mxu0 0.0
    %3607 = vmatprep.subr.mxu0 0.0
    %3608 = vmatpush1.msra.mxu0 0.0
    %3609 = vmatprep.subr.mxu0 0.0
    %3610 = vmatpush1.msra.mxu0 0.0
    %3611 = vmatprep.subr.mxu0 0.0
    %3612 = vmatpush1.msra.mxu0 0.0
    %3613 = vmatprep.subr.mxu0 0.0
    %3614 = vmatpush1.msra.mxu0 0.0
    %3615 = vmatprep.subr.mxu0 0.0
    %3616 = vmatpush1.msra.mxu0 0.0
    %3617 = vmatprep.subr.mxu0 0.0
    %3618 = vmatpush1.msra.mxu0 0.0
    %3619 = vmatprep.subr.mxu0 0.0
    %3620 = vmatpush1.msra.mxu0 0.0
    %3621 = vmatprep.subr.mxu0 0.0
    %3622 = vmatpush1.msra.mxu0 0.0
    %3623 = vmatprep.mubr.f32.mxu0 0.0
    %3624 = vmatmul.mubr.f32.gmra.mrb[0].mxu0 %v3557
    %v3625 = vpop.f32.mrb[0].mxu0
    %v3626 = vadd.f32 0.0, %v3625
    %v3627 = vpop.f32.mrb[0].mxu0
    %3628 = vdwg.mxu0
    %s3629 = scalar_lea.vmem %s7, 112
    %v3630 = vld [vmem:[%s3629] sm:$0xff]
    %v3631 = vld [vmem:[%s3629 + $0x8] sm:$0xff]
    %v3633 = vsel %vm398, %v3550, 0
    %v3636 = vsel %vm398, %v3626, 0
    %3638 = vmatprep.subr.mxu0 0.0
    %3639 = vmatpush1.msra.mxu0 %v3630
    %3640 = vmatprep.subr.mxu0 0.0
    %3641 = vmatpush1.msra.mxu0 %v3631
    %3642 = vmatprep.subr.mxu0 0.0
    %3643 = vmatpush1.msra.mxu0 0.0
    %3644 = vmatprep.subr.mxu0 0.0
    %3645 = vmatpush1.msra.mxu0 0.0
    %3646 = vmatprep.subr.mxu0 0.0
    %3647 = vmatpush1.msra.mxu0 0.0
    %3648 = vmatprep.subr.mxu0 0.0
    %3649 = vmatpush1.msra.mxu0 0.0
    %3650 = vmatprep.subr.mxu0 0.0
    %3651 = vmatpush1.msra.mxu0 0.0
    %3652 = vmatprep.subr.mxu0 0.0
    %3653 = vmatpush1.msra.mxu0 0.0
    %3654 = vmatprep.subr.mxu0 0.0
    %3655 = vmatpush1.msra.mxu0 0.0
    %3656 = vmatprep.subr.mxu0 0.0
    %3657 = vmatpush1.msra.mxu0 0.0
    %3658 = vmatprep.subr.mxu0 0.0
    %3659 = vmatpush1.msra.mxu0 0.0
    %3660 = vmatprep.subr.mxu0 0.0
    %3661 = vmatpush1.msra.mxu0 0.0
    %3662 = vmatprep.subr.mxu0 0.0
    %3663 = vmatpush1.msra.mxu0 0.0
    %3664 = vmatprep.subr.mxu0 0.0
    %3665 = vmatpush1.msra.mxu0 0.0
    %3666 = vmatprep.subr.mxu0 0.0
    %3667 = vmatpush1.msra.mxu0 0.0
    %3668 = vmatprep.subr.mxu0 0.0
    %3669 = vmatpush1.msra.mxu0 0.0
    %3670 = vmatprep.subr.mxu0 0.0
    %3671 = vmatpush1.msra.mxu0 0.0
    %3672 = vmatprep.subr.mxu0 0.0
    %3673 = vmatpush1.msra.mxu0 0.0
    %3674 = vmatprep.subr.mxu0 0.0
    %3675 = vmatpush1.msra.mxu0 0.0
    %3676 = vmatprep.subr.mxu0 0.0
    %3677 = vmatpush1.msra.mxu0 0.0
    %3678 = vmatprep.subr.mxu0 0.0
    %3679 = vmatpush1.msra.mxu0 0.0
    %3680 = vmatprep.subr.mxu0 0.0
    %3681 = vmatpush1.msra.mxu0 0.0
    %3682 = vmatprep.subr.mxu0 0.0
    %3683 = vmatpush1.msra.mxu0 0.0
    %3684 = vmatprep.subr.mxu0 0.0
    %3685 = vmatpush1.msra.mxu0 0.0
    %3686 = vmatprep.subr.mxu0 0.0
    %3687 = vmatpush1.msra.mxu0 0.0
    %3688 = vmatprep.subr.mxu0 0.0
    %3689 = vmatpush1.msra.mxu0 0.0
    %3690 = vmatprep.subr.mxu0 0.0
    %3691 = vmatpush1.msra.mxu0 0.0
    %3692 = vmatprep.subr.mxu0 0.0
    %3693 = vmatpush1.msra.mxu0 0.0
    %3694 = vmatprep.subr.mxu0 0.0
    %3695 = vmatpush1.msra.mxu0 0.0
    %3696 = vmatprep.subr.mxu0 0.0
    %3697 = vmatpush1.msra.mxu0 0.0
    %3698 = vmatprep.subr.mxu0 0.0
    %3699 = vmatpush1.msra.mxu0 0.0
    %3700 = vmatprep.subr.mxu0 0.0
    %3701 = vmatpush1.msra.mxu0 0.0
    %3702 = vmatprep.mubr.f32.mxu0 0.0
    %3703 = vmatmul.mubr.f32.gmra.mrb[0].mxu0 %v3633
    %v3704 = vpop.f32.mrb[0].mxu0
    %v3705 = vadd.f32 0.0, %v3704
    %v3706 = vpop.f32.mrb[0].mxu0
    %3707 = vmatprep.mubr.f32.mxu0 0.0
    %3708 = vmatmul.mubr.f32.gmra.mrb[0].mxu0 %v3636
    %v3709 = vpop.f32.mrb[0].mxu0
    %v3710 = vadd.f32 0.0, %v3709
    %v3711 = vpop.f32.mrb[0].mxu0
    %3712 = vdwg.mxu0
    %v3713 = vadd.f32 %v3297, %v3705
    %v3714 = vadd.f32 %v3298, %v3710
    %v3716 = vsel %vm398, %v148, 0
    %v3719 = vsel %vm398, %v269, 0
    %3721 = vmatprep.subr.mxu0 0.0
    %3722 = vmatpush1.xpose.msra.mxu0 %v3719
    %3723 = vmatprep.subr.mxu0 0.0
    %3724 = vmatpush1.xpose.msra.mxu0 0.0
    %3725 = vmatprep.subr.mxu0 0.0
    %3726 = vmatpush1.xpose.msra.mxu0 0.0
    %3727 = vmatprep.subr.mxu0 0.0
    %3728 = vmatpush1.xpose.msra.mxu0 0.0
    %3729 = vmatprep.subr.mxu0 0.0
    %3730 = vmatpush1.xpose.msra.mxu0 0.0
    %3731 = vmatprep.subr.mxu0 0.0
    %3732 = vmatpush1.xpose.msra.mxu0 0.0
    %3733 = vmatprep.subr.mxu0 0.0
    %3734 = vmatpush1.xpose.msra.mxu0 0.0
    %3735 = vmatprep.subr.mxu0 0.0
    %3736 = vmatpush1.xpose.msra.mxu0 0.0
    %3737 = vmatprep.subr.mxu0 0.0
    %3738 = vmatpush1.xpose.msra.mxu0 0.0
    %3739 = vmatprep.subr.mxu0 0.0
    %3740 = vmatpush1.xpose.msra.mxu0 0.0
    %3741 = vmatprep.subr.mxu0 0.0
    %3742 = vmatpush1.xpose.msra.mxu0 0.0
    %3743 = vmatprep.subr.mxu0 0.0
    %3744 = vmatpush1.xpose.msra.mxu0 0.0
    %3745 = vmatprep.subr.mxu0 0.0
    %3746 = vmatpush1.xpose.msra.mxu0 0.0
    %3747 = vmatprep.subr.mxu0 0.0
    %3748 = vmatpush1.xpose.msra.mxu0 0.0
    %3749 = vmatprep.subr.mxu0 0.0
    %3750 = vmatpush1.xpose.msra.mxu0 0.0
    %3751 = vmatprep.subr.mxu0 0.0
    %3752 = vmatpush1.xpose.msra.mxu0 0.0
    %3753 = vmatprep.subr.mxu0 0.0
    %3754 = vmatpush1.xpose.msra.mxu0 0.0
    %3755 = vmatprep.subr.mxu0 0.0
    %3756 = vmatpush1.xpose.msra.mxu0 0.0
    %3757 = vmatprep.subr.mxu0 0.0
    %3758 = vmatpush1.xpose.msra.mxu0 0.0
    %3759 = vmatprep.subr.mxu0 0.0
    %3760 = vmatpush1.xpose.msra.mxu0 0.0
    %3761 = vmatprep.subr.mxu0 0.0
    %3762 = vmatpush1.xpose.msra.mxu0 0.0
    %3763 = vmatprep.subr.mxu0 0.0
    %3764 = vmatpush1.xpose.msra.mxu0 0.0
    %3765 = vmatprep.subr.mxu0 0.0
    %3766 = vmatpush1.xpose.msra.mxu0 0.0
    %3767 = vmatprep.subr.mxu0 0.0
    %3768 = vmatpush1.xpose.msra.mxu0 0.0
    %3769 = vmatprep.subr.mxu0 0.0
    %3770 = vmatpush1.xpose.msra.mxu0 0.0
    %3771 = vmatprep.subr.mxu0 0.0
    %3772 = vmatpush1.xpose.msra.mxu0 0.0
    %3773 = vmatprep.subr.mxu0 0.0
    %3774 = vmatpush1.xpose.msra.mxu0 0.0
    %3775 = vmatprep.subr.mxu0 0.0
    %3776 = vmatpush1.xpose.msra.mxu0 0.0
    %3777 = vmatprep.subr.mxu0 0.0
    %3778 = vmatpush1.xpose.msra.mxu0 0.0
    %3779 = vmatprep.subr.mxu0 0.0
    %3780 = vmatpush1.xpose.msra.mxu0 0.0
    %3781 = vmatprep.subr.mxu0 0.0
    %3782 = vmatpush1.xpose.msra.mxu0 0.0
    %3783 = vmatprep.subr.mxu0 0.0
    %3784 = vmatpush1.xpose.msra.mxu0 0.0
    %3785 = vmatprep.mubr.f32.mxu0 0.0
    %3786 = vmatmul.mubr.f32.gmra.mrb[0].mxu0 %v3716
    %v3787 = vpop.f32.mrb[0].mxu0
    %v3788 = vadd.f32 0.0, %v3787
    %v3789 = vpop.f32.mrb[0].mxu0
    %3790 = vdwg.mxu0
    %v3792 = vsel %vm398, %v154, 0
    %v3795 = vsel %vm398, %v275, 0
    %3797 = vmatprep.subr.mxu0 0.0
    %3798 = vmatpush1.xpose.msra.mxu0 %v3795
    %3799 = vmatprep.subr.mxu0 0.0
    %3800 = vmatpush1.xpose.msra.mxu0 0.0
    %3801 = vmatprep.subr.mxu0 0.0
    %3802 = vmatpush1.xpose.msra.mxu0 0.0
    %3803 = vmatprep.subr.mxu0 0.0
    %3804 = vmatpush1.xpose.msra.mxu0 0.0
    %3805 = vmatprep.subr.mxu0 0.0
    %3806 = vmatpush1.xpose.msra.mxu0 0.0
    %3807 = vmatprep.subr.mxu0 0.0
    %3808 = vmatpush1.xpose.msra.mxu0 0.0
    %3809 = vmatprep.subr.mxu0 0.0
    %3810 = vmatpush1.xpose.msra.mxu0 0.0
    %3811 = vmatprep.subr.mxu0 0.0
    %3812 = vmatpush1.xpose.msra.mxu0 0.0
    %3813 = vmatprep.subr.mxu0 0.0
    %3814 = vmatpush1.xpose.msra.mxu0 0.0
    %3815 = vmatprep.subr.mxu0 0.0
    %3816 = vmatpush1.xpose.msra.mxu0 0.0
    %3817 = vmatprep.subr.mxu0 0.0
    %3818 = vmatpush1.xpose.msra.mxu0 0.0
    %3819 = vmatprep.subr.mxu0 0.0
    %3820 = vmatpush1.xpose.msra.mxu0 0.0
    %3821 = vmatprep.subr.mxu0 0.0
    %3822 = vmatpush1.xpose.msra.mxu0 0.0
    %3823 = vmatprep.subr.mxu0 0.0
    %3824 = vmatpush1.xpose.msra.mxu0 0.0
    %3825 = vmatprep.subr.mxu0 0.0
    %3826 = vmatpush1.xpose.msra.mxu0 0.0
    %3827 = vmatprep.subr.mxu0 0.0
    %3828 = vmatpush1.xpose.msra.mxu0 0.0
    %3829 = vmatprep.subr.mxu0 0.0
    %3830 = vmatpush1.xpose.msra.mxu0 0.0
    %3831 = vmatprep.subr.mxu0 0.0
    %3832 = vmatpush1.xpose.msra.mxu0 0.0
    %3833 = vmatprep.subr.mxu0 0.0
    %3834 = vmatpush1.xpose.msra.mxu0 0.0
    %3835 = vmatprep.subr.mxu0 0.0
    %3836 = vmatpush1.xpose.msra.mxu0 0.0
    %3837 = vmatprep.subr.mxu0 0.0
    %3838 = vmatpush1.xpose.msra.mxu0 0.0
    %3839 = vmatprep.subr.mxu0 0.0
    %3840 = vmatpush1.xpose.msra.mxu0 0.0
    %3841 = vmatprep.subr.mxu0 0.0
    %3842 = vmatpush1.xpose.msra.mxu0 0.0
    %3843 = vmatprep.subr.mxu0 0.0
    %3844 = vmatpush1.xpose.msra.mxu0 0.0
    %3845 = vmatprep.subr.mxu0 0.0
    %3846 = vmatpush1.xpose.msra.mxu0 0.0
    %3847 = vmatprep.subr.mxu0 0.0
    %3848 = vmatpush1.xpose.msra.mxu0 0.0
    %3849 = vmatprep.subr.mxu0 0.0
    %3850 = vmatpush1.xpose.msra.mxu0 0.0
    %3851 = vmatprep.subr.mxu0 0.0
    %3852 = vmatpush1.xpose.msra.mxu0 0.0
    %3853 = vmatprep.subr.mxu0 0.0
    %3854 = vmatpush1.xpose.msra.mxu0 0.0
    %3855 = vmatprep.subr.mxu0 0.0
    %3856 = vmatpush1.xpose.msra.mxu0 0.0
    %3857 = vmatprep.subr.mxu0 0.0
    %3858 = vmatpush1.xpose.msra.mxu0 0.0
    %3859 = vmatprep.subr.mxu0 0.0
    %3860 = vmatpush1.xpose.msra.mxu0 0.0
    %3861 = vmatprep.mubr.f32.mxu0 0.0
    %3862 = vmatmul.mubr.f32.gmra.mrb[0].mxu0 %v3792
    %v3863 = vpop.f32.mrb[0].mxu0
    %v3864 = vadd.f32 0.0, %v3863
    %v3865 = vpop.f32.mrb[0].mxu0
    %3866 = vdwg.mxu0
    %v3867 = vsel %vm551, %v3788, -inf
    %3868 = vmax.xlane.f32.xlu0 %v3867
    %v3869 = vpop.xlane.xlu0 %3868
    %v3870 = vsel %vm551, %v3864, -inf
    %3871 = vmax.xlane.f32.xlu0 %v3870
    %v3872 = vpop.xlane.xlu0 %3871
    %v3873 = vsub.f32 %v3788, %v3869
    %v3874 = vsub.f32 %v3864, %v3872
    %v3875 = vmul.f32 %v3873, 1.442695
    %v3876 = vpow.pop %v3875
    %v3877 = vmul.f32 %v3874, 1.442695
    %v3878 = vpow.pop %v3877
    %v3879 = vsel %vm551, %v3876, 0.0
    %3880 = vadd.xlane.f32.xlu0 %v3879
    %v3881 = vpop.xlane.xlu0 %3880
    %v3882 = vsel %vm551, %v3878, 0.0
    %3883 = vadd.xlane.f32.xlu0 %v3882
    %v3884 = vpop.xlane.xlu0 %3883
    %v3885 = vrcp.pop %v3881
    %v3886 = vrcp.pop %v3884
    %v3887 = vmul.f32 %v3876, %v3885
    %v3888 = vmul.f32 %v3878, %v3886
    %v3890 = vsel %vm551, %v3887, 0
    %3892 = vmatprep.subr.mxu0 0.0
    %3893 = vmatpush1.msra.mxu0 %v390
    %3894 = vmatprep.subr.mxu0 0.0
    %3895 = vmatpush1.msra.mxu0 0.0
    %3896 = vmatprep.subr.mxu0 0.0
    %3897 = vmatpush1.msra.mxu0 0.0
    %3898 = vmatprep.subr.mxu0 0.0
    %3899 = vmatpush1.msra.mxu0 0.0
    %3900 = vmatprep.subr.mxu0 0.0
    %3901 = vmatpush1.msra.mxu0 0.0
    %3902 = vmatprep.subr.mxu0 0.0
    %3903 = vmatpush1.msra.mxu0 0.0
    %3904 = vmatprep.subr.mxu0 0.0
    %3905 = vmatpush1.msra.mxu0 0.0
    %3906 = vmatprep.subr.mxu0 0.0
    %3907 = vmatpush1.msra.mxu0 0.0
    %3908 = vmatprep.subr.mxu0 0.0
    %3909 = vmatpush1.msra.mxu0 0.0
    %3910 = vmatprep.subr.mxu0 0.0
    %3911 = vmatpush1.msra.mxu0 0.0
    %3912 = vmatprep.subr.mxu0 0.0
    %3913 = vmatpush1.msra.mxu0 0.0
    %3914 = vmatprep.subr.mxu0 0.0
    %3915 = vmatpush1.msra.mxu0 0.0
    %3916 = vmatprep.subr.mxu0 0.0
    %3917 = vmatpush1.msra.mxu0 0.0
    %3918 = vmatprep.subr.mxu0 0.0
    %3919 = vmatpush1.msra.mxu0 0.0
    %3920 = vmatprep.subr.mxu0 0.0
    %3921 = vmatpush1.msra.mxu0 0.0
    %3922 = vmatprep.subr.mxu0 0.0
    %3923 = vmatpush1.msra.mxu0 0.0
    %3924 = vmatprep.subr.mxu0 0.0
    %3925 = vmatpush1.msra.mxu0 0.0
    %3926 = vmatprep.subr.mxu0 0.0
    %3927 = vmatpush1.msra.mxu0 0.0
    %3928 = vmatprep.subr.mxu0 0.0
    %3929 = vmatpush1.msra.mxu0 0.0
    %3930 = vmatprep.subr.mxu0 0.0
    %3931 = vmatpush1.msra.mxu0 0.0
    %3932 = vmatprep.subr.mxu0 0.0
    %3933 = vmatpush1.msra.mxu0 0.0
    %3934 = vmatprep.subr.mxu0 0.0
    %3935 = vmatpush1.msra.mxu0 0.0
    %3936 = vmatprep.subr.mxu0 0.0
    %3937 = vmatpush1.msra.mxu0 0.0
    %3938 = vmatprep.subr.mxu0 0.0
    %3939 = vmatpush1.msra.mxu0 0.0
    %3940 = vmatprep.subr.mxu0 0.0
    %3941 = vmatpush1.msra.mxu0 0.0
    %3942 = vmatprep.subr.mxu0 0.0
    %3943 = vmatpush1.msra.mxu0 0.0
    %3944 = vmatprep.subr.mxu0 0.0
    %3945 = vmatpush1.msra.mxu0 0.0
    %3946 = vmatprep.subr.mxu0 0.0
    %3947 = vmatpush1.msra.mxu0 0.0
    %3948 = vmatprep.subr.mxu0 0.0
    %3949 = vmatpush1.msra.mxu0 0.0
    %3950 = vmatprep.subr.mxu0 0.0
    %3951 = vmatpush1.msra.mxu0 0.0
    %3952 = vmatprep.subr.mxu0 0.0
    %3953 = vmatpush1.msra.mxu0 0.0
    %3954 = vmatprep.subr.mxu0 0.0
    %3955 = vmatpush1.msra.mxu0 0.0
    %3956 = vmatprep.mubr.f32.mxu0 0.0
    %3957 = vmatmul.mubr.f32.gmra.mrb[0].mxu0 %v3890
    %v3958 = vpop.f32.mrb[0].mxu0
    %v3959 = vadd.f32 0.0, %v3958
    %v3960 = vpop.f32.mrb[0].mxu0
    %3961 = vdwg.mxu0
    %v3963 = vsel %vm551, %v3888, 0
    %3965 = vmatprep.subr.mxu0 0.0
    %3966 = vmatpush1.msra.mxu0 %v396
    %3967 = vmatprep.subr.mxu0 0.0
    %3968 = vmatpush1.msra.mxu0 0.0
    %3969 = vmatprep.subr.mxu0 0.0
    %3970 = vmatpush1.msra.mxu0 0.0
    %3971 = vmatprep.subr.mxu0 0.0
    %3972 = vmatpush1.msra.mxu0 0.0
    %3973 = vmatprep.subr.mxu0 0.0
    %3974 = vmatpush1.msra.mxu0 0.0
    %3975 = vmatprep.subr.mxu0 0.0
    %3976 = vmatpush1.msra.mxu0 0.0
    %3977 = vmatprep.subr.mxu0 0.0
    %3978 = vmatpush1.msra.mxu0 0.0
    %3979 = vmatprep.subr.mxu0 0.0
    %3980 = vmatpush1.msra.mxu0 0.0
    %3981 = vmatprep.subr.mxu0 0.0
    %3982 = vmatpush1.msra.mxu0 0.0
    %3983 = vmatprep.subr.mxu0 0.0
    %3984 = vmatpush1.msra.mxu0 0.0
    %3985 = vmatprep.subr.mxu0 0.0
    %3986 = vmatpush1.msra.mxu0 0.0
    %3987 = vmatprep.subr.mxu0 0.0
    %3988 = vmatpush1.msra.mxu0 0.0
    %3989 = vmatprep.subr.mxu0 0.0
    %3990 = vmatpush1.msra.mxu0 0.0
    %3991 = vmatprep.subr.mxu0 0.0
    %3992 = vmatpush1.msra.mxu0 0.0
    %3993 = vmatprep.subr.mxu0 0.0
    %3994 = vmatpush1.msra.mxu0 0.0
    %3995 = vmatprep.subr.mxu0 0.0
    %3996 = vmatpush1.msra.mxu0 0.0
    %3997 = vmatprep.subr.mxu0 0.0
    %3998 = vmatpush1.msra.mxu0 0.0
    %3999 = vmatprep.subr.mxu0 0.0
    %4000 = vmatpush1.msra.mxu0 0.0
    %4001 = vmatprep.subr.mxu0 0.0
    %4002 = vmatpush1.msra.mxu0 0.0
    %4003 = vmatprep.subr.mxu0 0.0
    %4004 = vmatpush1.msra.mxu0 0.0
    %4005 = vmatprep.subr.mxu0 0.0
    %4006 = vmatpush1.msra.mxu0 0.0
    %4007 = vmatprep.subr.mxu0 0.0
    %4008 = vmatpush1.msra.mxu0 0.0
    %4009 = vmatprep.subr.mxu0 0.0
    %4010 = vmatpush1.msra.mxu0 0.0
    %4011 = vmatprep.subr.mxu0 0.0
    %4012 = vmatpush1.msra.mxu0 0.0
    %4013 = vmatprep.subr.mxu0 0.0
    %4014 = vmatpush1.msra.mxu0 0.0
    %4015 = vmatprep.subr.mxu0 0.0
    %4016 = vmatpush1.msra.mxu0 0.0
    %4017 = vmatprep.subr.mxu0 0.0
    %4018 = vmatpush1.msra.mxu0 0.0
    %4019 = vmatprep.subr.mxu0 0.0
    %4020 = vmatpush1.msra.mxu0 0.0
    %4021 = vmatprep.subr.mxu0 0.0
    %4022 = vmatpush1.msra.mxu0 0.0
    %4023 = vmatprep.subr.mxu0 0.0
    %4024 = vmatpush1.msra.mxu0 0.0
    %4025 = vmatprep.subr.mxu0 0.0
    %4026 = vmatpush1.msra.mxu0 0.0
    %4027 = vmatprep.subr.mxu0 0.0
    %4028 = vmatpush1.msra.mxu0 0.0
    %4029 = vmatprep.mubr.f32.mxu0 0.0
    %4030 = vmatmul.mubr.f32.gmra.mrb[0].mxu0 %v3963
    %v4031 = vpop.f32.mrb[0].mxu0
    %v4032 = vadd.f32 0.0, %v4031
    %v4033 = vpop.f32.mrb[0].mxu0
    %4034 = vdwg.mxu0
    %s4035 = scalar_lea.vmem %s7, 128
    %v4036 = vld [vmem:[%s4035] sm:$0xff]
    %v4037 = vld [vmem:[%s4035 + $0x8] sm:$0xff]
    %v4039 = vsel %vm398, %v3959, 0
    %v4042 = vsel %vm398, %v4032, 0
    %4044 = vmatprep.subr.mxu0 0.0
    %4045 = vmatpush1.msra.mxu0 %v4036
    %4046 = vmatprep.subr.mxu0 0.0
    %4047 = vmatpush1.msra.mxu0 %v4037
    %4048 = vmatprep.subr.mxu0 0.0
    %4049 = vmatpush1.msra.mxu0 0.0
    %4050 = vmatprep.subr.mxu0 0.0
    %4051 = vmatpush1.msra.mxu0 0.0
    %4052 = vmatprep.subr.mxu0 0.0
    %4053 = vmatpush1.msra.mxu0 0.0
    %4054 = vmatprep.subr.mxu0 0.0
    %4055 = vmatpush1.msra.mxu0 0.0
    %4056 = vmatprep.subr.mxu0 0.0
    %4057 = vmatpush1.msra.mxu0 0.0
    %4058 = vmatprep.subr.mxu0 0.0
    %4059 = vmatpush1.msra.mxu0 0.0
    %4060 = vmatprep.subr.mxu0 0.0
    %4061 = vmatpush1.msra.mxu0 0.0
    %4062 = vmatprep.subr.mxu0 0.0
    %4063 = vmatpush1.msra.mxu0 0.0
    %4064 = vmatprep.subr.mxu0 0.0
    %4065 = vmatpush1.msra.mxu0 0.0
    %4066 = vmatprep.subr.mxu0 0.0
    %4067 = vmatpush1.msra.mxu0 0.0
    %4068 = vmatprep.subr.mxu0 0.0
    %4069 = vmatpush1.msra.mxu0 0.0
    %4070 = vmatprep.subr.mxu0 0.0
    %4071 = vmatpush1.msra.mxu0 0.0
    %4072 = vmatprep.subr.mxu0 0.0
    %4073 = vmatpush1.msra.mxu0 0.0
    %4074 = vmatprep.subr.mxu0 0.0
    %4075 = vmatpush1.msra.mxu0 0.0
    %4076 = vmatprep.subr.mxu0 0.0
    %4077 = vmatpush1.msra.mxu0 0.0
    %4078 = vmatprep.subr.mxu0 0.0
    %4079 = vmatpush1.msra.mxu0 0.0
    %4080 = vmatprep.subr.mxu0 0.0
    %4081 = vmatpush1.msra.mxu0 0.0
    %4082 = vmatprep.subr.mxu0 0.0
    %4083 = vmatpush1.msra.mxu0 0.0
    %4084 = vmatprep.subr.mxu0 0.0
    %4085 = vmatpush1.msra.mxu0 0.0
    %4086 = vmatprep.subr.mxu0 0.0
    %4087 = vmatpush1.msra.mxu0 0.0
    %4088 = vmatprep.subr.mxu0 0.0
    %4089 = vmatpush1.msra.mxu0 0.0
    %4090 = vmatprep.subr.mxu0 0.0
    %4091 = vmatpush1.msra.mxu0 0.0
    %4092 = vmatprep.subr.mxu0 0.0
    %4093 = vmatpush1.msra.mxu0 0.0
    %4094 = vmatprep.subr.mxu0 0.0
    %4095 = vmatpush1.msra.mxu0 0.0
    %4096 = vmatprep.subr.mxu0 0.0
    %4097 = vmatpush1.msra.mxu0 0.0
    %4098 = vmatprep.subr.mxu0 0.0
    %4099 = vmatpush1.msra.mxu0 0.0
    %4100 = vmatprep.subr.mxu0 0.0
    %4101 = vmatpush1.msra.mxu0 0.0
    %4102 = vmatprep.subr.mxu0 0.0
    %4103 = vmatpush1.msra.mxu0 0.0
    %4104 = vmatprep.subr.mxu0 0.0
    %4105 = vmatpush1.msra.mxu0 0.0
    %4106 = vmatprep.subr.mxu0 0.0
    %4107 = vmatpush1.msra.mxu0 0.0
    %4108 = vmatprep.mubr.f32.mxu0 0.0
    %4109 = vmatmul.mubr.f32.gmra.mrb[0].mxu0 %v4039
    %v4110 = vpop.f32.mrb[0].mxu0
    %v4111 = vadd.f32 0.0, %v4110
    %v4112 = vpop.f32.mrb[0].mxu0
    %4113 = vmatprep.mubr.f32.mxu0 0.0
    %4114 = vmatmul.mubr.f32.gmra.mrb[0].mxu0 %v4042
    %v4115 = vpop.f32.mrb[0].mxu0
    %v4116 = vadd.f32 0.0, %v4115
    %v4117 = vpop.f32.mrb[0].mxu0
    %4118 = vdwg.mxu0
    %v4119 = vadd.f32 %v3713, %v4111
    %v4120 = vadd.f32 %v3714, %v4116
    %4121 = vrot.lane.b32.xlu0 %v148, 112
    %v4122 = vpop.permute.xlu0 %4121
    %4123 = vrot.lane.b32.xlu0 %v269, 112
    %v4124 = vpop.permute.xlu0 %4123
    %v4125 = vsel %vm398, %v4122, 0
    %v4127 = vsel %vm398, %v4124, 0
    %4129 = vmatprep.subr.mxu0 0.0
    %4130 = vmatpush1.xpose.msra.mxu0 %v4127
    %4131 = vmatprep.subr.mxu0 0.0
    %4132 = vmatpush1.xpose.msra.mxu0 0.0
    %4133 = vmatprep.subr.mxu0 0.0
    %4134 = vmatpush1.xpose.msra.mxu0 0.0
    %4135 = vmatprep.subr.mxu0 0.0
    %4136 = vmatpush1.xpose.msra.mxu0 0.0
    %4137 = vmatprep.subr.mxu0 0.0
    %4138 = vmatpush1.xpose.msra.mxu0 0.0
    %4139 = vmatprep.subr.mxu0 0.0
    %4140 = vmatpush1.xpose.msra.mxu0 0.0
    %4141 = vmatprep.subr.mxu0 0.0
    %4142 = vmatpush1.xpose.msra.mxu0 0.0
    %4143 = vmatprep.subr.mxu0 0.0
    %4144 = vmatpush1.xpose.msra.mxu0 0.0
    %4145 = vmatprep.subr.mxu0 0.0
    %4146 = vmatpush1.xpose.msra.mxu0 0.0
    %4147 = vmatprep.subr.mxu0 0.0
    %4148 = vmatpush1.xpose.msra.mxu0 0.0
    %4149 = vmatprep.subr.mxu0 0.0
    %4150 = vmatpush1.xpose.msra.mxu0 0.0
    %4151 = vmatprep.subr.mxu0 0.0
    %4152 = vmatpush1.xpose.msra.mxu0 0.0
    %4153 = vmatprep.subr.mxu0 0.0
    %4154 = vmatpush1.xpose.msra.mxu0 0.0
    %4155 = vmatprep.subr.mxu0 0.0
    %4156 = vmatpush1.xpose.msra.mxu0 0.0
    %4157 = vmatprep.subr.mxu0 0.0
    %4158 = vmatpush1.xpose.msra.mxu0 0.0
    %4159 = vmatprep.subr.mxu0 0.0
    %4160 = vmatpush1.xpose.msra.mxu0 0.0
    %4161 = vmatprep.subr.mxu0 0.0
    %4162 = vmatpush1.xpose.msra.mxu0 0.0
    %4163 = vmatprep.subr.mxu0 0.0
    %4164 = vmatpush1.xpose.msra.mxu0 0.0
    %4165 = vmatprep.subr.mxu0 0.0
    %4166 = vmatpush1.xpose.msra.mxu0 0.0
    %4167 = vmatprep.subr.mxu0 0.0
    %4168 = vmatpush1.xpose.msra.mxu0 0.0
    %4169 = vmatprep.subr.mxu0 0.0
    %4170 = vmatpush1.xpose.msra.mxu0 0.0
    %4171 = vmatprep.subr.mxu0 0.0
    %4172 = vmatpush1.xpose.msra.mxu0 0.0
    %4173 = vmatprep.subr.mxu0 0.0
    %4174 = vmatpush1.xpose.msra.mxu0 0.0
    %4175 = vmatprep.subr.mxu0 0.0
    %4176 = vmatpush1.xpose.msra.mxu0 0.0
    %4177 = vmatprep.subr.mxu0 0.0
    %4178 = vmatpush1.xpose.msra.mxu0 0.0
    %4179 = vmatprep.subr.mxu0 0.0
    %4180 = vmatpush1.xpose.msra.mxu0 0.0
    %4181 = vmatprep.subr.mxu0 0.0
    %4182 = vmatpush1.xpose.msra.mxu0 0.0
    %4183 = vmatprep.subr.mxu0 0.0
    %4184 = vmatpush1.xpose.msra.mxu0 0.0
    %4185 = vmatprep.subr.mxu0 0.0
    %4186 = vmatpush1.xpose.msra.mxu0 0.0
    %4187 = vmatprep.subr.mxu0 0.0
    %4188 = vmatpush1.xpose.msra.mxu0 0.0
    %4189 = vmatprep.subr.mxu0 0.0
    %4190 = vmatpush1.xpose.msra.mxu0 0.0
    %4191 = vmatprep.subr.mxu0 0.0
    %4192 = vmatpush1.xpose.msra.mxu0 0.0
    %4193 = vmatprep.mubr.f32.mxu0 0.0
    %4194 = vmatmul.mubr.f32.gmra.mrb[0].mxu0 %v4125
    %v4195 = vpop.f32.mrb[0].mxu0
    %v4196 = vadd.f32 0.0, %v4195
    %v4197 = vpop.f32.mrb[0].mxu0
    %4198 = vdwg.mxu0
    %4199 = vrot.lane.b32.xlu0 %v154, 112
    %v4200 = vpop.permute.xlu0 %4199
    %4201 = vrot.lane.b32.xlu0 %v275, 112
    %v4202 = vpop.permute.xlu0 %4201
    %v4203 = vsel %vm398, %v4200, 0
    %v4205 = vsel %vm398, %v4202, 0
    %4207 = vmatprep.subr.mxu0 0.0
    %4208 = vmatpush1.xpose.msra.mxu0 %v4205
    %4209 = vmatprep.subr.mxu0 0.0
    %4210 = vmatpush1.xpose.msra.mxu0 0.0
    %4211 = vmatprep.subr.mxu0 0.0
    %4212 = vmatpush1.xpose.msra.mxu0 0.0
    %4213 = vmatprep.subr.mxu0 0.0
    %4214 = vmatpush1.xpose.msra.mxu0 0.0
    %4215 = vmatprep.subr.mxu0 0.0
    %4216 = vmatpush1.xpose.msra.mxu0 0.0
    %4217 = vmatprep.subr.mxu0 0.0
    %4218 = vmatpush1.xpose.msra.mxu0 0.0
    %4219 = vmatprep.subr.mxu0 0.0
    %4220 = vmatpush1.xpose.msra.mxu0 0.0
    %4221 = vmatprep.subr.mxu0 0.0
    %4222 = vmatpush1.xpose.msra.mxu0 0.0
    %4223 = vmatprep.subr.mxu0 0.0
    %4224 = vmatpush1.xpose.msra.mxu0 0.0
    %4225 = vmatprep.subr.mxu0 0.0
    %4226 = vmatpush1.xpose.msra.mxu0 0.0
    %4227 = vmatprep.subr.mxu0 0.0
    %4228 = vmatpush1.xpose.msra.mxu0 0.0
    %4229 = vmatprep.subr.mxu0 0.0
    %4230 = vmatpush1.xpose.msra.mxu0 0.0
    %4231 = vmatprep.subr.mxu0 0.0
    %4232 = vmatpush1.xpose.msra.mxu0 0.0
    %4233 = vmatprep.subr.mxu0 0.0
    %4234 = vmatpush1.xpose.msra.mxu0 0.0
    %4235 = vmatprep.subr.mxu0 0.0
    %4236 = vmatpush1.xpose.msra.mxu0 0.0
    %4237 = vmatprep.subr.mxu0 0.0
    %4238 = vmatpush1.xpose.msra.mxu0 0.0
    %4239 = vmatprep.subr.mxu0 0.0
    %4240 = vmatpush1.xpose.msra.mxu0 0.0
    %4241 = vmatprep.subr.mxu0 0.0
    %4242 = vmatpush1.xpose.msra.mxu0 0.0
    %4243 = vmatprep.subr.mxu0 0.0
    %4244 = vmatpush1.xpose.msra.mxu0 0.0
    %4245 = vmatprep.subr.mxu0 0.0
    %4246 = vmatpush1.xpose.msra.mxu0 0.0
    %4247 = vmatprep.subr.mxu0 0.0
    %4248 = vmatpush1.xpose.msra.mxu0 0.0
    %4249 = vmatprep.subr.mxu0 0.0
    %4250 = vmatpush1.xpose.msra.mxu0 0.0
    %4251 = vmatprep.subr.mxu0 0.0
    %4252 = vmatpush1.xpose.msra.mxu0 0.0
    %4253 = vmatprep.subr.mxu0 0.0
    %4254 = vmatpush1.xpose.msra.mxu0 0.0
    %4255 = vmatprep.subr.mxu0 0.0
    %4256 = vmatpush1.xpose.msra.mxu0 0.0
    %4257 = vmatprep.subr.mxu0 0.0
    %4258 = vmatpush1.xpose.msra.mxu0 0.0
    %4259 = vmatprep.subr.mxu0 0.0
    %4260 = vmatpush1.xpose.msra.mxu0 0.0
    %4261 = vmatprep.subr.mxu0 0.0
    %4262 = vmatpush1.xpose.msra.mxu0 0.0
    %4263 = vmatprep.subr.mxu0 0.0
    %4264 = vmatpush1.xpose.msra.mxu0 0.0
    %4265 = vmatprep.subr.mxu0 0.0
    %4266 = vmatpush1.xpose.msra.mxu0 0.0
    %4267 = vmatprep.subr.mxu0 0.0
    %4268 = vmatpush1.xpose.msra.mxu0 0.0
    %4269 = vmatprep.subr.mxu0 0.0
    %4270 = vmatpush1.xpose.msra.mxu0 0.0
    %4271 = vmatprep.mubr.f32.mxu0 0.0
    %4272 = vmatmul.mubr.f32.gmra.mrb[0].mxu0 %v4203
    %v4273 = vpop.f32.mrb[0].mxu0
    %v4274 = vadd.f32 0.0, %v4273
    %v4275 = vpop.f32.mrb[0].mxu0
    %4276 = vdwg.mxu0
    %v4277 = vsel %vm551, %v4196, -inf
    %4278 = vmax.xlane.f32.xlu0 %v4277
    %v4279 = vpop.xlane.xlu0 %4278
    %v4280 = vsel %vm551, %v4274, -inf
    %4281 = vmax.xlane.f32.xlu0 %v4280
    %v4282 = vpop.xlane.xlu0 %4281
    %v4283 = vsub.f32 %v4196, %v4279
    %v4284 = vsub.f32 %v4274, %v4282
    %v4285 = vmul.f32 %v4283, 1.442695
    %v4286 = vpow.pop %v4285
    %v4287 = vmul.f32 %v4284, 1.442695
    %v4288 = vpow.pop %v4287
    %v4289 = vsel %vm551, %v4286, 0.0
    %4290 = vadd.xlane.f32.xlu0 %v4289
    %v4291 = vpop.xlane.xlu0 %4290
    %v4292 = vsel %vm551, %v4288, 0.0
    %4293 = vadd.xlane.f32.xlu0 %v4292
    %v4294 = vpop.xlane.xlu0 %4293
    %v4295 = vrcp.pop %v4291
    %v4296 = vrcp.pop %v4294
    %v4297 = vmul.f32 %v4286, %v4295
    %v4298 = vmul.f32 %v4288, %v4296
    %4300 = vrot.lane.b32.xlu0 %v390, 112
    %v4301 = vpop.permute.xlu0 %4300
    %v4304 = vsel %vm551, %v4297, 0
    %4306 = vmatprep.subr.mxu0 0.0
    %4307 = vmatpush1.msra.mxu0 %v4301
    %4308 = vmatprep.subr.mxu0 0.0
    %4309 = vmatpush1.msra.mxu0 0.0
    %4310 = vmatprep.subr.mxu0 0.0
    %4311 = vmatpush1.msra.mxu0 0.0
    %4312 = vmatprep.subr.mxu0 0.0
    %4313 = vmatpush1.msra.mxu0 0.0
    %4314 = vmatprep.subr.mxu0 0.0
    %4315 = vmatpush1.msra.mxu0 0.0
    %4316 = vmatprep.subr.mxu0 0.0
    %4317 = vmatpush1.msra.mxu0 0.0
    %4318 = vmatprep.subr.mxu0 0.0
    %4319 = vmatpush1.msra.mxu0 0.0
    %4320 = vmatprep.subr.mxu0 0.0
    %4321 = vmatpush1.msra.mxu0 0.0
    %4322 = vmatprep.subr.mxu0 0.0
    %4323 = vmatpush1.msra.mxu0 0.0
    %4324 = vmatprep.subr.mxu0 0.0
    %4325 = vmatpush1.msra.mxu0 0.0
    %4326 = vmatprep.subr.mxu0 0.0
    %4327 = vmatpush1.msra.mxu0 0.0
    %4328 = vmatprep.subr.mxu0 0.0
    %4329 = vmatpush1.msra.mxu0 0.0
    %4330 = vmatprep.subr.mxu0 0.0
    %4331 = vmatpush1.msra.mxu0 0.0
    %4332 = vmatprep.subr.mxu0 0.0
    %4333 = vmatpush1.msra.mxu0 0.0
    %4334 = vmatprep.subr.mxu0 0.0
    %4335 = vmatpush1.msra.mxu0 0.0
    %4336 = vmatprep.subr.mxu0 0.0
    %4337 = vmatpush1.msra.mxu0 0.0
    %4338 = vmatprep.subr.mxu0 0.0
    %4339 = vmatpush1.msra.mxu0 0.0
    %4340 = vmatprep.subr.mxu0 0.0
    %4341 = vmatpush1.msra.mxu0 0.0
    %4342 = vmatprep.subr.mxu0 0.0
    %4343 = vmatpush1.msra.mxu0 0.0
    %4344 = vmatprep.subr.mxu0 0.0
    %4345 = vmatpush1.msra.mxu0 0.0
    %4346 = vmatprep.subr.mxu0 0.0
    %4347 = vmatpush1.msra.mxu0 0.0
    %4348 = vmatprep.subr.mxu0 0.0
    %4349 = vmatpush1.msra.mxu0 0.0
    %4350 = vmatprep.subr.mxu0 0.0
    %4351 = vmatpush1.msra.mxu0 0.0
    %4352 = vmatprep.subr.mxu0 0.0
    %4353 = vmatpush1.msra.mxu0 0.0
    %4354 = vmatprep.subr.mxu0 0.0
    %4355 = vmatpush1.msra.mxu0 0.0
    %4356 = vmatprep.subr.mxu0 0.0
    %4357 = vmatpush1.msra.mxu0 0.0
    %4358 = vmatprep.subr.mxu0 0.0
    %4359 = vmatpush1.msra.mxu0 0.0
    %4360 = vmatprep.subr.mxu0 0.0
    %4361 = vmatpush1.msra.mxu0 0.0
    %4362 = vmatprep.subr.mxu0 0.0
    %4363 = vmatpush1.msra.mxu0 0.0
    %4364 = vmatprep.subr.mxu0 0.0
    %4365 = vmatpush1.msra.mxu0 0.0
    %4366 = vmatprep.subr.mxu0 0.0
    %4367 = vmatpush1.msra.mxu0 0.0
    %4368 = vmatprep.subr.mxu0 0.0
    %4369 = vmatpush1.msra.mxu0 0.0
    %4370 = vmatprep.mubr.f32.mxu0 0.0
    %4371 = vmatmul.mubr.f32.gmra.mrb[0].mxu0 %v4304
    %v4372 = vpop.f32.mrb[0].mxu0
    %v4373 = vadd.f32 0.0, %v4372
    %v4374 = vpop.f32.mrb[0].mxu0
    %4375 = vdwg.mxu0
    %4377 = vrot.lane.b32.xlu0 %v396, 112
    %v4378 = vpop.permute.xlu0 %4377
    %v4381 = vsel %vm551, %v4298, 0
    %4383 = vmatprep.subr.mxu0 0.0
    %4384 = vmatpush1.msra.mxu0 %v4378
    %4385 = vmatprep.subr.mxu0 0.0
    %4386 = vmatpush1.msra.mxu0 0.0
    %4387 = vmatprep.subr.mxu0 0.0
    %4388 = vmatpush1.msra.mxu0 0.0
    %4389 = vmatprep.subr.mxu0 0.0
    %4390 = vmatpush1.msra.mxu0 0.0
    %4391 = vmatprep.subr.mxu0 0.0
    %4392 = vmatpush1.msra.mxu0 0.0
    %4393 = vmatprep.subr.mxu0 0.0
    %4394 = vmatpush1.msra.mxu0 0.0
    %4395 = vmatprep.subr.mxu0 0.0
    %4396 = vmatpush1.msra.mxu0 0.0
    %4397 = vmatprep.subr.mxu0 0.0
    %4398 = vmatpush1.msra.mxu0 0.0
    %4399 = vmatprep.subr.mxu0 0.0
    %4400 = vmatpush1.msra.mxu0 0.0
    %4401 = vmatprep.subr.mxu0 0.0
    %4402 = vmatpush1.msra.mxu0 0.0
    %4403 = vmatprep.subr.mxu0 0.0
    %4404 = vmatpush1.msra.mxu0 0.0
    %4405 = vmatprep.subr.mxu0 0.0
    %4406 = vmatpush1.msra.mxu0 0.0
    %4407 = vmatprep.subr.mxu0 0.0
    %4408 = vmatpush1.msra.mxu0 0.0
    %4409 = vmatprep.subr.mxu0 0.0
    %4410 = vmatpush1.msra.mxu0 0.0
    %4411 = vmatprep.subr.mxu0 0.0
    %4412 = vmatpush1.msra.mxu0 0.0
    %4413 = vmatprep.subr.mxu0 0.0
    %4414 = vmatpush1.msra.mxu0 0.0
    %4415 = vmatprep.subr.mxu0 0.0
    %4416 = vmatpush1.msra.mxu0 0.0
    %4417 = vmatprep.subr.mxu0 0.0
    %4418 = vmatpush1.msra.mxu0 0.0
    %4419 = vmatprep.subr.mxu0 0.0
    %4420 = vmatpush1.msra.mxu0 0.0
    %4421 = vmatprep.subr.mxu0 0.0
    %4422 = vmatpush1.msra.mxu0 0.0
    %4423 = vmatprep.subr.mxu0 0.0
    %4424 = vmatpush1.msra.mxu0 0.0
    %4425 = vmatprep.subr.mxu0 0.0
    %4426 = vmatpush1.msra.mxu0 0.0
    %4427 = vmatprep.subr.mxu0 0.0
    %4428 = vmatpush1.msra.mxu0 0.0
    %4429 = vmatprep.subr.mxu0 0.0
    %4430 = vmatpush1.msra.mxu0 0.0
    %4431 = vmatprep.subr.mxu0 0.0
    %4432 = vmatpush1.msra.mxu0 0.0
    %4433 = vmatprep.subr.mxu0 0.0
    %4434 = vmatpush1.msra.mxu0 0.0
    %4435 = vmatprep.subr.mxu0 0.0
    %4436 = vmatpush1.msra.mxu0 0.0
    %4437 = vmatprep.subr.mxu0 0.0
    %4438 = vmatpush1.msra.mxu0 0.0
    %4439 = vmatprep.subr.mxu0 0.0
    %4440 = vmatpush1.msra.mxu0 0.0
    %4441 = vmatprep.subr.mxu0 0.0
    %4442 = vmatpush1.msra.mxu0 0.0
    %4443 = vmatprep.subr.mxu0 0.0
    %4444 = vmatpush1.msra.mxu0 0.0
    %4445 = vmatprep.subr.mxu0 0.0
    %4446 = vmatpush1.msra.mxu0 0.0
    %4447 = vmatprep.mubr.f32.mxu0 0.0
    %4448 = vmatmul.mubr.f32.gmra.mrb[0].mxu0 %v4381
    %v4449 = vpop.f32.mrb[0].mxu0
    %v4450 = vadd.f32 0.0, %v4449
    %v4451 = vpop.f32.mrb[0].mxu0
    %4452 = vdwg.mxu0
    %s4453 = scalar_lea.vmem %s7, 144
    %v4454 = vld [vmem:[%s4453] sm:$0xff]
    %v4455 = vld [vmem:[%s4453 + $0x8] sm:$0xff]
    %v4457 = vsel %vm398, %v4373, 0
    %v4460 = vsel %vm398, %v4450, 0
    %4462 = vmatprep.subr.mxu0 0.0
    %4463 = vmatpush1.msra.mxu0 %v4454
    %4464 = vmatprep.subr.mxu0 0.0
    %4465 = vmatpush1.msra.mxu0 %v4455
    %4466 = vmatprep.subr.mxu0 0.0
    %4467 = vmatpush1.msra.mxu0 0.0
    %4468 = vmatprep.subr.mxu0 0.0
    %4469 = vmatpush1.msra.mxu0 0.0
    %4470 = vmatprep.subr.mxu0 0.0
    %4471 = vmatpush1.msra.mxu0 0.0
    %4472 = vmatprep.subr.mxu0 0.0
    %4473 = vmatpush1.msra.mxu0 0.0
    %4474 = vmatprep.subr.mxu0 0.0
    %4475 = vmatpush1.msra.mxu0 0.0
    %4476 = vmatprep.subr.mxu0 0.0
    %4477 = vmatpush1.msra.mxu0 0.0
    %4478 = vmatprep.subr.mxu0 0.0
    %4479 = vmatpush1.msra.mxu0 0.0
    %4480 = vmatprep.subr.mxu0 0.0
    %4481 = vmatpush1.msra.mxu0 0.0
    %4482 = vmatprep.subr.mxu0 0.0
    %4483 = vmatpush1.msra.mxu0 0.0
    %4484 = vmatprep.subr.mxu0 0.0
    %4485 = vmatpush1.msra.mxu0 0.0
    %4486 = vmatprep.subr.mxu0 0.0
    %4487 = vmatpush1.msra.mxu0 0.0
    %4488 = vmatprep.subr.mxu0 0.0
    %4489 = vmatpush1.msra.mxu0 0.0
    %4490 = vmatprep.subr.mxu0 0.0
    %4491 = vmatpush1.msra.mxu0 0.0
    %4492 = vmatprep.subr.mxu0 0.0
    %4493 = vmatpush1.msra.mxu0 0.0
    %4494 = vmatprep.subr.mxu0 0.0
    %4495 = vmatpush1.msra.mxu0 0.0
    %4496 = vmatprep.subr.mxu0 0.0
    %4497 = vmatpush1.msra.mxu0 0.0
    %4498 = vmatprep.subr.mxu0 0.0
    %4499 = vmatpush1.msra.mxu0 0.0
    %4500 = vmatprep.subr.mxu0 0.0
    %4501 = vmatpush1.msra.mxu0 0.0
    %4502 = vmatprep.subr.mxu0 0.0
    %4503 = vmatpush1.msra.mxu0 0.0
    %4504 = vmatprep.subr.mxu0 0.0
    %4505 = vmatpush1.msra.mxu0 0.0
    %4506 = vmatprep.subr.mxu0 0.0
    %4507 = vmatpush1.msra.mxu0 0.0
    %4508 = vmatprep.subr.mxu0 0.0
    %4509 = vmatpush1.msra.mxu0 0.0
    %4510 = vmatprep.subr.mxu0 0.0
    %4511 = vmatpush1.msra.mxu0 0.0
    %4512 = vmatprep.subr.mxu0 0.0
    %4513 = vmatpush1.msra.mxu0 0.0
    %4514 = vmatprep.subr.mxu0 0.0
    %4515 = vmatpush1.msra.mxu0 0.0
    %4516 = vmatprep.subr.mxu0 0.0
    %4517 = vmatpush1.msra.mxu0 0.0
    %4518 = vmatprep.subr.mxu0 0.0
    %4519 = vmatpush1.msra.mxu0 0.0
    %4520 = vmatprep.subr.mxu0 0.0
    %4521 = vmatpush1.msra.mxu0 0.0
    %4522 = vmatprep.subr.mxu0 0.0
    %4523 = vmatpush1.msra.mxu0 0.0
    %4524 = vmatprep.subr.mxu0 0.0
    %4525 = vmatpush1.msra.mxu0 0.0
    %4526 = vmatprep.mubr.f32.mxu0 0.0
    %4527 = vmatmul.mubr.f32.gmra.mrb[0].mxu0 %v4457
    %v4528 = vpop.f32.mrb[0].mxu0
    %v4529 = vadd.f32 0.0, %v4528
    %v4530 = vpop.f32.mrb[0].mxu0
    %4531 = vmatprep.mubr.f32.mxu0 0.0
    %4532 = vmatmul.mubr.f32.gmra.mrb[0].mxu0 %v4460
    %v4533 = vpop.f32.mrb[0].mxu0
    %v4534 = vadd.f32 0.0, %v4533
    %v4535 = vpop.f32.mrb[0].mxu0
    %4536 = vdwg.mxu0
    %v4537 = vadd.f32 %v4119, %v4529
    %v4538 = vadd.f32 %v4120, %v4534
    %4539 = vrot.lane.b32.xlu0 %v148, 96
    %v4540 = vpop.permute.xlu0 %4539
    %4541 = vrot.lane.b32.xlu0 %v269, 96
    %v4542 = vpop.permute.xlu0 %4541
    %v4543 = vsel %vm398, %v4540, 0
    %v4545 = vsel %vm398, %v4542, 0
    %4547 = vmatprep.subr.mxu0 0.0
    %4548 = vmatpush1.xpose.msra.mxu0 %v4545
    %4549 = vmatprep.subr.mxu0 0.0
    %4550 = vmatpush1.xpose.msra.mxu0 0.0
    %4551 = vmatprep.subr.mxu0 0.0
    %4552 = vmatpush1.xpose.msra.mxu0 0.0
    %4553 = vmatprep.subr.mxu0 0.0
    %4554 = vmatpush1.xpose.msra.mxu0 0.0
    %4555 = vmatprep.subr.mxu0 0.0
    %4556 = vmatpush1.xpose.msra.mxu0 0.0
    %4557 = vmatprep.subr.mxu0 0.0
    %4558 = vmatpush1.xpose.msra.mxu0 0.0
    %4559 = vmatprep.subr.mxu0 0.0
    %4560 = vmatpush1.xpose.msra.mxu0 0.0
    %4561 = vmatprep.subr.mxu0 0.0
    %4562 = vmatpush1.xpose.msra.mxu0 0.0
    %4563 = vmatprep.subr.mxu0 0.0
    %4564 = vmatpush1.xpose.msra.mxu0 0.0
    %4565 = vmatprep.subr.mxu0 0.0
    %4566 = vmatpush1.xpose.msra.mxu0 0.0
    %4567 = vmatprep.subr.mxu0 0.0
    %4568 = vmatpush1.xpose.msra.mxu0 0.0
    %4569 = vmatprep.subr.mxu0 0.0
    %4570 = vmatpush1.xpose.msra.mxu0 0.0
    %4571 = vmatprep.subr.mxu0 0.0
    %4572 = vmatpush1.xpose.msra.mxu0 0.0
    %4573 = vmatprep.subr.mxu0 0.0
    %4574 = vmatpush1.xpose.msra.mxu0 0.0
    %4575 = vmatprep.subr.mxu0 0.0
    %4576 = vmatpush1.xpose.msra.mxu0 0.0
    %4577 = vmatprep.subr.mxu0 0.0
    %4578 = vmatpush1.xpose.msra.mxu0 0.0
    %4579 = vmatprep.subr.mxu0 0.0
    %4580 = vmatpush1.xpose.msra.mxu0 0.0
    %4581 = vmatprep.subr.mxu0 0.0
    %4582 = vmatpush1.xpose.msra.mxu0 0.0
    %4583 = vmatprep.subr.mxu0 0.0
    %4584 = vmatpush1.xpose.msra.mxu0 0.0
    %4585 = vmatprep.subr.mxu0 0.0
    %4586 = vmatpush1.xpose.msra.mxu0 0.0
    %4587 = vmatprep.subr.mxu0 0.0
    %4588 = vmatpush1.xpose.msra.mxu0 0.0
    %4589 = vmatprep.subr.mxu0 0.0
    %4590 = vmatpush1.xpose.msra.mxu0 0.0
    %4591 = vmatprep.subr.mxu0 0.0
    %4592 = vmatpush1.xpose.msra.mxu0 0.0
    %4593 = vmatprep.subr.mxu0 0.0
    %4594 = vmatpush1.xpose.msra.mxu0 0.0
    %4595 = vmatprep.subr.mxu0 0.0
    %4596 = vmatpush1.xpose.msra.mxu0 0.0
    %4597 = vmatprep.subr.mxu0 0.0
    %4598 = vmatpush1.xpose.msra.mxu0 0.0
    %4599 = vmatprep.subr.mxu0 0.0
    %4600 = vmatpush1.xpose.msra.mxu0 0.0
    %4601 = vmatprep.subr.mxu0 0.0
    %4602 = vmatpush1.xpose.msra.mxu0 0.0
    %4603 = vmatprep.subr.mxu0 0.0
    %4604 = vmatpush1.xpose.msra.mxu0 0.0
    %4605 = vmatprep.subr.mxu0 0.0
    %4606 = vmatpush1.xpose.msra.mxu0 0.0
    %4607 = vmatprep.subr.mxu0 0.0
    %4608 = vmatpush1.xpose.msra.mxu0 0.0
    %4609 = vmatprep.subr.mxu0 0.0
    %4610 = vmatpush1.xpose.msra.mxu0 0.0
    %4611 = vmatprep.mubr.f32.mxu0 0.0
    %4612 = vmatmul.mubr.f32.gmra.mrb[0].mxu0 %v4543
    %v4613 = vpop.f32.mrb[0].mxu0
    %v4614 = vadd.f32 0.0, %v4613
    %v4615 = vpop.f32.mrb[0].mxu0
    %4616 = vdwg.mxu0
    %4617 = vrot.lane.b32.xlu0 %v154, 96
    %v4618 = vpop.permute.xlu0 %4617
    %4619 = vrot.lane.b32.xlu0 %v275, 96
    %v4620 = vpop.permute.xlu0 %4619
    %v4621 = vsel %vm398, %v4618, 0
    %v4623 = vsel %vm398, %v4620, 0
    %4625 = vmatprep.subr.mxu0 0.0
    %4626 = vmatpush1.xpose.msra.mxu0 %v4623
    %4627 = vmatprep.subr.mxu0 0.0
    %4628 = vmatpush1.xpose.msra.mxu0 0.0
    %4629 = vmatprep.subr.mxu0 0.0
    %4630 = vmatpush1.xpose.msra.mxu0 0.0
    %4631 = vmatprep.subr.mxu0 0.0
    %4632 = vmatpush1.xpose.msra.mxu0 0.0
    %4633 = vmatprep.subr.mxu0 0.0
    %4634 = vmatpush1.xpose.msra.mxu0 0.0
    %4635 = vmatprep.subr.mxu0 0.0
    %4636 = vmatpush1.xpose.msra.mxu0 0.0
    %4637 = vmatprep.subr.mxu0 0.0
    %4638 = vmatpush1.xpose.msra.mxu0 0.0
    %4639 = vmatprep.subr.mxu0 0.0
    %4640 = vmatpush1.xpose.msra.mxu0 0.0
    %4641 = vmatprep.subr.mxu0 0.0
    %4642 = vmatpush1.xpose.msra.mxu0 0.0
    %4643 = vmatprep.subr.mxu0 0.0
    %4644 = vmatpush1.xpose.msra.mxu0 0.0
    %4645 = vmatprep.subr.mxu0 0.0
    %4646 = vmatpush1.xpose.msra.mxu0 0.0
    %4647 = vmatprep.subr.mxu0 0.0
    %4648 = vmatpush1.xpose.msra.mxu0 0.0
    %4649 = vmatprep.subr.mxu0 0.0
    %4650 = vmatpush1.xpose.msra.mxu0 0.0
    %4651 = vmatprep.subr.mxu0 0.0
    %4652 = vmatpush1.xpose.msra.mxu0 0.0
    %4653 = vmatprep.subr.mxu0 0.0
    %4654 = vmatpush1.xpose.msra.mxu0 0.0
    %4655 = vmatprep.subr.mxu0 0.0
    %4656 = vmatpush1.xpose.msra.mxu0 0.0
    %4657 = vmatprep.subr.mxu0 0.0
    %4658 = vmatpush1.xpose.msra.mxu0 0.0
    %4659 = vmatprep.subr.mxu0 0.0
    %4660 = vmatpush1.xpose.msra.mxu0 0.0
    %4661 = vmatprep.subr.mxu0 0.0
    %4662 = vmatpush1.xpose.msra.mxu0 0.0
    %4663 = vmatprep.subr.mxu0 0.0
    %4664 = vmatpush1.xpose.msra.mxu0 0.0
    %4665 = vmatprep.subr.mxu0 0.0
    %4666 = vmatpush1.xpose.msra.mxu0 0.0
    %4667 = vmatprep.subr.mxu0 0.0
    %4668 = vmatpush1.xpose.msra.mxu0 0.0
    %4669 = vmatprep.subr.mxu0 0.0
    %4670 = vmatpush1.xpose.msra.mxu0 0.0
    %4671 = vmatprep.subr.mxu0 0.0
    %4672 = vmatpush1.xpose.msra.mxu0 0.0
    %4673 = vmatprep.subr.mxu0 0.0
    %4674 = vmatpush1.xpose.msra.mxu0 0.0
    %4675 = vmatprep.subr.mxu0 0.0
    %4676 = vmatpush1.xpose.msra.mxu0 0.0
    %4677 = vmatprep.subr.mxu0 0.0
    %4678 = vmatpush1.xpose.msra.mxu0 0.0
    %4679 = vmatprep.subr.mxu0 0.0
    %4680 = vmatpush1.xpose.msra.mxu0 0.0
    %4681 = vmatprep.subr.mxu0 0.0
    %4682 = vmatpush1.xpose.msra.mxu0 0.0
    %4683 = vmatprep.subr.mxu0 0.0
    %4684 = vmatpush1.xpose.msra.mxu0 0.0
    %4685 = vmatprep.subr.mxu0 0.0
    %4686 = vmatpush1.xpose.msra.mxu0 0.0
    %4687 = vmatprep.subr.mxu0 0.0
    %4688 = vmatpush1.xpose.msra.mxu0 0.0
    %4689 = vmatprep.mubr.f32.mxu0 0.0
    %4690 = vmatmul.mubr.f32.gmra.mrb[0].mxu0 %v4621
    %v4691 = vpop.f32.mrb[0].mxu0
    %v4692 = vadd.f32 0.0, %v4691
    %v4693 = vpop.f32.mrb[0].mxu0
    %4694 = vdwg.mxu0
    %v4695 = vsel %vm551, %v4614, -inf
    %4696 = vmax.xlane.f32.xlu0 %v4695
    %v4697 = vpop.xlane.xlu0 %4696
    %v4698 = vsel %vm551, %v4692, -inf
    %4699 = vmax.xlane.f32.xlu0 %v4698
    %v4700 = vpop.xlane.xlu0 %4699
    %v4701 = vsub.f32 %v4614, %v4697
    %v4702 = vsub.f32 %v4692, %v4700
    %v4703 = vmul.f32 %v4701, 1.442695
    %v4704 = vpow.pop %v4703
    %v4705 = vmul.f32 %v4702, 1.442695
    %v4706 = vpow.pop %v4705
    %v4707 = vsel %vm551, %v4704, 0.0
    %4708 = vadd.xlane.f32.xlu0 %v4707
    %v4709 = vpop.xlane.xlu0 %4708
    %v4710 = vsel %vm551, %v4706, 0.0
    %4711 = vadd.xlane.f32.xlu0 %v4710
    %v4712 = vpop.xlane.xlu0 %4711
    %v4713 = vrcp.pop %v4709
    %v4714 = vrcp.pop %v4712
    %v4715 = vmul.f32 %v4704, %v4713
    %v4716 = vmul.f32 %v4706, %v4714
    %4717 = vrot.lane.b32.xlu0 %v390, 96
    %v4718 = vpop.permute.xlu0 %4717
    %v4721 = vsel %vm551, %v4715, 0
    %4723 = vmatprep.subr.mxu0 0.0
    %4724 = vmatpush1.msra.mxu0 %v4718
    %4725 = vmatprep.subr.mxu0 0.0
    %4726 = vmatpush1.msra.mxu0 0.0
    %4727 = vmatprep.subr.mxu0 0.0
    %4728 = vmatpush1.msra.mxu0 0.0
    %4729 = vmatprep.subr.mxu0 0.0
    %4730 = vmatpush1.msra.mxu0 0.0
    %4731 = vmatprep.subr.mxu0 0.0
    %4732 = vmatpush1.msra.mxu0 0.0
    %4733 = vmatprep.subr.mxu0 0.0
    %4734 = vmatpush1.msra.mxu0 0.0
    %4735 = vmatprep.subr.mxu0 0.0
    %4736 = vmatpush1.msra.mxu0 0.0
    %4737 = vmatprep.subr.mxu0 0.0
    %4738 = vmatpush1.msra.mxu0 0.0
    %4739 = vmatprep.subr.mxu0 0.0
    %4740 = vmatpush1.msra.mxu0 0.0
    %4741 = vmatprep.subr.mxu0 0.0
    %4742 = vmatpush1.msra.mxu0 0.0
    %4743 = vmatprep.subr.mxu0 0.0
    %4744 = vmatpush1.msra.mxu0 0.0
    %4745 = vmatprep.subr.mxu0 0.0
    %4746 = vmatpush1.msra.mxu0 0.0
    %4747 = vmatprep.subr.mxu0 0.0
    %4748 = vmatpush1.msra.mxu0 0.0
    %4749 = vmatprep.subr.mxu0 0.0
    %4750 = vmatpush1.msra.mxu0 0.0
    %4751 = vmatprep.subr.mxu0 0.0
    %4752 = vmatpush1.msra.mxu0 0.0
    %4753 = vmatprep.subr.mxu0 0.0
    %4754 = vmatpush1.msra.mxu0 0.0
    %4755 = vmatprep.subr.mxu0 0.0
    %4756 = vmatpush1.msra.mxu0 0.0
    %4757 = vmatprep.subr.mxu0 0.0
    %4758 = vmatpush1.msra.mxu0 0.0
    %4759 = vmatprep.subr.mxu0 0.0
    %4760 = vmatpush1.msra.mxu0 0.0
    %4761 = vmatprep.subr.mxu0 0.0
    %4762 = vmatpush1.msra.mxu0 0.0
    %4763 = vmatprep.subr.mxu0 0.0
    %4764 = vmatpush1.msra.mxu0 0.0
    %4765 = vmatprep.subr.mxu0 0.0
    %4766 = vmatpush1.msra.mxu0 0.0
    %4767 = vmatprep.subr.mxu0 0.0
    %4768 = vmatpush1.msra.mxu0 0.0
    %4769 = vmatprep.subr.mxu0 0.0
    %4770 = vmatpush1.msra.mxu0 0.0
    %4771 = vmatprep.subr.mxu0 0.0
    %4772 = vmatpush1.msra.mxu0 0.0
    %4773 = vmatprep.subr.mxu0 0.0
    %4774 = vmatpush1.msra.mxu0 0.0
    %4775 = vmatprep.subr.mxu0 0.0
    %4776 = vmatpush1.msra.mxu0 0.0
    %4777 = vmatprep.subr.mxu0 0.0
    %4778 = vmatpush1.msra.mxu0 0.0
    %4779 = vmatprep.subr.mxu0 0.0
    %4780 = vmatpush1.msra.mxu0 0.0
    %4781 = vmatprep.subr.mxu0 0.0
    %4782 = vmatpush1.msra.mxu0 0.0
    %4783 = vmatprep.subr.mxu0 0.0
    %4784 = vmatpush1.msra.mxu0 0.0
    %4785 = vmatprep.subr.mxu0 0.0
    %4786 = vmatpush1.msra.mxu0 0.0
    %4787 = vmatprep.mubr.f32.mxu0 0.0
    %4788 = vmatmul.mubr.f32.gmra.mrb[0].mxu0 %v4721
    %v4789 = vpop.f32.mrb[0].mxu0
    %v4790 = vadd.f32 0.0, %v4789
    %v4791 = vpop.f32.mrb[0].mxu0
    %4792 = vdwg.mxu0
    %4793 = vrot.lane.b32.xlu0 %v396, 96
    %v4794 = vpop.permute.xlu0 %4793
    %v4797 = vsel %vm551, %v4716, 0
    %4799 = vmatprep.subr.mxu0 0.0
    %4800 = vmatpush1.msra.mxu0 %v4794
    %4801 = vmatprep.subr.mxu0 0.0
    %4802 = vmatpush1.msra.mxu0 0.0
    %4803 = vmatprep.subr.mxu0 0.0
    %4804 = vmatpush1.msra.mxu0 0.0
    %4805 = vmatprep.subr.mxu0 0.0
    %4806 = vmatpush1.msra.mxu0 0.0
    %4807 = vmatprep.subr.mxu0 0.0
    %4808 = vmatpush1.msra.mxu0 0.0
    %4809 = vmatprep.subr.mxu0 0.0
    %4810 = vmatpush1.msra.mxu0 0.0
    %4811 = vmatprep.subr.mxu0 0.0
    %4812 = vmatpush1.msra.mxu0 0.0
    %4813 = vmatprep.subr.mxu0 0.0
    %4814 = vmatpush1.msra.mxu0 0.0
    %4815 = vmatprep.subr.mxu0 0.0
    %4816 = vmatpush1.msra.mxu0 0.0
    %4817 = vmatprep.subr.mxu0 0.0
    %4818 = vmatpush1.msra.mxu0 0.0
    %4819 = vmatprep.subr.mxu0 0.0
    %4820 = vmatpush1.msra.mxu0 0.0
    %4821 = vmatprep.subr.mxu0 0.0
    %4822 = vmatpush1.msra.mxu0 0.0
    %4823 = vmatprep.subr.mxu0 0.0
    %4824 = vmatpush1.msra.mxu0 0.0
    %4825 = vmatprep.subr.mxu0 0.0
    %4826 = vmatpush1.msra.mxu0 0.0
    %4827 = vmatprep.subr.mxu0 0.0
    %4828 = vmatpush1.msra.mxu0 0.0
    %4829 = vmatprep.subr.mxu0 0.0
    %4830 = vmatpush1.msra.mxu0 0.0
    %4831 = vmatprep.subr.mxu0 0.0
    %4832 = vmatpush1.msra.mxu0 0.0
    %4833 = vmatprep.subr.mxu0 0.0
    %4834 = vmatpush1.msra.mxu0 0.0
    %4835 = vmatprep.subr.mxu0 0.0
    %4836 = vmatpush1.msra.mxu0 0.0
    %4837 = vmatprep.subr.mxu0 0.0
    %4838 = vmatpush1.msra.mxu0 0.0
    %4839 = vmatprep.subr.mxu0 0.0
    %4840 = vmatpush1.msra.mxu0 0.0
    %4841 = vmatprep.subr.mxu0 0.0
    %4842 = vmatpush1.msra.mxu0 0.0
    %4843 = vmatprep.subr.mxu0 0.0
    %4844 = vmatpush1.msra.mxu0 0.0
    %4845 = vmatprep.subr.mxu0 0.0
    %4846 = vmatpush1.msra.mxu0 0.0
    %4847 = vmatprep.subr.mxu0 0.0
    %4848 = vmatpush1.msra.mxu0 0.0
    %4849 = vmatprep.subr.mxu0 0.0
    %4850 = vmatpush1.msra.mxu0 0.0
    %4851 = vmatprep.subr.mxu0 0.0
    %4852 = vmatpush1.msra.mxu0 0.0
    %4853 = vmatprep.subr.mxu0 0.0
    %4854 = vmatpush1.msra.mxu0 0.0
    %4855 = vmatprep.subr.mxu0 0.0
    %4856 = vmatpush1.msra.mxu0 0.0
    %4857 = vmatprep.subr.mxu0 0.0
    %4858 = vmatpush1.msra.mxu0 0.0
    %4859 = vmatprep.subr.mxu0 0.0
    %4860 = vmatpush1.msra.mxu0 0.0
    %4861 = vmatprep.subr.mxu0 0.0
    %4862 = vmatpush1.msra.mxu0 0.0
    %4863 = vmatprep.mubr.f32.mxu0 0.0
    %4864 = vmatmul.mubr.f32.gmra.mrb[0].mxu0 %v4797
    %v4865 = vpop.f32.mrb[0].mxu0
    %v4866 = vadd.f32 0.0, %v4865
    %v4867 = vpop.f32.mrb[0].mxu0
    %4868 = vdwg.mxu0
    %s4869 = scalar_lea.vmem %s7, 160
    %v4870 = vld [vmem:[%s4869] sm:$0xff]
    %v4871 = vld [vmem:[%s4869 + $0x8] sm:$0xff]
    %v4873 = vsel %vm398, %v4790, 0
    %v4876 = vsel %vm398, %v4866, 0
    %4878 = vmatprep.subr.mxu0 0.0
    %4879 = vmatpush1.msra.mxu0 %v4870
    %4880 = vmatprep.subr.mxu0 0.0
    %4881 = vmatpush1.msra.mxu0 %v4871
    %4882 = vmatprep.subr.mxu0 0.0
    %4883 = vmatpush1.msra.mxu0 0.0
    %4884 = vmatprep.subr.mxu0 0.0
    %4885 = vmatpush1.msra.mxu0 0.0
    %4886 = vmatprep.subr.mxu0 0.0
    %4887 = vmatpush1.msra.mxu0 0.0
    %4888 = vmatprep.subr.mxu0 0.0
    %4889 = vmatpush1.msra.mxu0 0.0
    %4890 = vmatprep.subr.mxu0 0.0
    %4891 = vmatpush1.msra.mxu0 0.0
    %4892 = vmatprep.subr.mxu0 0.0
    %4893 = vmatpush1.msra.mxu0 0.0
    %4894 = vmatprep.subr.mxu0 0.0
    %4895 = vmatpush1.msra.mxu0 0.0
    %4896 = vmatprep.subr.mxu0 0.0
    %4897 = vmatpush1.msra.mxu0 0.0
    %4898 = vmatprep.subr.mxu0 0.0
    %4899 = vmatpush1.msra.mxu0 0.0
    %4900 = vmatprep.subr.mxu0 0.0
    %4901 = vmatpush1.msra.mxu0 0.0
    %4902 = vmatprep.subr.mxu0 0.0
    %4903 = vmatpush1.msra.mxu0 0.0
    %4904 = vmatprep.subr.mxu0 0.0
    %4905 = vmatpush1.msra.mxu0 0.0
    %4906 = vmatprep.subr.mxu0 0.0
    %4907 = vmatpush1.msra.mxu0 0.0
    %4908 = vmatprep.subr.mxu0 0.0
    %4909 = vmatpush1.msra.mxu0 0.0
    %4910 = vmatprep.subr.mxu0 0.0
    %4911 = vmatpush1.msra.mxu0 0.0
    %4912 = vmatprep.subr.mxu0 0.0
    %4913 = vmatpush1.msra.mxu0 0.0
    %4914 = vmatprep.subr.mxu0 0.0
    %4915 = vmatpush1.msra.mxu0 0.0
    %4916 = vmatprep.subr.mxu0 0.0
    %4917 = vmatpush1.msra.mxu0 0.0
    %4918 = vmatprep.subr.mxu0 0.0
    %4919 = vmatpush1.msra.mxu0 0.0
    %4920 = vmatprep.subr.mxu0 0.0
    %4921 = vmatpush1.msra.mxu0 0.0
    %4922 = vmatprep.subr.mxu0 0.0
    %4923 = vmatpush1.msra.mxu0 0.0
    %4924 = vmatprep.subr.mxu0 0.0
    %4925 = vmatpush1.msra.mxu0 0.0
    %4926 = vmatprep.subr.mxu0 0.0
    %4927 = vmatpush1.msra.mxu0 0.0
    %4928 = vmatprep.subr.mxu0 0.0
    %4929 = vmatpush1.msra.mxu0 0.0
    %4930 = vmatprep.subr.mxu0 0.0
    %4931 = vmatpush1.msra.mxu0 0.0
    %4932 = vmatprep.subr.mxu0 0.0
    %4933 = vmatpush1.msra.mxu0 0.0
    %4934 = vmatprep.subr.mxu0 0.0
    %4935 = vmatpush1.msra.mxu0 0.0
    %4936 = vmatprep.subr.mxu0 0.0
    %4937 = vmatpush1.msra.mxu0 0.0
    %4938 = vmatprep.subr.mxu0 0.0
    %4939 = vmatpush1.msra.mxu0 0.0
    %4940 = vmatprep.subr.mxu0 0.0
    %4941 = vmatpush1.msra.mxu0 0.0
    %4942 = vmatprep.mubr.f32.mxu0 0.0
    %4943 = vmatmul.mubr.f32.gmra.mrb[0].mxu0 %v4873
    %v4944 = vpop.f32.mrb[0].mxu0
    %v4945 = vadd.f32 0.0, %v4944
    %v4946 = vpop.f32.mrb[0].mxu0
    %4947 = vmatprep.mubr.f32.mxu0 0.0
    %4948 = vmatmul.mubr.f32.gmra.mrb[0].mxu0 %v4876
    %v4949 = vpop.f32.mrb[0].mxu0
    %v4950 = vadd.f32 0.0, %v4949
    %v4951 = vpop.f32.mrb[0].mxu0
    %4952 = vdwg.mxu0
    %v4953 = vadd.f32 %v4537, %v4945
    %v4954 = vadd.f32 %v4538, %v4950
    %4955 = vrot.lane.b32.xlu0 %v148, 80
    %v4956 = vpop.permute.xlu0 %4955
    %4957 = vrot.lane.b32.xlu0 %v269, 80
    %v4958 = vpop.permute.xlu0 %4957
    %v4959 = vsel %vm398, %v4956, 0
    %v4961 = vsel %vm398, %v4958, 0
    %4963 = vmatprep.subr.mxu0 0.0
    %4964 = vmatpush1.xpose.msra.mxu0 %v4961
    %4965 = vmatprep.subr.mxu0 0.0
    %4966 = vmatpush1.xpose.msra.mxu0 0.0
    %4967 = vmatprep.subr.mxu0 0.0
    %4968 = vmatpush1.xpose.msra.mxu0 0.0
    %4969 = vmatprep.subr.mxu0 0.0
    %4970 = vmatpush1.xpose.msra.mxu0 0.0
    %4971 = vmatprep.subr.mxu0 0.0
    %4972 = vmatpush1.xpose.msra.mxu0 0.0
    %4973 = vmatprep.subr.mxu0 0.0
    %4974 = vmatpush1.xpose.msra.mxu0 0.0
    %4975 = vmatprep.subr.mxu0 0.0
    %4976 = vmatpush1.xpose.msra.mxu0 0.0
    %4977 = vmatprep.subr.mxu0 0.0
    %4978 = vmatpush1.xpose.msra.mxu0 0.0
    %4979 = vmatprep.subr.mxu0 0.0
    %4980 = vmatpush1.xpose.msra.mxu0 0.0
    %4981 = vmatprep.subr.mxu0 0.0
    %4982 = vmatpush1.xpose.msra.mxu0 0.0
    %4983 = vmatprep.subr.mxu0 0.0
    %4984 = vmatpush1.xpose.msra.mxu0 0.0
    %4985 = vmatprep.subr.mxu0 0.0
    %4986 = vmatpush1.xpose.msra.mxu0 0.0
    %4987 = vmatprep.subr.mxu0 0.0
    %4988 = vmatpush1.xpose.msra.mxu0 0.0
    %4989 = vmatprep.subr.mxu0 0.0
    %4990 = vmatpush1.xpose.msra.mxu0 0.0
    %4991 = vmatprep.subr.mxu0 0.0
    %4992 = vmatpush1.xpose.msra.mxu0 0.0
    %4993 = vmatprep.subr.mxu0 0.0
    %4994 = vmatpush1.xpose.msra.mxu0 0.0
    %4995 = vmatprep.subr.mxu0 0.0
    %4996 = vmatpush1.xpose.msra.mxu0 0.0
    %4997 = vmatprep.subr.mxu0 0.0
    %4998 = vmatpush1.xpose.msra.mxu0 0.0
    %4999 = vmatprep.subr.mxu0 0.0
    %5000 = vmatpush1.xpose.msra.mxu0 0.0
    %5001 = vmatprep.subr.mxu0 0.0
    %5002 = vmatpush1.xpose.msra.mxu0 0.0
    %5003 = vmatprep.subr.mxu0 0.0
    %5004 = vmatpush1.xpose.msra.mxu0 0.0
    %5005 = vmatprep.subr.mxu0 0.0
    %5006 = vmatpush1.xpose.msra.mxu0 0.0
    %5007 = vmatprep.subr.mxu0 0.0
    %5008 = vmatpush1.xpose.msra.mxu0 0.0
    %5009 = vmatprep.subr.mxu0 0.0
    %5010 = vmatpush1.xpose.msra.mxu0 0.0
    %5011 = vmatprep.subr.mxu0 0.0
    %5012 = vmatpush1.xpose.msra.mxu0 0.0
    %5013 = vmatprep.subr.mxu0 0.0
    %5014 = vmatpush1.xpose.msra.mxu0 0.0
    %5015 = vmatprep.subr.mxu0 0.0
    %5016 = vmatpush1.xpose.msra.mxu0 0.0
    %5017 = vmatprep.subr.mxu0 0.0
    %5018 = vmatpush1.xpose.msra.mxu0 0.0
    %5019 = vmatprep.subr.mxu0 0.0
    %5020 = vmatpush1.xpose.msra.mxu0 0.0
    %5021 = vmatprep.subr.mxu0 0.0
    %5022 = vmatpush1.xpose.msra.mxu0 0.0
    %5023 = vmatprep.subr.mxu0 0.0
    %5024 = vmatpush1.xpose.msra.mxu0 0.0
    %5025 = vmatprep.subr.mxu0 0.0
    %5026 = vmatpush1.xpose.msra.mxu0 0.0
    %5027 = vmatprep.mubr.f32.mxu0 0.0
    %5028 = vmatmul.mubr.f32.gmra.mrb[0].mxu0 %v4959
    %v5029 = vpop.f32.mrb[0].mxu0
    %v5030 = vadd.f32 0.0, %v5029
    %v5031 = vpop.f32.mrb[0].mxu0
    %5032 = vdwg.mxu0
    %5033 = vrot.lane.b32.xlu0 %v154, 80
    %v5034 = vpop.permute.xlu0 %5033
    %5035 = vrot.lane.b32.xlu0 %v275, 80
    %v5036 = vpop.permute.xlu0 %5035
    %v5037 = vsel %vm398, %v5034, 0
    %v5039 = vsel %vm398, %v5036, 0
    %5041 = vmatprep.subr.mxu0 0.0
    %5042 = vmatpush1.xpose.msra.mxu0 %v5039
    %5043 = vmatprep.subr.mxu0 0.0
    %5044 = vmatpush1.xpose.msra.mxu0 0.0
    %5045 = vmatprep.subr.mxu0 0.0
    %5046 = vmatpush1.xpose.msra.mxu0 0.0
    %5047 = vmatprep.subr.mxu0 0.0
    %5048 = vmatpush1.xpose.msra.mxu0 0.0
    %5049 = vmatprep.subr.mxu0 0.0
    %5050 = vmatpush1.xpose.msra.mxu0 0.0
    %5051 = vmatprep.subr.mxu0 0.0
    %5052 = vmatpush1.xpose.msra.mxu0 0.0
    %5053 = vmatprep.subr.mxu0 0.0
    %5054 = vmatpush1.xpose.msra.mxu0 0.0
    %5055 = vmatprep.subr.mxu0 0.0
    %5056 = vmatpush1.xpose.msra.mxu0 0.0
    %5057 = vmatprep.subr.mxu0 0.0
    %5058 = vmatpush1.xpose.msra.mxu0 0.0
    %5059 = vmatprep.subr.mxu0 0.0
    %5060 = vmatpush1.xpose.msra.mxu0 0.0
    %5061 = vmatprep.subr.mxu0 0.0
    %5062 = vmatpush1.xpose.msra.mxu0 0.0
    %5063 = vmatprep.subr.mxu0 0.0
    %5064 = vmatpush1.xpose.msra.mxu0 0.0
    %5065 = vmatprep.subr.mxu0 0.0
    %5066 = vmatpush1.xpose.msra.mxu0 0.0
    %5067 = vmatprep.subr.mxu0 0.0
    %5068 = vmatpush1.xpose.msra.mxu0 0.0
    %5069 = vmatprep.subr.mxu0 0.0
    %5070 = vmatpush1.xpose.msra.mxu0 0.0
    %5071 = vmatprep.subr.mxu0 0.0
    %5072 = vmatpush1.xpose.msra.mxu0 0.0
    %5073 = vmatprep.subr.mxu0 0.0
    %5074 = vmatpush1.xpose.msra.mxu0 0.0
    %5075 = vmatprep.subr.mxu0 0.0
    %5076 = vmatpush1.xpose.msra.mxu0 0.0
    %5077 = vmatprep.subr.mxu0 0.0
    %5078 = vmatpush1.xpose.msra.mxu0 0.0
    %5079 = vmatprep.subr.mxu0 0.0
    %5080 = vmatpush1.xpose.msra.mxu0 0.0
    %5081 = vmatprep.subr.mxu0 0.0
    %5082 = vmatpush1.xpose.msra.mxu0 0.0
    %5083 = vmatprep.subr.mxu0 0.0
    %5084 = vmatpush1.xpose.msra.mxu0 0.0
    %5085 = vmatprep.subr.mxu0 0.0
    %5086 = vmatpush1.xpose.msra.mxu0 0.0
    %5087 = vmatprep.subr.mxu0 0.0
    %5088 = vmatpush1.xpose.msra.mxu0 0.0
    %5089 = vmatprep.subr.mxu0 0.0
    %5090 = vmatpush1.xpose.msra.mxu0 0.0
    %5091 = vmatprep.subr.mxu0 0.0
    %5092 = vmatpush1.xpose.msra.mxu0 0.0
    %5093 = vmatprep.subr.mxu0 0.0
    %5094 = vmatpush1.xpose.msra.mxu0 0.0
    %5095 = vmatprep.subr.mxu0 0.0
    %5096 = vmatpush1.xpose.msra.mxu0 0.0
    %5097 = vmatprep.subr.mxu0 0.0
    %5098 = vmatpush1.xpose.msra.mxu0 0.0
    %5099 = vmatprep.subr.mxu0 0.0
    %5100 = vmatpush1.xpose.msra.mxu0 0.0
    %5101 = vmatprep.subr.mxu0 0.0
    %5102 = vmatpush1.xpose.msra.mxu0 0.0
    %5103 = vmatprep.subr.mxu0 0.0
    %5104 = vmatpush1.xpose.msra.mxu0 0.0
    %5105 = vmatprep.mubr.f32.mxu0 0.0
    %5106 = vmatmul.mubr.f32.gmra.mrb[0].mxu0 %v5037
    %v5107 = vpop.f32.mrb[0].mxu0
    %v5108 = vadd.f32 0.0, %v5107
    %v5109 = vpop.f32.mrb[0].mxu0
    %5110 = vdwg.mxu0
    %v5111 = vsel %vm551, %v5030, -inf
    %5112 = vmax.xlane.f32.xlu0 %v5111
    %v5113 = vpop.xlane.xlu0 %5112
    %v5114 = vsel %vm551, %v5108, -inf
    %5115 = vmax.xlane.f32.xlu0 %v5114
    %v5116 = vpop.xlane.xlu0 %5115
    %v5117 = vsub.f32 %v5030, %v5113
    %v5118 = vsub.f32 %v5108, %v5116
    %v5119 = vmul.f32 %v5117, 1.442695
    %v5120 = vpow.pop %v5119
    %v5121 = vmul.f32 %v5118, 1.442695
    %v5122 = vpow.pop %v5121
    %v5123 = vsel %vm551, %v5120, 0.0
    %5124 = vadd.xlane.f32.xlu0 %v5123
    %v5125 = vpop.xlane.xlu0 %5124
    %v5126 = vsel %vm551, %v5122, 0.0
    %5127 = vadd.xlane.f32.xlu0 %v5126
    %v5128 = vpop.xlane.xlu0 %5127
    %v5129 = vrcp.pop %v5125
    %v5130 = vrcp.pop %v5128
    %v5131 = vmul.f32 %v5120, %v5129
    %v5132 = vmul.f32 %v5122, %v5130
    %5133 = vrot.lane.b32.xlu0 %v390, 80
    %v5134 = vpop.permute.xlu0 %5133
    %v5137 = vsel %vm551, %v5131, 0
    %5139 = vmatprep.subr.mxu0 0.0
    %5140 = vmatpush1.msra.mxu0 %v5134
    %5141 = vmatprep.subr.mxu0 0.0
    %5142 = vmatpush1.msra.mxu0 0.0
    %5143 = vmatprep.subr.mxu0 0.0
    %5144 = vmatpush1.msra.mxu0 0.0
    %5145 = vmatprep.subr.mxu0 0.0
    %5146 = vmatpush1.msra.mxu0 0.0
    %5147 = vmatprep.subr.mxu0 0.0
    %5148 = vmatpush1.msra.mxu0 0.0
    %5149 = vmatprep.subr.mxu0 0.0
    %5150 = vmatpush1.msra.mxu0 0.0
    %5151 = vmatprep.subr.mxu0 0.0
    %5152 = vmatpush1.msra.mxu0 0.0
    %5153 = vmatprep.subr.mxu0 0.0
    %5154 = vmatpush1.msra.mxu0 0.0
    %5155 = vmatprep.subr.mxu0 0.0
    %5156 = vmatpush1.msra.mxu0 0.0
    %5157 = vmatprep.subr.mxu0 0.0
    %5158 = vmatpush1.msra.mxu0 0.0
    %5159 = vmatprep.subr.mxu0 0.0
    %5160 = vmatpush1.msra.mxu0 0.0
    %5161 = vmatprep.subr.mxu0 0.0
    %5162 = vmatpush1.msra.mxu0 0.0
    %5163 = vmatprep.subr.mxu0 0.0
    %5164 = vmatpush1.msra.mxu0 0.0
    %5165 = vmatprep.subr.mxu0 0.0
    %5166 = vmatpush1.msra.mxu0 0.0
    %5167 = vmatprep.subr.mxu0 0.0
    %5168 = vmatpush1.msra.mxu0 0.0
    %5169 = vmatprep.subr.mxu0 0.0
    %5170 = vmatpush1.msra.mxu0 0.0
    %5171 = vmatprep.subr.mxu0 0.0
    %5172 = vmatpush1.msra.mxu0 0.0
    %5173 = vmatprep.subr.mxu0 0.0
    %5174 = vmatpush1.msra.mxu0 0.0
    %5175 = vmatprep.subr.mxu0 0.0
    %5176 = vmatpush1.msra.mxu0 0.0
    %5177 = vmatprep.subr.mxu0 0.0
    %5178 = vmatpush1.msra.mxu0 0.0
    %5179 = vmatprep.subr.mxu0 0.0
    %5180 = vmatpush1.msra.mxu0 0.0
    %5181 = vmatprep.subr.mxu0 0.0
    %5182 = vmatpush1.msra.mxu0 0.0
    %5183 = vmatprep.subr.mxu0 0.0
    %5184 = vmatpush1.msra.mxu0 0.0
    %5185 = vmatprep.subr.mxu0 0.0
    %5186 = vmatpush1.msra.mxu0 0.0
    %5187 = vmatprep.subr.mxu0 0.0
    %5188 = vmatpush1.msra.mxu0 0.0
    %5189 = vmatprep.subr.mxu0 0.0
    %5190 = vmatpush1.msra.mxu0 0.0
    %5191 = vmatprep.subr.mxu0 0.0
    %5192 = vmatpush1.msra.mxu0 0.0
    %5193 = vmatprep.subr.mxu0 0.0
    %5194 = vmatpush1.msra.mxu0 0.0
    %5195 = vmatprep.subr.mxu0 0.0
    %5196 = vmatpush1.msra.mxu0 0.0
    %5197 = vmatprep.subr.mxu0 0.0
    %5198 = vmatpush1.msra.mxu0 0.0
    %5199 = vmatprep.subr.mxu0 0.0
    %5200 = vmatpush1.msra.mxu0 0.0
    %5201 = vmatprep.subr.mxu0 0.0
    %5202 = vmatpush1.msra.mxu0 0.0
    %5203 = vmatprep.mubr.f32.mxu0 0.0
    %5204 = vmatmul.mubr.f32.gmra.mrb[0].mxu0 %v5137
    %v5205 = vpop.f32.mrb[0].mxu0
    %v5206 = vadd.f32 0.0, %v5205
    %v5207 = vpop.f32.mrb[0].mxu0
    %5208 = vdwg.mxu0
    %5209 = vrot.lane.b32.xlu0 %v396, 80
    %v5210 = vpop.permute.xlu0 %5209
    %v5213 = vsel %vm551, %v5132, 0
    %5215 = vmatprep.subr.mxu0 0.0
    %5216 = vmatpush1.msra.mxu0 %v5210
    %5217 = vmatprep.subr.mxu0 0.0
    %5218 = vmatpush1.msra.mxu0 0.0
    %5219 = vmatprep.subr.mxu0 0.0
    %5220 = vmatpush1.msra.mxu0 0.0
    %5221 = vmatprep.subr.mxu0 0.0
    %5222 = vmatpush1.msra.mxu0 0.0
    %5223 = vmatprep.subr.mxu0 0.0
    %5224 = vmatpush1.msra.mxu0 0.0
    %5225 = vmatprep.subr.mxu0 0.0
    %5226 = vmatpush1.msra.mxu0 0.0
    %5227 = vmatprep.subr.mxu0 0.0
    %5228 = vmatpush1.msra.mxu0 0.0
    %5229 = vmatprep.subr.mxu0 0.0
    %5230 = vmatpush1.msra.mxu0 0.0
    %5231 = vmatprep.subr.mxu0 0.0
    %5232 = vmatpush1.msra.mxu0 0.0
    %5233 = vmatprep.subr.mxu0 0.0
    %5234 = vmatpush1.msra.mxu0 0.0
    %5235 = vmatprep.subr.mxu0 0.0
    %5236 = vmatpush1.msra.mxu0 0.0
    %5237 = vmatprep.subr.mxu0 0.0
    %5238 = vmatpush1.msra.mxu0 0.0
    %5239 = vmatprep.subr.mxu0 0.0
    %5240 = vmatpush1.msra.mxu0 0.0
    %5241 = vmatprep.subr.mxu0 0.0
    %5242 = vmatpush1.msra.mxu0 0.0
    %5243 = vmatprep.subr.mxu0 0.0
    %5244 = vmatpush1.msra.mxu0 0.0
    %5245 = vmatprep.subr.mxu0 0.0
    %5246 = vmatpush1.msra.mxu0 0.0
    %5247 = vmatprep.subr.mxu0 0.0
    %5248 = vmatpush1.msra.mxu0 0.0
    %5249 = vmatprep.subr.mxu0 0.0
    %5250 = vmatpush1.msra.mxu0 0.0
    %5251 = vmatprep.subr.mxu0 0.0
    %5252 = vmatpush1.msra.mxu0 0.0
    %5253 = vmatprep.subr.mxu0 0.0
    %5254 = vmatpush1.msra.mxu0 0.0
    %5255 = vmatprep.subr.mxu0 0.0
    %5256 = vmatpush1.msra.mxu0 0.0
    %5257 = vmatprep.subr.mxu0 0.0
    %5258 = vmatpush1.msra.mxu0 0.0
    %5259 = vmatprep.subr.mxu0 0.0
    %5260 = vmatpush1.msra.mxu0 0.0
    %5261 = vmatprep.subr.mxu0 0.0
    %5262 = vmatpush1.msra.mxu0 0.0
    %5263 = vmatprep.subr.mxu0 0.0
    %5264 = vmatpush1.msra.mxu0 0.0
    %5265 = vmatprep.subr.mxu0 0.0
    %5266 = vmatpush1.msra.mxu0 0.0
    %5267 = vmatprep.subr.mxu0 0.0
    %5268 = vmatpush1.msra.mxu0 0.0
    %5269 = vmatprep.subr.mxu0 0.0
    %5270 = vmatpush1.msra.mxu0 0.0
    %5271 = vmatprep.subr.mxu0 0.0
    %5272 = vmatpush1.msra.mxu0 0.0
    %5273 = vmatprep.subr.mxu0 0.0
    %5274 = vmatpush1.msra.mxu0 0.0
    %5275 = vmatprep.subr.mxu0 0.0
    %5276 = vmatpush1.msra.mxu0 0.0
    %5277 = vmatprep.subr.mxu0 0.0
    %5278 = vmatpush1.msra.mxu0 0.0
    %5279 = vmatprep.mubr.f32.mxu0 0.0
    %5280 = vmatmul.mubr.f32.gmra.mrb[0].mxu0 %v5213
    %v5281 = vpop.f32.mrb[0].mxu0
    %v5282 = vadd.f32 0.0, %v5281
    %v5283 = vpop.f32.mrb[0].mxu0
    %5284 = vdwg.mxu0
    %s5285 = scalar_lea.vmem %s7, 176
    %v5286 = vld [vmem:[%s5285] sm:$0xff]
    %v5287 = vld [vmem:[%s5285 + $0x8] sm:$0xff]
    %v5289 = vsel %vm398, %v5206, 0
    %v5292 = vsel %vm398, %v5282, 0
    %5294 = vmatprep.subr.mxu0 0.0
    %5295 = vmatpush1.msra.mxu0 %v5286
    %5296 = vmatprep.subr.mxu0 0.0
    %5297 = vmatpush1.msra.mxu0 %v5287
    %5298 = vmatprep.subr.mxu0 0.0
    %5299 = vmatpush1.msra.mxu0 0.0
    %5300 = vmatprep.subr.mxu0 0.0
    %5301 = vmatpush1.msra.mxu0 0.0
    %5302 = vmatprep.subr.mxu0 0.0
    %5303 = vmatpush1.msra.mxu0 0.0
    %5304 = vmatprep.subr.mxu0 0.0
    %5305 = vmatpush1.msra.mxu0 0.0
    %5306 = vmatprep.subr.mxu0 0.0
    %5307 = vmatpush1.msra.mxu0 0.0
    %5308 = vmatprep.subr.mxu0 0.0
    %5309 = vmatpush1.msra.mxu0 0.0
    %5310 = vmatprep.subr.mxu0 0.0
    %5311 = vmatpush1.msra.mxu0 0.0
    %5312 = vmatprep.subr.mxu0 0.0
    %5313 = vmatpush1.msra.mxu0 0.0
    %5314 = vmatprep.subr.mxu0 0.0
    %5315 = vmatpush1.msra.mxu0 0.0
    %5316 = vmatprep.subr.mxu0 0.0
    %5317 = vmatpush1.msra.mxu0 0.0
    %5318 = vmatprep.subr.mxu0 0.0
    %5319 = vmatpush1.msra.mxu0 0.0
    %5320 = vmatprep.subr.mxu0 0.0
    %5321 = vmatpush1.msra.mxu0 0.0
    %5322 = vmatprep.subr.mxu0 0.0
    %5323 = vmatpush1.msra.mxu0 0.0
    %5324 = vmatprep.subr.mxu0 0.0
    %5325 = vmatpush1.msra.mxu0 0.0
    %5326 = vmatprep.subr.mxu0 0.0
    %5327 = vmatpush1.msra.mxu0 0.0
    %5328 = vmatprep.subr.mxu0 0.0
    %5329 = vmatpush1.msra.mxu0 0.0
    %5330 = vmatprep.subr.mxu0 0.0
    %5331 = vmatpush1.msra.mxu0 0.0
    %5332 = vmatprep.subr.mxu0 0.0
    %5333 = vmatpush1.msra.mxu0 0.0
    %5334 = vmatprep.subr.mxu0 0.0
    %5335 = vmatpush1.msra.mxu0 0.0
    %5336 = vmatprep.subr.mxu0 0.0
    %5337 = vmatpush1.msra.mxu0 0.0
    %5338 = vmatprep.subr.mxu0 0.0
    %5339 = vmatpush1.msra.mxu0 0.0
    %5340 = vmatprep.subr.mxu0 0.0
    %5341 = vmatpush1.msra.mxu0 0.0
    %5342 = vmatprep.subr.mxu0 0.0
    %5343 = vmatpush1.msra.mxu0 0.0
    %5344 = vmatprep.subr.mxu0 0.0
    %5345 = vmatpush1.msra.mxu0 0.0
    %5346 = vmatprep.subr.mxu0 0.0
    %5347 = vmatpush1.msra.mxu0 0.0
    %5348 = vmatprep.subr.mxu0 0.0
    %5349 = vmatpush1.msra.mxu0 0.0
    %5350 = vmatprep.subr.mxu0 0.0
    %5351 = vmatpush1.msra.mxu0 0.0
    %5352 = vmatprep.subr.mxu0 0.0
    %5353 = vmatpush1.msra.mxu0 0.0
    %5354 = vmatprep.subr.mxu0 0.0
    %5355 = vmatpush1.msra.mxu0 0.0
    %5356 = vmatprep.subr.mxu0 0.0
    %5357 = vmatpush1.msra.mxu0 0.0
    %5358 = vmatprep.mubr.f32.mxu0 0.0
    %5359 = vmatmul.mubr.f32.gmra.mrb[0].mxu0 %v5289
    %v5360 = vpop.f32.mrb[0].mxu0
    %v5361 = vadd.f32 0.0, %v5360
    %v5362 = vpop.f32.mrb[0].mxu0
    %5363 = vmatprep.mubr.f32.mxu0 0.0
    %5364 = vmatmul.mubr.f32.gmra.mrb[0].mxu0 %v5292
    %v5365 = vpop.f32.mrb[0].mxu0
    %v5366 = vadd.f32 0.0, %v5365
    %v5367 = vpop.f32.mrb[0].mxu0
    %5368 = vdwg.mxu0
    %v5369 = vadd.f32 %v4953, %v5361
    %v5370 = vadd.f32 %v4954, %v5366
    %v5371 = vld [vmem:[%s8] sm:$0x1]
    %v5373 = vlaneseq
    %v5374 = vshrl.u32 %v5373, 7
    %v5375 = vsub.s32 0, %v5374
    %v5376 = vrot.slane %v5371, %v5375
    %v5378 = vadd.f32 %v5369, %v5376
    %v5379 = vadd.f32 %v5370, %v5376
    %v5380 = vmax.f32 %v5378, 0.0
    %v5381 = vmax.f32 %v5379, 0.0
    %5382 = vst [vmem:[#allocation2] sm:$0xff] %v5380
    %5383 = vst [vmem:[#allocation2 + $0x8] sm:$0xff] %v5381
    // Predicated region
    $region38: #{tpu_custom_call.1} parent=1 // pred_check
      _
    $region39: #{tpu_custom_call.1} parent=1 // pred_check_branch
      %5385 = sbr.rel (0) target = $region41
    $region40: #{tpu_custom_call.1} parent=1 // pred_region
      %s5387 = ssub.s32 256, 256
      %5388 = vsyncadd [#allocation3], %s5387
      %s5389 = sshll.u32 [#allocation2], 4
      %s5390 = int_to_ptr.vmem [resolvable:$true] %s5389
      %5395 = dma.vmem_to_hbm [thread:$0]  %s5390, 256, %s9, [#allocation3], 128, 128, 8
    $region41: #{tpu_custom_call.1} parent=1 // pred_fallthru
      _
    // Predicated region
    $region42: #{tpu_custom_call.1} parent=1 // pred_check
      _
    $region43: #{tpu_custom_call.1} parent=1 // pred_check_branch
      %5397 = sbr.rel (0) target = $region45
    $region44: #{tpu_custom_call.1} parent=1 // pred_region
      %5398 = dma.done [#allocation3], 256
    $region45: #{tpu_custom_call.1} parent=1 // pred_fallthru
      _
    %5399 = vsyncpa [#allocation3], 1

</llo_original>
